<compile_context>
chip_gen: v6e
topology: v6e:2x2x1
jax: 0.10.0
libtpu: 0.0.40
codegen_flags: <defaults>
</compile_context>

<pallas_src>
import jax
import jax.numpy as jnp
import numpy as np
from jax.experimental import pallas as pl
from jax.experimental.pallas import tpu as pltpu


def fd_kernel(x_ref, w1_ref, b1_ref, w2_ref, b2_ref, o_ref, y1pad_ref):
    # x_ref : (1, H+2, W+2, Cin)   padded input tile (one batch element)
    # w1_ref: (9*Cin, Chid)        b1_ref: (1, Chid)
    # w2_ref: (9*Chid, Cout)       b2_ref: (1, Cout)
    # o_ref : (1, Cout, H*W)       lane-dense output (H*W multiple of 128)
    # y1pad_ref: VMEM scratch (H+2, W+2, Chid) zero-padded intermediate
    _, Hp2, Wp2, Cin = x_ref.shape
    H, W = Hp2 - 2, Wp2 - 2
    Chid = w1_ref.shape[1]

    x = x_ref[0]  # (H+2, W+2, Cin) f32

    # ---- conv1: im2col (one matmul, K = 9*Cin) ----
    cols1 = [x[dh:dh + H, dw:dw + W, :] for dh in range(3) for dw in range(3)]
    patch1 = jnp.concatenate(cols1, axis=-1).reshape(H * W, 9 * Cin)
    acc1 = jnp.dot(patch1, w1_ref[...], preferred_element_type=jnp.float32)
    acc1 = acc1 + b1_ref[...]                     # (1, Chid) broadcast

    # ---- SiLU (f32) ----
    y1 = acc1 * jax.nn.sigmoid(acc1)              # (H*W, Chid)

    # ---- zero-padded intermediate: zero ONLY the 1-px border, every step ----
    # (interior is fully overwritten; re-zeroing the border each step keeps it
    #  correct even when the parallel batch axis is core-split on v7x)
    zrow = jnp.zeros((1, Wp2, Chid), jnp.float32)
    zcol = jnp.zeros((Hp2, 1, Chid), jnp.float32)
    y1pad_ref[0:1, :, :] = zrow
    y1pad_ref[H + 1:H + 2, :, :] = zrow
    y1pad_ref[:, 0:1, :] = zcol
    y1pad_ref[:, W + 1:W + 2, :] = zcol
    y1pad_ref[1:H + 1, 1:W + 1, :] = y1.reshape(H, W, Chid)
    y1p = y1pad_ref[...]                          # (H+2, W+2, Chid)

    # ---- conv2: im2col (one matmul, K = 9*Chid) ----
    cols2 = [y1p[dh:dh + H, dw:dw + W, :] for dh in range(3) for dw in range(3)]
    patch2 = jnp.concatenate(cols2, axis=-1).reshape(H * W, 9 * Chid)
    acc2 = jnp.dot(patch2, w2_ref[...], preferred_element_type=jnp.float32)
    acc2 = acc2 + b2_ref[...]                     # (H*W, Cout)

    # ---- lane-dense store: (Cout, H*W), last dim is a multiple of 128 ----
    o_ref[0] = jnp.transpose(acc2).astype(o_ref.dtype)


def fd_forward(x_nchw, w1, b1, w2, b2):
    """x_nchw: (N, Cin, H, W); weights in PyTorch Conv2d layout (co, ci, 3, 3)."""
    N, Cin, H, W = x_nchw.shape
    Chid = w1.shape[0]
    Cout = w2.shape[0]

    # glue: layout transforms in plain JAX
    x = jnp.transpose(x_nchw, (0, 2, 3, 1))                         # NHWC
    x_pad = jnp.pad(x, ((0, 0), (1, 1), (1, 1), (0, 0)))            # conv1 padding
    # im2col weight layout: row = (kh*3 + kw)*Ci + ci, col = co
    w1k = jnp.transpose(w1, (2, 3, 1, 0)).reshape(9 * Cin, Chid)
    w2k = jnp.transpose(w2, (2, 3, 1, 0)).reshape(9 * Chid, Cout)
    b1r = b1.reshape(1, Chid)
    b2r = b2.reshape(1, Cout)

    out = pl.pallas_call(
        fd_kernel,
        out_shape=jax.ShapeDtypeStruct((N, Cout, H * W), x.dtype),
        grid_spec=pltpu.PrefetchScalarGridSpec(
            num_scalar_prefetch=0,
            grid=(N,),
            in_specs=[
                pl.BlockSpec((1, H + 2, W + 2, Cin), lambda n: (n, 0, 0, 0)),
                pl.BlockSpec((9 * Cin, Chid), lambda n: (0, 0)),
                pl.BlockSpec((1, Chid), lambda n: (0, 0)),
                pl.BlockSpec((9 * Chid, Cout), lambda n: (0, 0)),
                pl.BlockSpec((1, Cout), lambda n: (0, 0)),
            ],
            out_specs=pl.BlockSpec((1, Cout, H * W), lambda n: (n, 0, 0)),
            scratch_shapes=[pltpu.VMEM((H + 2, W + 2, Chid), jnp.float32)],
        ),
        compiler_params=pltpu.CompilerParams(
            dimension_semantics=("parallel",)),
    )(x_pad, w1k, b1r, w2k, b2r)

    return out.reshape(N, Cout, H, W)                               # free reshape


def fd_reference(x, w1, b1, w2, b2):
    """Pure-JAX reference (NCHW, same semantics as the PyTorch module)."""
    def conv(z, w, b):
        y = jax.lax.conv_general_dilated(
            z, w, window_strides=(1, 1), padding=((1, 1), (1, 1)),
            dimension_numbers=('NCHW', 'OIHW', 'NCHW'))
        return y + b[None, :, None, None]
    y = conv(x, w1, b1)
    y = y * jax.nn.sigmoid(y)
    return conv(y, w2, b2)


if __name__ == "__main__":
    # small shapes consistent with FD(inp_channels=4, out_channels=4, exp_ratio=4)
    N, Cin, H, W = 2, 4, 16, 16
    exp_ratio = 4
    Chid = Cin * exp_ratio
    Cout = 4

    key = jax.random.PRNGKey(0)
    kx, k1, k2, k3, k4 = jax.random.split(key, 5)
    x = jax.random.normal(kx, (N, Cin, H, W), dtype=jnp.float32)
    # deterministic synthetic parameters (PyTorch Conv2d weight layout: (co, ci, 3, 3))
    w1 = jax.random.normal(k1, (Chid, Cin, 3, 3), dtype=jnp.float32) * 0.1
    b1 = jax.random.normal(k2, (Chid,), dtype=jnp.float32) * 0.1
    w2 = jax.random.normal(k3, (Cout, Chid, 3, 3), dtype=jnp.float32) * 0.1
    b2 = jax.random.normal(k4, (Cout,), dtype=jnp.float32) * 0.1

    out = jax.block_until_ready(fd_forward(x, w1, b1, w2, b2))
    ref = jax.block_until_ready(fd_reference(x, w1, b1, w2, b2))

    assert out.shape == (N, Cout, H, W), out.shape
    np.testing.assert_allclose(np.asarray(out), np.asarray(ref),
                               rtol=1e-3, atol=1e-3)
    print("KERNEL_OK")
</pallas_src>

<mosaic_0001>
module attributes {stable_mosaic.version = 11 : i64} {
  func.func @fd_kernel(%arg0: i32, %arg1: memref<1x18x18x4xf32, #tpu.memory_space<vmem>>, %arg2: memref<36x16xf32, #tpu.memory_space<vmem>>, %arg3: memref<1x16xf32, #tpu.memory_space<vmem>>, %arg4: memref<144x4xf32, #tpu.memory_space<vmem>>, %arg5: memref<1x4xf32, #tpu.memory_space<vmem>>, %arg6: memref<1x4x256xf32, #tpu.memory_space<vmem>>, %arg7: memref<18x18x16xf32, #tpu.memory_space<vmem>>) attributes {dimension_semantics = [#tpu.dimension_semantics<parallel>], iteration_bounds = array<i64: 2>, scalar_prefetch = 0 : i64, scratch_operands = 1 : i64, tpu.core_type = #tpu.core_type<tc>, window_params = [{transform_indices = @transform_0, window_bounds = array<i64: 1, 18, 18, 4>}, {pipeline_mode = #tpu.pipeline_mode<synchronous>, transform_indices = @transform_1, window_bounds = array<i64: 36, 16>}, {pipeline_mode = #tpu.pipeline_mode<synchronous>, transform_indices = @transform_2, window_bounds = array<i64: 1, 16>}, {pipeline_mode = #tpu.pipeline_mode<synchronous>, transform_indices = @transform_3, window_bounds = array<i64: 144, 4>}, {pipeline_mode = #tpu.pipeline_mode<synchronous>, transform_indices = @transform_4, window_bounds = array<i64: 1, 4>}, {transform_indices = @transform_5, window_bounds = array<i64: 1, 4, 256>}]} {
    %c0 = arith.constant 0 : index
    %c0_0 = arith.constant 0 : index
    %c0_1 = arith.constant 0 : index
    %c0_2 = arith.constant 0 : index
    %0 = vector.load %arg1[%c0, %c0_0, %c0_1, %c0_2] : memref<1x18x18x4xf32, #tpu.memory_space<vmem>>, vector<1x18x18x4xf32>
    %1 = vector.shape_cast %0 : vector<1x18x18x4xf32> to vector<18x18x4xf32>
    %2 = vector.extract_strided_slice %1 {offsets = [0, 0, 0], sizes = [16, 16, 4], strides = [1, 1, 1]} : vector<18x18x4xf32> to vector<16x16x4xf32>
    %3 = vector.extract_strided_slice %1 {offsets = [0, 1, 0], sizes = [16, 16, 4], strides = [1, 1, 1]} : vector<18x18x4xf32> to vector<16x16x4xf32>
    %4 = vector.extract_strided_slice %1 {offsets = [0, 2, 0], sizes = [16, 16, 4], strides = [1, 1, 1]} : vector<18x18x4xf32> to vector<16x16x4xf32>
    %5 = vector.extract_strided_slice %1 {offsets = [1, 0, 0], sizes = [16, 16, 4], strides = [1, 1, 1]} : vector<18x18x4xf32> to vector<16x16x4xf32>
    %6 = vector.extract_strided_slice %1 {offsets = [1, 1, 0], sizes = [16, 16, 4], strides = [1, 1, 1]} : vector<18x18x4xf32> to vector<16x16x4xf32>
    %7 = vector.extract_strided_slice %1 {offsets = [1, 2, 0], sizes = [16, 16, 4], strides = [1, 1, 1]} : vector<18x18x4xf32> to vector<16x16x4xf32>
    %8 = vector.extract_strided_slice %1 {offsets = [2, 0, 0], sizes = [16, 16, 4], strides = [1, 1, 1]} : vector<18x18x4xf32> to vector<16x16x4xf32>
    %9 = vector.extract_strided_slice %1 {offsets = [2, 1, 0], sizes = [16, 16, 4], strides = [1, 1, 1]} : vector<18x18x4xf32> to vector<16x16x4xf32>
    %10 = vector.extract_strided_slice %1 {offsets = [2, 2, 0], sizes = [16, 16, 4], strides = [1, 1, 1]} : vector<18x18x4xf32> to vector<16x16x4xf32>
    %11 = tpu.concatenate %2, %3, %4, %5, %6, %7, %8, %9, %10 in 2 : vector<16x16x4xf32>, vector<16x16x4xf32>, vector<16x16x4xf32>, vector<16x16x4xf32>, vector<16x16x4xf32>, vector<16x16x4xf32>, vector<16x16x4xf32>, vector<16x16x4xf32>, vector<16x16x4xf32> -> vector<16x16x36xf32>
    %12 = vector.shape_cast %11 : vector<16x16x36xf32> to vector<256x36xf32>
    %c0_3 = arith.constant 0 : index
    %c0_4 = arith.constant 0 : index
    %13 = vector.load %arg2[%c0_3, %c0_4] : memref<36x16xf32, #tpu.memory_space<vmem>>, vector<36x16xf32>
    %cst = arith.constant dense<0.000000e+00> : vector<256x16xf32>
    %14 = tpu.matmul %12, %13, %cst {dimension_numbers = #tpu.dot_dimension_numbers<[1], [0], [0], [1], [0, 0, 1, 1], [], []>} : vector<256x36xf32>, vector<36x16xf32>, vector<256x16xf32> -> vector<256x16xf32>
    %c0_5 = arith.constant 0 : index
    %c0_6 = arith.constant 0 : index
    %15 = vector.load %arg3[%c0_5, %c0_6] : memref<1x16xf32, #tpu.memory_space<vmem>>, vector<1x16xf32>
    %16 = vector.broadcast %15 : vector<1x16xf32> to vector<256x16xf32>
    %17 = arith.addf %14, %16 : vector<256x16xf32>
    %18 = arith.negf %17 : vector<256x16xf32>
    %19 = math.exp %18 : vector<256x16xf32>
    %cst_7 = arith.constant 1.000000e+00 : f32
    %20 = vector.broadcast %cst_7 : f32 to vector<256x16xf32>
    %21 = arith.addf %20, %19 : vector<256x16xf32>
    %22 = arith.divf %20, %21 : vector<256x16xf32>
    %23 = arith.mulf %17, %22 : vector<256x16xf32>
    %cst_8 = arith.constant 0.000000e+00 : f32
    %24 = vector.broadcast %cst_8 : f32 to vector<1x18x16xf32>
    %cst_9 = arith.constant 0.000000e+00 : f32
    %25 = vector.broadcast %cst_9 : f32 to vector<18x1x16xf32>
    %c0_10 = arith.constant 0 : index
    %c0_11 = arith.constant 0 : index
    %c0_12 = arith.constant 0 : index
    %26 = vector.load %arg7[%c0_10, %c0_11, %c0_12] : memref<18x18x16xf32, #tpu.memory_space<vmem>>, vector<1x18x16xf32>
    tpu.vector_store %arg7[%c0_10, %c0_11, %c0_12], %24 {strides = array<i32>} : memref<18x18x16xf32, #tpu.memory_space<vmem>>, vector<1x18x16xf32>,
    %c17 = arith.constant 17 : index
    %c0_13 = arith.constant 0 : index
    %c0_14 = arith.constant 0 : index
    %27 = vector.load %arg7[%c17, %c0_13, %c0_14] : memref<18x18x16xf32, #tpu.memory_space<vmem>>, vector<1x18x16xf32>
    tpu.vector_store %arg7[%c17, %c0_13, %c0_14], %24 {strides = array<i32>} : memref<18x18x16xf32, #tpu.memory_space<vmem>>, vector<1x18x16xf32>,
    %c0_15 = arith.constant 0 : index
    %c0_16 = arith.constant 0 : index
    %c0_17 = arith.constant 0 : index
    %28 = vector.load %arg7[%c0_15, %c0_16, %c0_17] : memref<18x18x16xf32, #tpu.memory_space<vmem>>, vector<18x1x16xf32>
    tpu.vector_store %arg7[%c0_15, %c0_16, %c0_17], %25 {strides = array<i32>} : memref<18x18x16xf32, #tpu.memory_space<vmem>>, vector<18x1x16xf32>,
    %c0_18 = arith.constant 0 : index
    %c17_19 = arith.constant 17 : index
    %c0_20 = arith.constant 0 : index
    %29 = vector.load %arg7[%c0_18, %c17_19, %c0_20] : memref<18x18x16xf32, #tpu.memory_space<vmem>>, vector<18x1x16xf32>
    tpu.vector_store %arg7[%c0_18, %c17_19, %c0_20], %25 {strides = array<i32>} : memref<18x18x16xf32, #tpu.memory_space<vmem>>, vector<18x1x16xf32>,
    %30 = vector.shape_cast %23 : vector<256x16xf32> to vector<16x16x16xf32>
    %c1 = arith.constant 1 : index
    %c1_21 = arith.constant 1 : index
    %c0_22 = arith.constant 0 : index
    %31 = vector.load %arg7[%c1, %c1_21, %c0_22] : memref<18x18x16xf32, #tpu.memory_space<vmem>>, vector<16x16x16xf32>
    tpu.vector_store %arg7[%c1, %c1_21, %c0_22], %30 {strides = array<i32>} : memref<18x18x16xf32, #tpu.memory_space<vmem>>, vector<16x16x16xf32>,
    %c0_23 = arith.constant 0 : index
    %c0_24 = arith.constant 0 : index
    %c0_25 = arith.constant 0 : index
    %32 = vector.load %arg7[%c0_23, %c0_24, %c0_25] : memref<18x18x16xf32, #tpu.memory_space<vmem>>, vector<18x18x16xf32>
    %33 = vector.extract_strided_slice %32 {offsets = [0, 0, 0], sizes = [16, 16, 16], strides = [1, 1, 1]} : vector<18x18x16xf32> to vector<16x16x16xf32>
    %34 = vector.extract_strided_slice %32 {offsets = [0, 1, 0], sizes = [16, 16, 16], strides = [1, 1, 1]} : vector<18x18x16xf32> to vector<16x16x16xf32>
    %35 = vector.extract_strided_slice %32 {offsets = [0, 2, 0], sizes = [16, 16, 16], strides = [1, 1, 1]} : vector<18x18x16xf32> to vector<16x16x16xf32>
    %36 = vector.extract_strided_slice %32 {offsets = [1, 0, 0], sizes = [16, 16, 16], strides = [1, 1, 1]} : vector<18x18x16xf32> to vector<16x16x16xf32>
    %37 = vector.extract_strided_slice %32 {offsets = [1, 1, 0], sizes = [16, 16, 16], strides = [1, 1, 1]} : vector<18x18x16xf32> to vector<16x16x16xf32>
    %38 = vector.extract_strided_slice %32 {offsets = [1, 2, 0], sizes = [16, 16, 16], strides = [1, 1, 1]} : vector<18x18x16xf32> to vector<16x16x16xf32>
    %39 = vector.extract_strided_slice %32 {offsets = [2, 0, 0], sizes = [16, 16, 16], strides = [1, 1, 1]} : vector<18x18x16xf32> to vector<16x16x16xf32>
    %40 = vector.extract_strided_slice %32 {offsets = [2, 1, 0], sizes = [16, 16, 16], strides = [1, 1, 1]} : vector<18x18x16xf32> to vector<16x16x16xf32>
    %41 = vector.extract_strided_slice %32 {offsets = [2, 2, 0], sizes = [16, 16, 16], strides = [1, 1, 1]} : vector<18x18x16xf32> to vector<16x16x16xf32>
    %42 = tpu.concatenate %33, %34, %35, %36, %37, %38, %39, %40, %41 in 2 : vector<16x16x16xf32>, vector<16x16x16xf32>, vector<16x16x16xf32>, vector<16x16x16xf32>, vector<16x16x16xf32>, vector<16x16x16xf32>, vector<16x16x16xf32>, vector<16x16x16xf32>, vector<16x16x16xf32> -> vector<16x16x144xf32>
    %43 = vector.shape_cast %42 : vector<16x16x144xf32> to vector<256x144xf32>
    %c0_26 = arith.constant 0 : index
    %c0_27 = arith.constant 0 : index
    %44 = vector.load %arg4[%c0_26, %c0_27] : memref<144x4xf32, #tpu.memory_space<vmem>>, vector<144x4xf32>
    %cst_28 = arith.constant dense<0.000000e+00> : vector<256x4xf32>
    %45 = tpu.matmul %43, %44, %cst_28 {dimension_numbers = #tpu.dot_dimension_numbers<[1], [0], [0], [1], [0, 0, 1, 1], [], []>} : vector<256x144xf32>, vector<144x4xf32>, vector<256x4xf32> -> vector<256x4xf32>
    %c0_29 = arith.constant 0 : index
    %c0_30 = arith.constant 0 : index
    %46 = vector.load %arg5[%c0_29, %c0_30] : memref<1x4xf32, #tpu.memory_space<vmem>>, vector<1x4xf32>
    %47 = vector.broadcast %46 : vector<1x4xf32> to vector<256x4xf32>
    %48 = arith.addf %45, %47 : vector<256x4xf32>
    %49 = tpu.transpose %48, [1, 0] : vector<256x4xf32> -> vector<4x256xf32>
    %c0_31 = arith.constant 0 : index
    %c0_32 = arith.constant 0 : index
    %c0_33 = arith.constant 0 : index
    %50 = vector.load %arg6[%c0_31, %c0_32, %c0_33] : memref<1x4x256xf32, #tpu.memory_space<vmem>>, vector<1x4x256xf32>
    %51 = vector.shape_cast %50 : vector<1x4x256xf32> to vector<4x256xf32>
    %52 = vector.shape_cast %49 : vector<4x256xf32> to vector<1x4x256xf32>
    tpu.vector_store %arg6[%c0_31, %c0_32, %c0_33], %52 {strides = array<i32>} : memref<1x4x256xf32, #tpu.memory_space<vmem>>, vector<1x4x256xf32>,
    return
  }
  func.func @transform_0(%arg0: i32) -> (i32, i32, i32, i32) {
    %c0_i32 = arith.constant 0 : i32
    %c0_i32_0 = arith.constant 0 : i32
    %c0_i32_1 = arith.constant 0 : i32
    %c0_i32_2 = arith.constant 0 : i32
    return %arg0, %c0_i32, %c0_i32_0, %c0_i32_1 : i32, i32, i32, i32
  }
  func.func @transform_1(%arg0: i32) -> (i32, i32) {
    %c0_i32 = arith.constant 0 : i32
    %c0_i32_0 = arith.constant 0 : i32
    %c0_i32_1 = arith.constant 0 : i32
    return %c0_i32, %c0_i32_0 : i32, i32
  }
  func.func @transform_2(%arg0: i32) -> (i32, i32) {
    %c0_i32 = arith.constant 0 : i32
    %c0_i32_0 = arith.constant 0 : i32
    %c0_i32_1 = arith.constant 0 : i32
    return %c0_i32, %c0_i32_0 : i32, i32
  }
  func.func @transform_3(%arg0: i32) -> (i32, i32) {
    %c0_i32 = arith.constant 0 : i32
    %c0_i32_0 = arith.constant 0 : i32
    %c0_i32_1 = arith.constant 0 : i32
    return %c0_i32, %c0_i32_0 : i32, i32
  }
  func.func @transform_4(%arg0: i32) -> (i32, i32) {
    %c0_i32 = arith.constant 0 : i32
    %c0_i32_0 = arith.constant 0 : i32
    %c0_i32_1 = arith.constant 0 : i32
    return %c0_i32, %c0_i32_0 : i32, i32
  }
  func.func @transform_5(%arg0: i32) -> (i32, i32, i32) {
    %c0_i32 = arith.constant 0 : i32
    %c0_i32_0 = arith.constant 0 : i32
    %c0_i32_1 = arith.constant 0 : i32
    return %arg0, %c0_i32, %c0_i32_0 : i32, i32, i32
  }
}

</mosaic_0001>

<llo_original>
// kernel: tpu_custom_call.1
$region0: #{tpu_custom_call.1}
  #allocation0 [shape = 'u32[]', space=smem, size = 0x4, offset = 0x4, fixed_abs, tag = 'smem constant byte address 0x4 - core index']
  #allocation1 [shape = 'u32[144,128]{1,0:T(1,128)}', space=vmem, size = 0x12000, scoped, tag = 'internal scratch']
  #allocation2 [shape = 'f32[18,18,16]{2,1,0:T(8,128)}', space=vmem, size = 0x36000, scoped, tag = 'scratch operand']
  %s0 = inlined_call_operand.vmem [shape: f32[2,18,18,4], index: 0, kind: input, shape index: {}]
  %s1 = inlined_call_operand.vmem [shape: f32[36,16], index: 1, kind: input, shape index: {}]
  %s2 = inlined_call_operand.vmem [shape: f32[1,16], index: 2, kind: input, shape index: {}]
  %s3 = inlined_call_operand.vmem [shape: f32[144,4], index: 3, kind: input, shape index: {}]
  %s4 = inlined_call_operand.vmem [shape: f32[1,4], index: 4, kind: input, shape index: {}]
  %s5 = inlined_call_operand.hbm [shape: f32[2,4,256], index: 5, kind: output, shape index: {}]
  %s6 = sld [smem:[#allocation0]]
  $region53: #{tpu_custom_call.1} parent=0
    _
  %s8 = ssub.s32 1, %s6
  %s9 = scalar_select 0, %s8, %s6
  $region1: #{tpu_custom_call.1} parent=0
    #allocation3 [shape = 'u8[8192]{0}', space=vmem, size = 0x2000, scoped, tag = 'output window, operand 0']
    #allocation4 [shape = 's32[2]{0}', space=sflag, size = 0x8, scoped, tag = 'scoped memory for tpu_custom_call.1']
    %10 = vsyncpa [#allocation4], 0
    %s11 = scalar_lea.sflag [#allocation4], 1
    %12 = vsyncpa %s11, 0
    loop: start=0, step=1, limit=4
    $region2: #{tpu_custom_call.1} parent=1 // loop_pre_header
      _
    $region3: #{tpu_custom_call.1} parent=1 // loop_header
      %s14 = sphi 0, %s18
      %p15 = scmp.ge.s32.totalorder %s14, 4
      %s24 = sphi 0, %s26
      %s27 = sphi 0, %s24
      %s28 = sphi 0, %s27
      %s44 = sphi 0, %s28
      %s48 = sphi 0, %s48
      %s50 = sphi 0, %s48
      %s51 = sphi 0, %s50
      %s65 = sphi 0, %s51
      %s69 = sphi 0, %s69
      %s71 = sphi 0, %s69
      %s72 = sphi 0, %s71
      %s86 = sphi 0, %s72
      %s90 = sphi 0, %s90
      %s92 = sphi 0, %s90
      %s93 = sphi 0, %s92
      %s107 = sphi 0, %s93
      %s111 = sphi 0, %s111
      %s113 = sphi 0, %s111
      %s114 = sphi 0, %s113
      %s128 = sphi 0, %s114
      %s134 = sphi 0, %s136
      %s137 = sphi 0, %s134
      %s138 = sphi 0, %s137
      %s154 = sphi 0, %s138
    $region4: #{tpu_custom_call.1} parent=1 // loop_header_branch
      %17 = sbr.rel (%p15) target = $region8
    $region5: #{tpu_custom_call.1} parent=1 // loop_body
      %s19 = ssub.s32 %s14, 1
      %s20 = ssub.s32 %s14, 2
      %s21 = sadd.s32 %s14, 1
      %s22 = ssub.s32 %s14, %s21
      %p23 = scmp.eq.s32.totalorder %s22, 0
      %s25 = sadd.s32 %s24, 1
      %s26 = scalar_select %p23, %s24, %s25
      %p29 = pneg %p23
      %p30 = scmp.eq.s32.totalorder %s14, 1
      %p31 = por %p29, %p30
      %p32 = scmp.ne.s32.totalorder %s24, %s27
      %p33 = scmp.eq.s32.totalorder %s14, 0
      %p34 = por %p32, %p33
      %p35 = scmp.ne.s32.totalorder %s24, %s27
      %p36 = scmp.eq.s32.totalorder %s19, 1
      %p37 = por %p35, %p36
      %p38 = scmp.ne.s32.totalorder %s27, %s28
      %p39 = scmp.eq.s32.totalorder %s19, 0
      %p40 = por %p38, %p39
      %p41 = scmp.ne.s32.totalorder %s27, %s28
      %p42 = scmp.eq.s32.totalorder %s20, 1
      %p43 = por %p41, %p42
      %p45 = scmp.ne.s32.totalorder %s28, %s44
      %p46 = scmp.eq.s32.totalorder %s20, 0
      %p47 = por %p45, %p46
      %s49 = sadd.s32 %s48, 1
      %p52 = scmp.eq.s32.totalorder %s14, 1
      %p53 = scmp.ne.s32.totalorder %s48, %s50
      %p54 = scmp.eq.s32.totalorder %s14, 0
      %p55 = por %p53, %p54
      %p56 = scmp.ne.s32.totalorder %s48, %s50
      %p57 = scmp.eq.s32.totalorder %s19, 1
      %p58 = por %p56, %p57
      %p59 = scmp.ne.s32.totalorder %s50, %s51
      %p60 = scmp.eq.s32.totalorder %s19, 0
      %p61 = por %p59, %p60
      %p62 = scmp.ne.s32.totalorder %s50, %s51
      %p63 = scmp.eq.s32.totalorder %s20, 1
      %p64 = por %p62, %p63
      %p66 = scmp.ne.s32.totalorder %s51, %s65
      %p67 = scmp.eq.s32.totalorder %s20, 0
      %p68 = por %p66, %p67
      %s70 = sadd.s32 %s69, 1
      %p73 = scmp.eq.s32.totalorder %s14, 1
      %p74 = scmp.ne.s32.totalorder %s69, %s71
      %p75 = scmp.eq.s32.totalorder %s14, 0
      %p76 = por %p74, %p75
      %p77 = scmp.ne.s32.totalorder %s69, %s71
      %p78 = scmp.eq.s32.totalorder %s19, 1
      %p79 = por %p77, %p78
      %p80 = scmp.ne.s32.totalorder %s71, %s72
      %p81 = scmp.eq.s32.totalorder %s19, 0
      %p82 = por %p80, %p81
      %p83 = scmp.ne.s32.totalorder %s71, %s72
      %p84 = scmp.eq.s32.totalorder %s20, 1
      %p85 = por %p83, %p84
      %p87 = scmp.ne.s32.totalorder %s72, %s86
      %p88 = scmp.eq.s32.totalorder %s20, 0
      %p89 = por %p87, %p88
      %s91 = sadd.s32 %s90, 1
      %p94 = scmp.eq.s32.totalorder %s14, 1
      %p95 = scmp.ne.s32.totalorder %s90, %s92
      %p96 = scmp.eq.s32.totalorder %s14, 0
      %p97 = por %p95, %p96
      %p98 = scmp.ne.s32.totalorder %s90, %s92
      %p99 = scmp.eq.s32.totalorder %s19, 1
      %p100 = por %p98, %p99
      %p101 = scmp.ne.s32.totalorder %s92, %s93
      %p102 = scmp.eq.s32.totalorder %s19, 0
      %p103 = por %p101, %p102
      %p104 = scmp.ne.s32.totalorder %s92, %s93
      %p105 = scmp.eq.s32.totalorder %s20, 1
      %p106 = por %p104, %p105
      %p108 = scmp.ne.s32.totalorder %s93, %s107
      %p109 = scmp.eq.s32.totalorder %s20, 0
      %p110 = por %p108, %p109
      %s112 = sadd.s32 %s111, 1
      %p115 = scmp.eq.s32.totalorder %s14, 1
      %p116 = scmp.ne.s32.totalorder %s111, %s113
      %p117 = scmp.eq.s32.totalorder %s14, 0
      %p118 = por %p116, %p117
      %p119 = scmp.ne.s32.totalorder %s111, %s113
      %p120 = scmp.eq.s32.totalorder %s19, 1
      %p121 = por %p119, %p120
      %p122 = scmp.ne.s32.totalorder %s113, %s114
      %p123 = scmp.eq.s32.totalorder %s19, 0
      %p124 = por %p122, %p123
      %p125 = scmp.ne.s32.totalorder %s113, %s114
      %p126 = scmp.eq.s32.totalorder %s20, 1
      %p127 = por %p125, %p126
      %p129 = scmp.ne.s32.totalorder %s114, %s128
      %p130 = scmp.eq.s32.totalorder %s20, 0
      %p131 = por %p129, %p130
      %s132 = ssub.s32 %s14, %s21
      %p133 = scmp.eq.s32.totalorder %s132, 0
      %s135 = sadd.s32 %s134, 1
      %s136 = scalar_select %p133, %s134, %s135
      %p139 = pneg %p133
      %p140 = scmp.eq.s32.totalorder %s14, 1
      %p141 = por %p139, %p140
      %p142 = scmp.ne.s32.totalorder %s134, %s137
      %p143 = scmp.eq.s32.totalorder %s14, 0
      %p144 = por %p142, %p143
      %p145 = scmp.ne.s32.totalorder %s134, %s137
      %p146 = scmp.eq.s32.totalorder %s19, 1
      %p147 = por %p145, %p146
      %p148 = scmp.ne.s32.totalorder %s137, %s138
      %p149 = scmp.eq.s32.totalorder %s19, 0
      %p150 = por %p148, %p149
      %p151 = scmp.ne.s32.totalorder %s137, %s138
      %p152 = scmp.eq.s32.totalorder %s20, 1
      %p153 = por %p151, %p152
      %p155 = scmp.ne.s32.totalorder %s138, %s154
      %p156 = scmp.eq.s32.totalorder %s20, 0
      %p157 = por %p155, %p156
      %p158 = scmp.le.s32.totalorder 1, %s14
      %p159 = scmp.lt.s32.totalorder %s14, 3
      %p160 = pnand %p158, %p159
      %p161 = pneg %p160
      // Predicated region
      $region9: #{tpu_custom_call.1} parent=5 // pred_check
        _
      $region10: #{tpu_custom_call.1} parent=5 // pred_check_branch
        %163 = sbr.rel (%p160) target = $region12
      $region11: #{tpu_custom_call.1} parent=5 // pred_region
        %s164 = ssub.s32 %s14, 1
        // Predicated region
        $region13: #{tpu_custom_call.1} parent=11 // pred_check
          %p165 = pneg %p61
        $region14: #{tpu_custom_call.1} parent=11 // pred_check_branch
          %167 = sbr.rel (%p165) target = $region16
        $region15: #{tpu_custom_call.1} parent=11 // pred_region
          _
        $region16: #{tpu_custom_call.1} parent=11 // pred_fallthru
          _
        // Predicated region
        $region17: #{tpu_custom_call.1} parent=11 // pred_check
          %p168 = pneg %p82
        $region18: #{tpu_custom_call.1} parent=11 // pred_check_branch
          %170 = sbr.rel (%p168) target = $region20
        $region19: #{tpu_custom_call.1} parent=11 // pred_region
          _
        $region20: #{tpu_custom_call.1} parent=11 // pred_fallthru
          _
        // Predicated region
        $region21: #{tpu_custom_call.1} parent=11 // pred_check
          %p171 = pneg %p103
        $region22: #{tpu_custom_call.1} parent=11 // pred_check_branch
          %173 = sbr.rel (%p171) target = $region24
        $region23: #{tpu_custom_call.1} parent=11 // pred_region
          _
        $region24: #{tpu_custom_call.1} parent=11 // pred_fallthru
          _
        // Predicated region
        $region25: #{tpu_custom_call.1} parent=11 // pred_check
          %p174 = pneg %p124
        $region26: #{tpu_custom_call.1} parent=11 // pred_check_branch
          %176 = sbr.rel (%p174) target = $region28
        $region27: #{tpu_custom_call.1} parent=11 // pred_region
          _
        $region28: #{tpu_custom_call.1} parent=11 // pred_fallthru
          _
      $region12: #{tpu_custom_call.1} parent=5 // pred_fallthru
        _
      %p177 = scmp.lt.s32.totalorder %s14, 2
      // Predicated region
      $region29: #{tpu_custom_call.1} parent=5 // pred_check
        %p178 = pneg %p177
      $region30: #{tpu_custom_call.1} parent=5 // pred_check_branch
        %180 = sbr.rel (%p178) target = $region32
      $region31: #{tpu_custom_call.1} parent=5 // pred_region
        // Predicated region
        $region33: #{tpu_custom_call.1} parent=31 // pred_check
          %p181 = pneg %p34
        $region34: #{tpu_custom_call.1} parent=31 // pred_check_branch
          %183 = sbr.rel (%p181) target = $region36
        $region35: #{tpu_custom_call.1} parent=31 // pred_region
          %p184 = scmp.lt.s32.totalorder %s14, 1
          %s185 = scalar_select %p184, %s14, 1
          %s186 = smul.addr %s185, 54
          %s187 = smul.addr %s186, 8
          %s188 = scalar_lea.vmem %s0, %s187
        $region36: #{tpu_custom_call.1} parent=31 // pred_fallthru
          _
      $region32: #{tpu_custom_call.1} parent=5 // pred_fallthru
        _
      %p189 = scmp.le.s32.totalorder 1, %s14
      %p190 = scmp.lt.s32.totalorder %s14, 3
      %p191 = pnand %p189, %p190
      %p192 = pneg %p191
      // Predicated region
      $region37: #{tpu_custom_call.1} parent=5 // pred_check
        _
      $region38: #{tpu_custom_call.1} parent=5 // pred_check_branch
        %194 = sbr.rel (%p191) target = $region40
      $region39: #{tpu_custom_call.1} parent=5 // pred_region
        %s195 = ssub.s32 %s14, 1
        %p196 = scmp.lt.s32.totalorder %s19, 1
        %s197 = scalar_select %p196, %s19, 1
        %s198 = smul.addr %s197, 54
        %s199 = smul.addr %s198, 8
        %s200 = scalar_lea.vmem %s0, %s199
        %p201 = pneg %p40
        %p202 = pneg %p37
        %p203 = pneg %p61
        %p204 = pneg %p58
        %p205 = pneg %p82
        %p206 = pneg %p79
        %p207 = pneg %p103
        %p208 = pneg %p100
        %p209 = pneg %p124
        %p210 = pneg %p121
        %p211 = pneg %p150
        %p212 = pneg %p147
        %s213 = sand.u32 %s137, 1
        %s214 = scalar_lea.sflag [#allocation4], %s213
        %s215 = sand.u32 %s137, 1
        %s216 = smul.addr %s215, 8
        %s217 = scalar_lea.vmem [#allocation3], %s216
        %p218 = scmp.lt.s32.totalorder %s19, 1
        %s219 = scalar_select %p218, %s19, 1
        %s220 = smul.addr %s219, 54
        %s221 = smul.addr %s220, 8
        %s222 = scalar_lea.vmem %s0, %s221
        %v223 = vld [vmem:[%s222] sm:$0xff]
        %v224 = vld [vmem:[%s222 + $0x8] sm:$0xff]
        %v225 = vld [vmem:[%s222 + $0x10] sm:$0x3]
        %v226 = vld [vmem:[%s222 + $0x18] sm:$0xff]
        %v227 = vld [vmem:[%s222 + $0x20] sm:$0xff]
        %v228 = vld [vmem:[%s222 + $0x28] sm:$0x3]
        %v229 = vld [vmem:[%s222 + $0x30] sm:$0xff]
        %v230 = vld [vmem:[%s222 + $0x38] sm:$0xff]
        %v231 = vld [vmem:[%s222 + $0x40] sm:$0x3]
        %v232 = vld [vmem:[%s222 + $0x48] sm:$0xff]
        %v233 = vld [vmem:[%s222 + $0x50] sm:$0xff]
        %v234 = vld [vmem:[%s222 + $0x58] sm:$0x3]
        %v235 = vld [vmem:[%s222 + $0x60] sm:$0xff]
        %v236 = vld [vmem:[%s222 + $0x68] sm:$0xff]
        %v237 = vld [vmem:[%s222 + $0x70] sm:$0x3]
        %v238 = vld [vmem:[%s222 + $0x78] sm:$0xff]
        %v239 = vld [vmem:[%s222 + $0x80] sm:$0xff]
        %v240 = vld [vmem:[%s222 + $0x88] sm:$0x3]
        %v241 = vld [vmem:[%s222 + $0x90] sm:$0xff]
        %v242 = vld [vmem:[%s222 + $0x98] sm:$0xff]
        %v243 = vld [vmem:[%s222 + $0xa0] sm:$0x3]
        %v244 = vld [vmem:[%s222 + $0xa8] sm:$0xff]
        %v245 = vld [vmem:[%s222 + $0xb0] sm:$0xff]
        %v246 = vld [vmem:[%s222 + $0xb8] sm:$0x3]
        %v247 = vld [vmem:[%s222 + $0xc0] sm:$0xff]
        %v248 = vld [vmem:[%s222 + $0xc8] sm:$0xff]
        %v249 = vld [vmem:[%s222 + $0xd0] sm:$0x3]
        %v250 = vld [vmem:[%s222 + $0xd8] sm:$0xff]
        %v251 = vld [vmem:[%s222 + $0xe0] sm:$0xff]
        %v252 = vld [vmem:[%s222 + $0xe8] sm:$0x3]
        %v253 = vld [vmem:[%s222 + $0xf0] sm:$0xff]
        %v254 = vld [vmem:[%s222 + $0xf8] sm:$0xff]
        %v255 = vld [vmem:[%s222 + $0x100] sm:$0x3]
        %v256 = vld [vmem:[%s222 + $0x108] sm:$0xff]
        %v257 = vld [vmem:[%s222 + $0x110] sm:$0xff]
        %v258 = vld [vmem:[%s222 + $0x118] sm:$0x3]
        %v259 = vld [vmem:[%s222 + $0x120] sm:$0xff]
        %v260 = vld [vmem:[%s222 + $0x128] sm:$0xff]
        %v261 = vld [vmem:[%s222 + $0x130] sm:$0x3]
        %v262 = vld [vmem:[%s222 + $0x138] sm:$0xff]
        %v263 = vld [vmem:[%s222 + $0x140] sm:$0xff]
        %v264 = vld [vmem:[%s222 + $0x148] sm:$0x3]
        %v265 = vld [vmem:[%s222 + $0x150] sm:$0xff]
        %v266 = vld [vmem:[%s222 + $0x158] sm:$0xff]
        %v267 = vld [vmem:[%s222 + $0x160] sm:$0x3]
        %v268 = vld [vmem:[%s222 + $0x168] sm:$0xff]
        %v269 = vld [vmem:[%s222 + $0x170] sm:$0xff]
        %v270 = vld [vmem:[%s222 + $0x178] sm:$0x3]
        %v271 = vld [vmem:[%s222 + $0x180] sm:$0xff]
        %v272 = vld [vmem:[%s222 + $0x188] sm:$0xff]
        %v273 = vld [vmem:[%s222 + $0x190] sm:$0x3]
        %v274 = vld [vmem:[%s222 + $0x198] sm:$0xff]
        %v275 = vld [vmem:[%s222 + $0x1a0] sm:$0xff]
        %v276 = vld [vmem:[%s222 + $0x1a8] sm:$0x3]
        %vm325 = vcmask 1046528
        %v326 = vrot.slane %v223, 1
        %v327 = vrot.slane %v224, 1
        %v328 = vsel %vm325, %v326, %v327
        %v329 = vrot.slane %v225, 1
        %v330 = vsel %vm325, %v327, %v329
        %v331 = vrot.slane %v226, 1
        %v332 = vrot.slane %v227, 1
        %v333 = vsel %vm325, %v331, %v332
        %v334 = vrot.slane %v228, 1
        %v335 = vsel %vm325, %v332, %v334
        %v336 = vrot.slane %v229, 1
        %v337 = vrot.slane %v230, 1
        %v338 = vsel %vm325, %v336, %v337
        %v339 = vrot.slane %v231, 1
        %v340 = vsel %vm325, %v337, %v339
        %v341 = vrot.slane %v232, 1
        %v342 = vrot.slane %v233, 1
        %v343 = vsel %vm325, %v341, %v342
        %v344 = vrot.slane %v234, 1
        %v345 = vsel %vm325, %v342, %v344
        %v346 = vrot.slane %v235, 1
        %v347 = vrot.slane %v236, 1
        %v348 = vsel %vm325, %v346, %v347
        %v349 = vrot.slane %v237, 1
        %v350 = vsel %vm325, %v347, %v349
        %v351 = vrot.slane %v238, 1
        %v352 = vrot.slane %v239, 1
        %v353 = vsel %vm325, %v351, %v352
        %v354 = vrot.slane %v240, 1
        %v355 = vsel %vm325, %v352, %v354
        %v356 = vrot.slane %v241, 1
        %v357 = vrot.slane %v242, 1
        %v358 = vsel %vm325, %v356, %v357
        %v359 = vrot.slane %v243, 1
        %v360 = vsel %vm325, %v357, %v359
        %v361 = vrot.slane %v244, 1
        %v362 = vrot.slane %v245, 1
        %v363 = vsel %vm325, %v361, %v362
        %v364 = vrot.slane %v246, 1
        %v365 = vsel %vm325, %v362, %v364
        %v366 = vrot.slane %v247, 1
        %v367 = vrot.slane %v248, 1
        %v368 = vsel %vm325, %v366, %v367
        %v369 = vrot.slane %v249, 1
        %v370 = vsel %vm325, %v367, %v369
        %v371 = vrot.slane %v250, 1
        %v372 = vrot.slane %v251, 1
        %v373 = vsel %vm325, %v371, %v372
        %v374 = vrot.slane %v252, 1
        %v375 = vsel %vm325, %v372, %v374
        %v376 = vrot.slane %v253, 1
        %v377 = vrot.slane %v254, 1
        %v378 = vsel %vm325, %v376, %v377
        %v379 = vrot.slane %v255, 1
        %v380 = vsel %vm325, %v377, %v379
        %v381 = vrot.slane %v256, 1
        %v382 = vrot.slane %v257, 1
        %v383 = vsel %vm325, %v381, %v382
        %v384 = vrot.slane %v258, 1
        %v385 = vsel %vm325, %v382, %v384
        %v386 = vrot.slane %v259, 1
        %v387 = vrot.slane %v260, 1
        %v388 = vsel %vm325, %v386, %v387
        %v389 = vrot.slane %v261, 1
        %v390 = vsel %vm325, %v387, %v389
        %v391 = vrot.slane %v262, 1
        %v392 = vrot.slane %v263, 1
        %v393 = vsel %vm325, %v391, %v392
        %v394 = vrot.slane %v264, 1
        %v395 = vsel %vm325, %v392, %v394
        %v396 = vrot.slane %v265, 1
        %v397 = vrot.slane %v266, 1
        %v398 = vsel %vm325, %v396, %v397
        %v399 = vrot.slane %v267, 1
        %v400 = vsel %vm325, %v397, %v399
        %v401 = vrot.slane %v268, 1
        %v402 = vrot.slane %v269, 1
        %v403 = vsel %vm325, %v401, %v402
        %v404 = vrot.slane %v270, 1
        %v405 = vsel %vm325, %v402, %v404
        %406 = vrot.lane.b32.xlu0 %v328, 4
        %v407 = vpop.permute.xlu0 %406
        %408 = vrot.lane.b32.xlu0 %v330, 4
        %v409 = vpop.permute.xlu0 %408
        %410 = vrot.lane.b32.xlu0 %v333, 4
        %v411 = vpop.permute.xlu0 %410
        %412 = vrot.lane.b32.xlu0 %v335, 4
        %v413 = vpop.permute.xlu0 %412
        %414 = vrot.lane.b32.xlu0 %v338, 4
        %v415 = vpop.permute.xlu0 %414
        %416 = vrot.lane.b32.xlu0 %v340, 4
        %v417 = vpop.permute.xlu0 %416
        %418 = vrot.lane.b32.xlu0 %v343, 4
        %v419 = vpop.permute.xlu0 %418
        %420 = vrot.lane.b32.xlu0 %v345, 4
        %v421 = vpop.permute.xlu0 %420
        %422 = vrot.lane.b32.xlu0 %v348, 4
        %v423 = vpop.permute.xlu0 %422
        %424 = vrot.lane.b32.xlu0 %v350, 4
        %v425 = vpop.permute.xlu0 %424
        %426 = vrot.lane.b32.xlu0 %v353, 4
        %v427 = vpop.permute.xlu0 %426
        %428 = vrot.lane.b32.xlu0 %v355, 4
        %v429 = vpop.permute.xlu0 %428
        %430 = vrot.lane.b32.xlu0 %v358, 4
        %v431 = vpop.permute.xlu0 %430
        %432 = vrot.lane.b32.xlu0 %v360, 4
        %v433 = vpop.permute.xlu0 %432
        %434 = vrot.lane.b32.xlu0 %v363, 4
        %v435 = vpop.permute.xlu0 %434
        %436 = vrot.lane.b32.xlu0 %v365, 4
        %v437 = vpop.permute.xlu0 %436
        %438 = vrot.lane.b32.xlu0 %v368, 4
        %v439 = vpop.permute.xlu0 %438
        %440 = vrot.lane.b32.xlu0 %v370, 4
        %v441 = vpop.permute.xlu0 %440
        %442 = vrot.lane.b32.xlu0 %v373, 4
        %v443 = vpop.permute.xlu0 %442
        %444 = vrot.lane.b32.xlu0 %v375, 4
        %v445 = vpop.permute.xlu0 %444
        %446 = vrot.lane.b32.xlu0 %v378, 4
        %v447 = vpop.permute.xlu0 %446
        %448 = vrot.lane.b32.xlu0 %v380, 4
        %v449 = vpop.permute.xlu0 %448
        %450 = vrot.lane.b32.xlu0 %v383, 4
        %v451 = vpop.permute.xlu0 %450
        %452 = vrot.lane.b32.xlu0 %v385, 4
        %v453 = vpop.permute.xlu0 %452
        %454 = vrot.lane.b32.xlu0 %v388, 4
        %v455 = vpop.permute.xlu0 %454
        %456 = vrot.lane.b32.xlu0 %v390, 4
        %v457 = vpop.permute.xlu0 %456
        %458 = vrot.lane.b32.xlu0 %v393, 4
        %v459 = vpop.permute.xlu0 %458
        %460 = vrot.lane.b32.xlu0 %v395, 4
        %v461 = vpop.permute.xlu0 %460
        %462 = vrot.lane.b32.xlu0 %v398, 4
        %v463 = vpop.permute.xlu0 %462
        %464 = vrot.lane.b32.xlu0 %v400, 4
        %v465 = vpop.permute.xlu0 %464
        %466 = vrot.lane.b32.xlu0 %v403, 4
        %v467 = vpop.permute.xlu0 %466
        %468 = vrot.lane.b32.xlu0 %v405, 4
        %v469 = vpop.permute.xlu0 %468
        %vm502 = vcmask 1045504
        %v503 = vrot.slane %v223, 2
        %v504 = vrot.slane %v224, 2
        %v505 = vsel %vm502, %v503, %v504
        %v506 = vrot.slane %v225, 2
        %v507 = vsel %vm502, %v504, %v506
        %v508 = vrot.slane %v226, 2
        %v509 = vrot.slane %v227, 2
        %v510 = vsel %vm502, %v508, %v509
        %v511 = vrot.slane %v228, 2
        %v512 = vsel %vm502, %v509, %v511
        %v513 = vrot.slane %v229, 2
        %v514 = vrot.slane %v230, 2
        %v515 = vsel %vm502, %v513, %v514
        %v516 = vrot.slane %v231, 2
        %v517 = vsel %vm502, %v514, %v516
        %v518 = vrot.slane %v232, 2
        %v519 = vrot.slane %v233, 2
        %v520 = vsel %vm502, %v518, %v519
        %v521 = vrot.slane %v234, 2
        %v522 = vsel %vm502, %v519, %v521
        %v523 = vrot.slane %v235, 2
        %v524 = vrot.slane %v236, 2
        %v525 = vsel %vm502, %v523, %v524
        %v526 = vrot.slane %v237, 2
        %v527 = vsel %vm502, %v524, %v526
        %v528 = vrot.slane %v238, 2
        %v529 = vrot.slane %v239, 2
        %v530 = vsel %vm502, %v528, %v529
        %v531 = vrot.slane %v240, 2
        %v532 = vsel %vm502, %v529, %v531
        %v533 = vrot.slane %v241, 2
        %v534 = vrot.slane %v242, 2
        %v535 = vsel %vm502, %v533, %v534
        %v536 = vrot.slane %v243, 2
        %v537 = vsel %vm502, %v534, %v536
        %v538 = vrot.slane %v244, 2
        %v539 = vrot.slane %v245, 2
        %v540 = vsel %vm502, %v538, %v539
        %v541 = vrot.slane %v246, 2
        %v542 = vsel %vm502, %v539, %v541
        %v543 = vrot.slane %v247, 2
        %v544 = vrot.slane %v248, 2
        %v545 = vsel %vm502, %v543, %v544
        %v546 = vrot.slane %v249, 2
        %v547 = vsel %vm502, %v544, %v546
        %v548 = vrot.slane %v250, 2
        %v549 = vrot.slane %v251, 2
        %v550 = vsel %vm502, %v548, %v549
        %v551 = vrot.slane %v252, 2
        %v552 = vsel %vm502, %v549, %v551
        %v553 = vrot.slane %v253, 2
        %v554 = vrot.slane %v254, 2
        %v555 = vsel %vm502, %v553, %v554
        %v556 = vrot.slane %v255, 2
        %v557 = vsel %vm502, %v554, %v556
        %v558 = vrot.slane %v256, 2
        %v559 = vrot.slane %v257, 2
        %v560 = vsel %vm502, %v558, %v559
        %v561 = vrot.slane %v258, 2
        %v562 = vsel %vm502, %v559, %v561
        %v563 = vrot.slane %v259, 2
        %v564 = vrot.slane %v260, 2
        %v565 = vsel %vm502, %v563, %v564
        %v566 = vrot.slane %v261, 2
        %v567 = vsel %vm502, %v564, %v566
        %v568 = vrot.slane %v262, 2
        %v569 = vrot.slane %v263, 2
        %v570 = vsel %vm502, %v568, %v569
        %v571 = vrot.slane %v264, 2
        %v572 = vsel %vm502, %v569, %v571
        %v573 = vrot.slane %v265, 2
        %v574 = vrot.slane %v266, 2
        %v575 = vsel %vm502, %v573, %v574
        %v576 = vrot.slane %v267, 2
        %v577 = vsel %vm502, %v574, %v576
        %v578 = vrot.slane %v268, 2
        %v579 = vrot.slane %v269, 2
        %v580 = vsel %vm502, %v578, %v579
        %v581 = vrot.slane %v270, 2
        %v582 = vsel %vm502, %v579, %v581
        %583 = vrot.lane.b32.xlu0 %v505, 8
        %v584 = vpop.permute.xlu0 %583
        %585 = vrot.lane.b32.xlu0 %v507, 8
        %v586 = vpop.permute.xlu0 %585
        %587 = vrot.lane.b32.xlu0 %v510, 8
        %v588 = vpop.permute.xlu0 %587
        %589 = vrot.lane.b32.xlu0 %v512, 8
        %v590 = vpop.permute.xlu0 %589
        %591 = vrot.lane.b32.xlu0 %v515, 8
        %v592 = vpop.permute.xlu0 %591
        %593 = vrot.lane.b32.xlu0 %v517, 8
        %v594 = vpop.permute.xlu0 %593
        %595 = vrot.lane.b32.xlu0 %v520, 8
        %v596 = vpop.permute.xlu0 %595
        %597 = vrot.lane.b32.xlu0 %v522, 8
        %v598 = vpop.permute.xlu0 %597
        %599 = vrot.lane.b32.xlu0 %v525, 8
        %v600 = vpop.permute.xlu0 %599
        %601 = vrot.lane.b32.xlu0 %v527, 8
        %v602 = vpop.permute.xlu0 %601
        %603 = vrot.lane.b32.xlu0 %v530, 8
        %v604 = vpop.permute.xlu0 %603
        %605 = vrot.lane.b32.xlu0 %v532, 8
        %v606 = vpop.permute.xlu0 %605
        %607 = vrot.lane.b32.xlu0 %v535, 8
        %v608 = vpop.permute.xlu0 %607
        %609 = vrot.lane.b32.xlu0 %v537, 8
        %v610 = vpop.permute.xlu0 %609
        %611 = vrot.lane.b32.xlu0 %v540, 8
        %v612 = vpop.permute.xlu0 %611
        %613 = vrot.lane.b32.xlu0 %v542, 8
        %v614 = vpop.permute.xlu0 %613
        %615 = vrot.lane.b32.xlu0 %v545, 8
        %v616 = vpop.permute.xlu0 %615
        %617 = vrot.lane.b32.xlu0 %v547, 8
        %v618 = vpop.permute.xlu0 %617
        %619 = vrot.lane.b32.xlu0 %v550, 8
        %v620 = vpop.permute.xlu0 %619
        %621 = vrot.lane.b32.xlu0 %v552, 8
        %v622 = vpop.permute.xlu0 %621
        %623 = vrot.lane.b32.xlu0 %v555, 8
        %v624 = vpop.permute.xlu0 %623
        %625 = vrot.lane.b32.xlu0 %v557, 8
        %v626 = vpop.permute.xlu0 %625
        %627 = vrot.lane.b32.xlu0 %v560, 8
        %v628 = vpop.permute.xlu0 %627
        %629 = vrot.lane.b32.xlu0 %v562, 8
        %v630 = vpop.permute.xlu0 %629
        %631 = vrot.lane.b32.xlu0 %v565, 8
        %v632 = vpop.permute.xlu0 %631
        %633 = vrot.lane.b32.xlu0 %v567, 8
        %v634 = vpop.permute.xlu0 %633
        %635 = vrot.lane.b32.xlu0 %v570, 8
        %v636 = vpop.permute.xlu0 %635
        %637 = vrot.lane.b32.xlu0 %v572, 8
        %v638 = vpop.permute.xlu0 %637
        %639 = vrot.lane.b32.xlu0 %v575, 8
        %v640 = vpop.permute.xlu0 %639
        %641 = vrot.lane.b32.xlu0 %v577, 8
        %v642 = vpop.permute.xlu0 %641
        %643 = vrot.lane.b32.xlu0 %v580, 8
        %v644 = vpop.permute.xlu0 %643
        %645 = vrot.lane.b32.xlu0 %v582, 8
        %v646 = vpop.permute.xlu0 %645
        %681 = vrot.lane.b32.xlu0 %v226, 12
        %v682 = vpop.permute.xlu0 %681
        %683 = vrot.lane.b32.xlu0 %v227, 12
        %v684 = vpop.permute.xlu0 %683
        %685 = vrot.lane.b32.xlu0 %v229, 12
        %v686 = vpop.permute.xlu0 %685
        %687 = vrot.lane.b32.xlu0 %v230, 12
        %v688 = vpop.permute.xlu0 %687
        %689 = vrot.lane.b32.xlu0 %v232, 12
        %v690 = vpop.permute.xlu0 %689
        %691 = vrot.lane.b32.xlu0 %v233, 12
        %v692 = vpop.permute.xlu0 %691
        %693 = vrot.lane.b32.xlu0 %v235, 12
        %v694 = vpop.permute.xlu0 %693
        %695 = vrot.lane.b32.xlu0 %v236, 12
        %v696 = vpop.permute.xlu0 %695
        %697 = vrot.lane.b32.xlu0 %v238, 12
        %v698 = vpop.permute.xlu0 %697
        %699 = vrot.lane.b32.xlu0 %v239, 12
        %v700 = vpop.permute.xlu0 %699
        %701 = vrot.lane.b32.xlu0 %v241, 12
        %v702 = vpop.permute.xlu0 %701
        %703 = vrot.lane.b32.xlu0 %v242, 12
        %v704 = vpop.permute.xlu0 %703
        %705 = vrot.lane.b32.xlu0 %v244, 12
        %v706 = vpop.permute.xlu0 %705
        %707 = vrot.lane.b32.xlu0 %v245, 12
        %v708 = vpop.permute.xlu0 %707
        %709 = vrot.lane.b32.xlu0 %v247, 12
        %v710 = vpop.permute.xlu0 %709
        %711 = vrot.lane.b32.xlu0 %v248, 12
        %v712 = vpop.permute.xlu0 %711
        %713 = vrot.lane.b32.xlu0 %v250, 12
        %v714 = vpop.permute.xlu0 %713
        %715 = vrot.lane.b32.xlu0 %v251, 12
        %v716 = vpop.permute.xlu0 %715
        %717 = vrot.lane.b32.xlu0 %v253, 12
        %v718 = vpop.permute.xlu0 %717
        %719 = vrot.lane.b32.xlu0 %v254, 12
        %v720 = vpop.permute.xlu0 %719
        %721 = vrot.lane.b32.xlu0 %v256, 12
        %v722 = vpop.permute.xlu0 %721
        %723 = vrot.lane.b32.xlu0 %v257, 12
        %v724 = vpop.permute.xlu0 %723
        %725 = vrot.lane.b32.xlu0 %v259, 12
        %v726 = vpop.permute.xlu0 %725
        %727 = vrot.lane.b32.xlu0 %v260, 12
        %v728 = vpop.permute.xlu0 %727
        %729 = vrot.lane.b32.xlu0 %v262, 12
        %v730 = vpop.permute.xlu0 %729
        %731 = vrot.lane.b32.xlu0 %v263, 12
        %v732 = vpop.permute.xlu0 %731
        %733 = vrot.lane.b32.xlu0 %v265, 12
        %v734 = vpop.permute.xlu0 %733
        %735 = vrot.lane.b32.xlu0 %v266, 12
        %v736 = vpop.permute.xlu0 %735
        %737 = vrot.lane.b32.xlu0 %v268, 12
        %v738 = vpop.permute.xlu0 %737
        %739 = vrot.lane.b32.xlu0 %v269, 12
        %v740 = vpop.permute.xlu0 %739
        %741 = vrot.lane.b32.xlu0 %v271, 12
        %v742 = vpop.permute.xlu0 %741
        %743 = vrot.lane.b32.xlu0 %v272, 12
        %v744 = vpop.permute.xlu0 %743
        %v778 = vrot.slane %v271, 1
        %v779 = vrot.slane %v272, 1
        %v780 = vsel %vm325, %v778, %v779
        %v781 = vrot.slane %v273, 1
        %v782 = vsel %vm325, %v779, %v781
        %783 = vrot.lane.b32.xlu0 %v333, 16
        %v784 = vpop.permute.xlu0 %783
        %785 = vrot.lane.b32.xlu0 %v335, 16
        %v786 = vpop.permute.xlu0 %785
        %787 = vrot.lane.b32.xlu0 %v338, 16
        %v788 = vpop.permute.xlu0 %787
        %789 = vrot.lane.b32.xlu0 %v340, 16
        %v790 = vpop.permute.xlu0 %789
        %791 = vrot.lane.b32.xlu0 %v343, 16
        %v792 = vpop.permute.xlu0 %791
        %793 = vrot.lane.b32.xlu0 %v345, 16
        %v794 = vpop.permute.xlu0 %793
        %795 = vrot.lane.b32.xlu0 %v348, 16
        %v796 = vpop.permute.xlu0 %795
        %797 = vrot.lane.b32.xlu0 %v350, 16
        %v798 = vpop.permute.xlu0 %797
        %799 = vrot.lane.b32.xlu0 %v353, 16
        %v800 = vpop.permute.xlu0 %799
        %801 = vrot.lane.b32.xlu0 %v355, 16
        %v802 = vpop.permute.xlu0 %801
        %803 = vrot.lane.b32.xlu0 %v358, 16
        %v804 = vpop.permute.xlu0 %803
        %805 = vrot.lane.b32.xlu0 %v360, 16
        %v806 = vpop.permute.xlu0 %805
        %807 = vrot.lane.b32.xlu0 %v363, 16
        %v808 = vpop.permute.xlu0 %807
        %809 = vrot.lane.b32.xlu0 %v365, 16
        %v810 = vpop.permute.xlu0 %809
        %811 = vrot.lane.b32.xlu0 %v368, 16
        %v812 = vpop.permute.xlu0 %811
        %813 = vrot.lane.b32.xlu0 %v370, 16
        %v814 = vpop.permute.xlu0 %813
        %815 = vrot.lane.b32.xlu0 %v373, 16
        %v816 = vpop.permute.xlu0 %815
        %817 = vrot.lane.b32.xlu0 %v375, 16
        %v818 = vpop.permute.xlu0 %817
        %819 = vrot.lane.b32.xlu0 %v378, 16
        %v820 = vpop.permute.xlu0 %819
        %821 = vrot.lane.b32.xlu0 %v380, 16
        %v822 = vpop.permute.xlu0 %821
        %823 = vrot.lane.b32.xlu0 %v383, 16
        %v824 = vpop.permute.xlu0 %823
        %825 = vrot.lane.b32.xlu0 %v385, 16
        %v826 = vpop.permute.xlu0 %825
        %827 = vrot.lane.b32.xlu0 %v388, 16
        %v828 = vpop.permute.xlu0 %827
        %829 = vrot.lane.b32.xlu0 %v390, 16
        %v830 = vpop.permute.xlu0 %829
        %831 = vrot.lane.b32.xlu0 %v393, 16
        %v832 = vpop.permute.xlu0 %831
        %833 = vrot.lane.b32.xlu0 %v395, 16
        %v834 = vpop.permute.xlu0 %833
        %835 = vrot.lane.b32.xlu0 %v398, 16
        %v836 = vpop.permute.xlu0 %835
        %837 = vrot.lane.b32.xlu0 %v400, 16
        %v838 = vpop.permute.xlu0 %837
        %839 = vrot.lane.b32.xlu0 %v403, 16
        %v840 = vpop.permute.xlu0 %839
        %841 = vrot.lane.b32.xlu0 %v405, 16
        %v842 = vpop.permute.xlu0 %841
        %843 = vrot.lane.b32.xlu0 %v780, 16
        %v844 = vpop.permute.xlu0 %843
        %845 = vrot.lane.b32.xlu0 %v782, 16
        %v846 = vpop.permute.xlu0 %845
        %v879 = vrot.slane %v271, 2
        %v880 = vrot.slane %v272, 2
        %v881 = vsel %vm502, %v879, %v880
        %v882 = vrot.slane %v273, 2
        %v883 = vsel %vm502, %v880, %v882
        %884 = vrot.lane.b32.xlu0 %v510, 20
        %v885 = vpop.permute.xlu0 %884
        %886 = vrot.lane.b32.xlu0 %v512, 20
        %v887 = vpop.permute.xlu0 %886
        %888 = vrot.lane.b32.xlu0 %v515, 20
        %v889 = vpop.permute.xlu0 %888
        %890 = vrot.lane.b32.xlu0 %v517, 20
        %v891 = vpop.permute.xlu0 %890
        %892 = vrot.lane.b32.xlu0 %v520, 20
        %v893 = vpop.permute.xlu0 %892
        %894 = vrot.lane.b32.xlu0 %v522, 20
        %v895 = vpop.permute.xlu0 %894
        %896 = vrot.lane.b32.xlu0 %v525, 20
        %v897 = vpop.permute.xlu0 %896
        %898 = vrot.lane.b32.xlu0 %v527, 20
        %v899 = vpop.permute.xlu0 %898
        %900 = vrot.lane.b32.xlu0 %v530, 20
        %v901 = vpop.permute.xlu0 %900
        %902 = vrot.lane.b32.xlu0 %v532, 20
        %v903 = vpop.permute.xlu0 %902
        %904 = vrot.lane.b32.xlu0 %v535, 20
        %v905 = vpop.permute.xlu0 %904
        %906 = vrot.lane.b32.xlu0 %v537, 20
        %v907 = vpop.permute.xlu0 %906
        %908 = vrot.lane.b32.xlu0 %v540, 20
        %v909 = vpop.permute.xlu0 %908
        %910 = vrot.lane.b32.xlu0 %v542, 20
        %v911 = vpop.permute.xlu0 %910
        %912 = vrot.lane.b32.xlu0 %v545, 20
        %v913 = vpop.permute.xlu0 %912
        %914 = vrot.lane.b32.xlu0 %v547, 20
        %v915 = vpop.permute.xlu0 %914
        %916 = vrot.lane.b32.xlu0 %v550, 20
        %v917 = vpop.permute.xlu0 %916
        %918 = vrot.lane.b32.xlu0 %v552, 20
        %v919 = vpop.permute.xlu0 %918
        %920 = vrot.lane.b32.xlu0 %v555, 20
        %v921 = vpop.permute.xlu0 %920
        %922 = vrot.lane.b32.xlu0 %v557, 20
        %v923 = vpop.permute.xlu0 %922
        %924 = vrot.lane.b32.xlu0 %v560, 20
        %v925 = vpop.permute.xlu0 %924
        %926 = vrot.lane.b32.xlu0 %v562, 20
        %v927 = vpop.permute.xlu0 %926
        %928 = vrot.lane.b32.xlu0 %v565, 20
        %v929 = vpop.permute.xlu0 %928
        %930 = vrot.lane.b32.xlu0 %v567, 20
        %v931 = vpop.permute.xlu0 %930
        %932 = vrot.lane.b32.xlu0 %v570, 20
        %v933 = vpop.permute.xlu0 %932
        %934 = vrot.lane.b32.xlu0 %v572, 20
        %v935 = vpop.permute.xlu0 %934
        %936 = vrot.lane.b32.xlu0 %v575, 20
        %v937 = vpop.permute.xlu0 %936
        %938 = vrot.lane.b32.xlu0 %v577, 20
        %v939 = vpop.permute.xlu0 %938
        %940 = vrot.lane.b32.xlu0 %v580, 20
        %v941 = vpop.permute.xlu0 %940
        %942 = vrot.lane.b32.xlu0 %v582, 20
        %v943 = vpop.permute.xlu0 %942
        %944 = vrot.lane.b32.xlu0 %v881, 20
        %v945 = vpop.permute.xlu0 %944
        %946 = vrot.lane.b32.xlu0 %v883, 20
        %v947 = vpop.permute.xlu0 %946
        %982 = vrot.lane.b32.xlu0 %v229, 24
        %v983 = vpop.permute.xlu0 %982
        %984 = vrot.lane.b32.xlu0 %v230, 24
        %v985 = vpop.permute.xlu0 %984
        %986 = vrot.lane.b32.xlu0 %v232, 24
        %v987 = vpop.permute.xlu0 %986
        %988 = vrot.lane.b32.xlu0 %v233, 24
        %v989 = vpop.permute.xlu0 %988
        %990 = vrot.lane.b32.xlu0 %v235, 24
        %v991 = vpop.permute.xlu0 %990
        %992 = vrot.lane.b32.xlu0 %v236, 24
        %v993 = vpop.permute.xlu0 %992
        %994 = vrot.lane.b32.xlu0 %v238, 24
        %v995 = vpop.permute.xlu0 %994
        %996 = vrot.lane.b32.xlu0 %v239, 24
        %v997 = vpop.permute.xlu0 %996
        %998 = vrot.lane.b32.xlu0 %v241, 24
        %v999 = vpop.permute.xlu0 %998
        %1000 = vrot.lane.b32.xlu0 %v242, 24
        %v1001 = vpop.permute.xlu0 %1000
        %1002 = vrot.lane.b32.xlu0 %v244, 24
        %v1003 = vpop.permute.xlu0 %1002
        %1004 = vrot.lane.b32.xlu0 %v245, 24
        %v1005 = vpop.permute.xlu0 %1004
        %1006 = vrot.lane.b32.xlu0 %v247, 24
        %v1007 = vpop.permute.xlu0 %1006
        %1008 = vrot.lane.b32.xlu0 %v248, 24
        %v1009 = vpop.permute.xlu0 %1008
        %1010 = vrot.lane.b32.xlu0 %v250, 24
        %v1011 = vpop.permute.xlu0 %1010
        %1012 = vrot.lane.b32.xlu0 %v251, 24
        %v1013 = vpop.permute.xlu0 %1012
        %1014 = vrot.lane.b32.xlu0 %v253, 24
        %v1015 = vpop.permute.xlu0 %1014
        %1016 = vrot.lane.b32.xlu0 %v254, 24
        %v1017 = vpop.permute.xlu0 %1016
        %1018 = vrot.lane.b32.xlu0 %v256, 24
        %v1019 = vpop.permute.xlu0 %1018
        %1020 = vrot.lane.b32.xlu0 %v257, 24
        %v1021 = vpop.permute.xlu0 %1020
        %1022 = vrot.lane.b32.xlu0 %v259, 24
        %v1023 = vpop.permute.xlu0 %1022
        %1024 = vrot.lane.b32.xlu0 %v260, 24
        %v1025 = vpop.permute.xlu0 %1024
        %1026 = vrot.lane.b32.xlu0 %v262, 24
        %v1027 = vpop.permute.xlu0 %1026
        %1028 = vrot.lane.b32.xlu0 %v263, 24
        %v1029 = vpop.permute.xlu0 %1028
        %1030 = vrot.lane.b32.xlu0 %v265, 24
        %v1031 = vpop.permute.xlu0 %1030
        %1032 = vrot.lane.b32.xlu0 %v266, 24
        %v1033 = vpop.permute.xlu0 %1032
        %1034 = vrot.lane.b32.xlu0 %v268, 24
        %v1035 = vpop.permute.xlu0 %1034
        %1036 = vrot.lane.b32.xlu0 %v269, 24
        %v1037 = vpop.permute.xlu0 %1036
        %1038 = vrot.lane.b32.xlu0 %v271, 24
        %v1039 = vpop.permute.xlu0 %1038
        %1040 = vrot.lane.b32.xlu0 %v272, 24
        %v1041 = vpop.permute.xlu0 %1040
        %1042 = vrot.lane.b32.xlu0 %v274, 24
        %v1043 = vpop.permute.xlu0 %1042
        %1044 = vrot.lane.b32.xlu0 %v275, 24
        %v1045 = vpop.permute.xlu0 %1044
        %v1079 = vrot.slane %v274, 1
        %v1080 = vrot.slane %v275, 1
        %v1081 = vsel %vm325, %v1079, %v1080
        %v1082 = vrot.slane %v276, 1
        %v1083 = vsel %vm325, %v1080, %v1082
        %1084 = vrot.lane.b32.xlu0 %v338, 28
        %v1085 = vpop.permute.xlu0 %1084
        %1086 = vrot.lane.b32.xlu0 %v340, 28
        %v1087 = vpop.permute.xlu0 %1086
        %1088 = vrot.lane.b32.xlu0 %v343, 28
        %v1089 = vpop.permute.xlu0 %1088
        %1090 = vrot.lane.b32.xlu0 %v345, 28
        %v1091 = vpop.permute.xlu0 %1090
        %1092 = vrot.lane.b32.xlu0 %v348, 28
        %v1093 = vpop.permute.xlu0 %1092
        %1094 = vrot.lane.b32.xlu0 %v350, 28
        %v1095 = vpop.permute.xlu0 %1094
        %1096 = vrot.lane.b32.xlu0 %v353, 28
        %v1097 = vpop.permute.xlu0 %1096
        %1098 = vrot.lane.b32.xlu0 %v355, 28
        %v1099 = vpop.permute.xlu0 %1098
        %1100 = vrot.lane.b32.xlu0 %v358, 28
        %v1101 = vpop.permute.xlu0 %1100
        %1102 = vrot.lane.b32.xlu0 %v360, 28
        %v1103 = vpop.permute.xlu0 %1102
        %1104 = vrot.lane.b32.xlu0 %v363, 28
        %v1105 = vpop.permute.xlu0 %1104
        %1106 = vrot.lane.b32.xlu0 %v365, 28
        %v1107 = vpop.permute.xlu0 %1106
        %1108 = vrot.lane.b32.xlu0 %v368, 28
        %v1109 = vpop.permute.xlu0 %1108
        %1110 = vrot.lane.b32.xlu0 %v370, 28
        %v1111 = vpop.permute.xlu0 %1110
        %1112 = vrot.lane.b32.xlu0 %v373, 28
        %v1113 = vpop.permute.xlu0 %1112
        %1114 = vrot.lane.b32.xlu0 %v375, 28
        %v1115 = vpop.permute.xlu0 %1114
        %1116 = vrot.lane.b32.xlu0 %v378, 28
        %v1117 = vpop.permute.xlu0 %1116
        %1118 = vrot.lane.b32.xlu0 %v380, 28
        %v1119 = vpop.permute.xlu0 %1118
        %1120 = vrot.lane.b32.xlu0 %v383, 28
        %v1121 = vpop.permute.xlu0 %1120
        %1122 = vrot.lane.b32.xlu0 %v385, 28
        %v1123 = vpop.permute.xlu0 %1122
        %1124 = vrot.lane.b32.xlu0 %v388, 28
        %v1125 = vpop.permute.xlu0 %1124
        %1126 = vrot.lane.b32.xlu0 %v390, 28
        %v1127 = vpop.permute.xlu0 %1126
        %1128 = vrot.lane.b32.xlu0 %v393, 28
        %v1129 = vpop.permute.xlu0 %1128
        %1130 = vrot.lane.b32.xlu0 %v395, 28
        %v1131 = vpop.permute.xlu0 %1130
        %1132 = vrot.lane.b32.xlu0 %v398, 28
        %v1133 = vpop.permute.xlu0 %1132
        %1134 = vrot.lane.b32.xlu0 %v400, 28
        %v1135 = vpop.permute.xlu0 %1134
        %1136 = vrot.lane.b32.xlu0 %v403, 28
        %v1137 = vpop.permute.xlu0 %1136
        %1138 = vrot.lane.b32.xlu0 %v405, 28
        %v1139 = vpop.permute.xlu0 %1138
        %1140 = vrot.lane.b32.xlu0 %v780, 28
        %v1141 = vpop.permute.xlu0 %1140
        %1142 = vrot.lane.b32.xlu0 %v782, 28
        %v1143 = vpop.permute.xlu0 %1142
        %1144 = vrot.lane.b32.xlu0 %v1081, 28
        %v1145 = vpop.permute.xlu0 %1144
        %1146 = vrot.lane.b32.xlu0 %v1083, 28
        %v1147 = vpop.permute.xlu0 %1146
        %v1180 = vrot.slane %v274, 2
        %v1181 = vrot.slane %v275, 2
        %v1182 = vsel %vm502, %v1180, %v1181
        %v1183 = vrot.slane %v276, 2
        %v1184 = vsel %vm502, %v1181, %v1183
        %1185 = vrot.lane.b32.xlu0 %v515, 32
        %v1186 = vpop.permute.xlu0 %1185
        %1187 = vrot.lane.b32.xlu0 %v517, 32
        %v1188 = vpop.permute.xlu0 %1187
        %1189 = vrot.lane.b32.xlu0 %v520, 32
        %v1190 = vpop.permute.xlu0 %1189
        %1191 = vrot.lane.b32.xlu0 %v522, 32
        %v1192 = vpop.permute.xlu0 %1191
        %1193 = vrot.lane.b32.xlu0 %v525, 32
        %v1194 = vpop.permute.xlu0 %1193
        %1195 = vrot.lane.b32.xlu0 %v527, 32
        %v1196 = vpop.permute.xlu0 %1195
        %1197 = vrot.lane.b32.xlu0 %v530, 32
        %v1198 = vpop.permute.xlu0 %1197
        %1199 = vrot.lane.b32.xlu0 %v532, 32
        %v1200 = vpop.permute.xlu0 %1199
        %1201 = vrot.lane.b32.xlu0 %v535, 32
        %v1202 = vpop.permute.xlu0 %1201
        %1203 = vrot.lane.b32.xlu0 %v537, 32
        %v1204 = vpop.permute.xlu0 %1203
        %1205 = vrot.lane.b32.xlu0 %v540, 32
        %v1206 = vpop.permute.xlu0 %1205
        %1207 = vrot.lane.b32.xlu0 %v542, 32
        %v1208 = vpop.permute.xlu0 %1207
        %1209 = vrot.lane.b32.xlu0 %v545, 32
        %v1210 = vpop.permute.xlu0 %1209
        %1211 = vrot.lane.b32.xlu0 %v547, 32
        %v1212 = vpop.permute.xlu0 %1211
        %1213 = vrot.lane.b32.xlu0 %v550, 32
        %v1214 = vpop.permute.xlu0 %1213
        %1215 = vrot.lane.b32.xlu0 %v552, 32
        %v1216 = vpop.permute.xlu0 %1215
        %1217 = vrot.lane.b32.xlu0 %v555, 32
        %v1218 = vpop.permute.xlu0 %1217
        %1219 = vrot.lane.b32.xlu0 %v557, 32
        %v1220 = vpop.permute.xlu0 %1219
        %1221 = vrot.lane.b32.xlu0 %v560, 32
        %v1222 = vpop.permute.xlu0 %1221
        %1223 = vrot.lane.b32.xlu0 %v562, 32
        %v1224 = vpop.permute.xlu0 %1223
        %1225 = vrot.lane.b32.xlu0 %v565, 32
        %v1226 = vpop.permute.xlu0 %1225
        %1227 = vrot.lane.b32.xlu0 %v567, 32
        %v1228 = vpop.permute.xlu0 %1227
        %1229 = vrot.lane.b32.xlu0 %v570, 32
        %v1230 = vpop.permute.xlu0 %1229
        %1231 = vrot.lane.b32.xlu0 %v572, 32
        %v1232 = vpop.permute.xlu0 %1231
        %1233 = vrot.lane.b32.xlu0 %v575, 32
        %v1234 = vpop.permute.xlu0 %1233
        %1235 = vrot.lane.b32.xlu0 %v577, 32
        %v1236 = vpop.permute.xlu0 %1235
        %1237 = vrot.lane.b32.xlu0 %v580, 32
        %v1238 = vpop.permute.xlu0 %1237
        %1239 = vrot.lane.b32.xlu0 %v582, 32
        %v1240 = vpop.permute.xlu0 %1239
        %1241 = vrot.lane.b32.xlu0 %v881, 32
        %v1242 = vpop.permute.xlu0 %1241
        %1243 = vrot.lane.b32.xlu0 %v883, 32
        %v1244 = vpop.permute.xlu0 %1243
        %1245 = vrot.lane.b32.xlu0 %v1182, 32
        %v1246 = vpop.permute.xlu0 %1245
        %1247 = vrot.lane.b32.xlu0 %v1184, 32
        %v1248 = vpop.permute.xlu0 %1247
        %vm1281 = vcmask 31744
        %v1282 = vsel %vm1281, %v223, %v407
        %v1283 = vsel %vm1281, %v224, %v409
        %v1284 = vsel %vm1281, %v226, %v411
        %v1285 = vsel %vm1281, %v227, %v413
        %v1286 = vsel %vm1281, %v229, %v415
        %v1287 = vsel %vm1281, %v230, %v417
        %v1288 = vsel %vm1281, %v232, %v419
        %v1289 = vsel %vm1281, %v233, %v421
        %v1290 = vsel %vm1281, %v235, %v423
        %v1291 = vsel %vm1281, %v236, %v425
        %v1292 = vsel %vm1281, %v238, %v427
        %v1293 = vsel %vm1281, %v239, %v429
        %v1294 = vsel %vm1281, %v241, %v431
        %v1295 = vsel %vm1281, %v242, %v433
        %v1296 = vsel %vm1281, %v244, %v435
        %v1297 = vsel %vm1281, %v245, %v437
        %v1298 = vsel %vm1281, %v247, %v439
        %v1299 = vsel %vm1281, %v248, %v441
        %v1300 = vsel %vm1281, %v250, %v443
        %v1301 = vsel %vm1281, %v251, %v445
        %v1302 = vsel %vm1281, %v253, %v447
        %v1303 = vsel %vm1281, %v254, %v449
        %v1304 = vsel %vm1281, %v256, %v451
        %v1305 = vsel %vm1281, %v257, %v453
        %v1306 = vsel %vm1281, %v259, %v455
        %v1307 = vsel %vm1281, %v260, %v457
        %v1308 = vsel %vm1281, %v262, %v459
        %v1309 = vsel %vm1281, %v263, %v461
        %v1310 = vsel %vm1281, %v265, %v463
        %v1311 = vsel %vm1281, %v266, %v465
        %v1312 = vsel %vm1281, %v268, %v467
        %v1313 = vsel %vm1281, %v269, %v469
        %vm1314 = vcmask 64512
        %v1315 = vsel %vm1314, %v1282, %v584
        %v1316 = vsel %vm1314, %v1283, %v586
        %v1317 = vsel %vm1314, %v1284, %v588
        %v1318 = vsel %vm1314, %v1285, %v590
        %v1319 = vsel %vm1314, %v1286, %v592
        %v1320 = vsel %vm1314, %v1287, %v594
        %v1321 = vsel %vm1314, %v1288, %v596
        %v1322 = vsel %vm1314, %v1289, %v598
        %v1323 = vsel %vm1314, %v1290, %v600
        %v1324 = vsel %vm1314, %v1291, %v602
        %v1325 = vsel %vm1314, %v1292, %v604
        %v1326 = vsel %vm1314, %v1293, %v606
        %v1327 = vsel %vm1314, %v1294, %v608
        %v1328 = vsel %vm1314, %v1295, %v610
        %v1329 = vsel %vm1314, %v1296, %v612
        %v1330 = vsel %vm1314, %v1297, %v614
        %v1331 = vsel %vm1314, %v1298, %v616
        %v1332 = vsel %vm1314, %v1299, %v618
        %v1333 = vsel %vm1314, %v1300, %v620
        %v1334 = vsel %vm1314, %v1301, %v622
        %v1335 = vsel %vm1314, %v1302, %v624
        %v1336 = vsel %vm1314, %v1303, %v626
        %v1337 = vsel %vm1314, %v1304, %v628
        %v1338 = vsel %vm1314, %v1305, %v630
        %v1339 = vsel %vm1314, %v1306, %v632
        %v1340 = vsel %vm1314, %v1307, %v634
        %v1341 = vsel %vm1314, %v1308, %v636
        %v1342 = vsel %vm1314, %v1309, %v638
        %v1343 = vsel %vm1314, %v1310, %v640
        %v1344 = vsel %vm1314, %v1311, %v642
        %v1345 = vsel %vm1314, %v1312, %v644
        %v1346 = vsel %vm1314, %v1313, %v646
        %vm1347 = vcmask 97280
        %v1348 = vsel %vm1347, %v1315, %v682
        %v1349 = vsel %vm1347, %v1316, %v684
        %v1350 = vsel %vm1347, %v1317, %v686
        %v1351 = vsel %vm1347, %v1318, %v688
        %v1352 = vsel %vm1347, %v1319, %v690
        %v1353 = vsel %vm1347, %v1320, %v692
        %v1354 = vsel %vm1347, %v1321, %v694
        %v1355 = vsel %vm1347, %v1322, %v696
        %v1356 = vsel %vm1347, %v1323, %v698
        %v1357 = vsel %vm1347, %v1324, %v700
        %v1358 = vsel %vm1347, %v1325, %v702
        %v1359 = vsel %vm1347, %v1326, %v704
        %v1360 = vsel %vm1347, %v1327, %v706
        %v1361 = vsel %vm1347, %v1328, %v708
        %v1362 = vsel %vm1347, %v1329, %v710
        %v1363 = vsel %vm1347, %v1330, %v712
        %v1364 = vsel %vm1347, %v1331, %v714
        %v1365 = vsel %vm1347, %v1332, %v716
        %v1366 = vsel %vm1347, %v1333, %v718
        %v1367 = vsel %vm1347, %v1334, %v720
        %v1368 = vsel %vm1347, %v1335, %v722
        %v1369 = vsel %vm1347, %v1336, %v724
        %v1370 = vsel %vm1347, %v1337, %v726
        %v1371 = vsel %vm1347, %v1338, %v728
        %v1372 = vsel %vm1347, %v1339, %v730
        %v1373 = vsel %vm1347, %v1340, %v732
        %v1374 = vsel %vm1347, %v1341, %v734
        %v1375 = vsel %vm1347, %v1342, %v736
        %v1376 = vsel %vm1347, %v1343, %v738
        %v1377 = vsel %vm1347, %v1344, %v740
        %v1378 = vsel %vm1347, %v1345, %v742
        %v1379 = vsel %vm1347, %v1346, %v744
        %vm1380 = vcmask 130048
        %v1381 = vsel %vm1380, %v1348, %v784
        %v1382 = vsel %vm1380, %v1349, %v786
        %v1383 = vsel %vm1380, %v1350, %v788
        %v1384 = vsel %vm1380, %v1351, %v790
        %v1385 = vsel %vm1380, %v1352, %v792
        %v1386 = vsel %vm1380, %v1353, %v794
        %v1387 = vsel %vm1380, %v1354, %v796
        %v1388 = vsel %vm1380, %v1355, %v798
        %v1389 = vsel %vm1380, %v1356, %v800
        %v1390 = vsel %vm1380, %v1357, %v802
        %v1391 = vsel %vm1380, %v1358, %v804
        %v1392 = vsel %vm1380, %v1359, %v806
        %v1393 = vsel %vm1380, %v1360, %v808
        %v1394 = vsel %vm1380, %v1361, %v810
        %v1395 = vsel %vm1380, %v1362, %v812
        %v1396 = vsel %vm1380, %v1363, %v814
        %v1397 = vsel %vm1380, %v1364, %v816
        %v1398 = vsel %vm1380, %v1365, %v818
        %v1399 = vsel %vm1380, %v1366, %v820
        %v1400 = vsel %vm1380, %v1367, %v822
        %v1401 = vsel %vm1380, %v1368, %v824
        %v1402 = vsel %vm1380, %v1369, %v826
        %v1403 = vsel %vm1380, %v1370, %v828
        %v1404 = vsel %vm1380, %v1371, %v830
        %v1405 = vsel %vm1380, %v1372, %v832
        %v1406 = vsel %vm1380, %v1373, %v834
        %v1407 = vsel %vm1380, %v1374, %v836
        %v1408 = vsel %vm1380, %v1375, %v838
        %v1409 = vsel %vm1380, %v1376, %v840
        %v1410 = vsel %vm1380, %v1377, %v842
        %v1411 = vsel %vm1380, %v1378, %v844
        %v1412 = vsel %vm1380, %v1379, %v846
        %vm1413 = vcmask 162816
        %v1414 = vsel %vm1413, %v1381, %v885
        %v1415 = vsel %vm1413, %v1382, %v887
        %v1416 = vsel %vm1413, %v1383, %v889
        %v1417 = vsel %vm1413, %v1384, %v891
        %v1418 = vsel %vm1413, %v1385, %v893
        %v1419 = vsel %vm1413, %v1386, %v895
        %v1420 = vsel %vm1413, %v1387, %v897
        %v1421 = vsel %vm1413, %v1388, %v899
        %v1422 = vsel %vm1413, %v1389, %v901
        %v1423 = vsel %vm1413, %v1390, %v903
        %v1424 = vsel %vm1413, %v1391, %v905
        %v1425 = vsel %vm1413, %v1392, %v907
        %v1426 = vsel %vm1413, %v1393, %v909
        %v1427 = vsel %vm1413, %v1394, %v911
        %v1428 = vsel %vm1413, %v1395, %v913
        %v1429 = vsel %vm1413, %v1396, %v915
        %v1430 = vsel %vm1413, %v1397, %v917
        %v1431 = vsel %vm1413, %v1398, %v919
        %v1432 = vsel %vm1413, %v1399, %v921
        %v1433 = vsel %vm1413, %v1400, %v923
        %v1434 = vsel %vm1413, %v1401, %v925
        %v1435 = vsel %vm1413, %v1402, %v927
        %v1436 = vsel %vm1413, %v1403, %v929
        %v1437 = vsel %vm1413, %v1404, %v931
        %v1438 = vsel %vm1413, %v1405, %v933
        %v1439 = vsel %vm1413, %v1406, %v935
        %v1440 = vsel %vm1413, %v1407, %v937
        %v1441 = vsel %vm1413, %v1408, %v939
        %v1442 = vsel %vm1413, %v1409, %v941
        %v1443 = vsel %vm1413, %v1410, %v943
        %v1444 = vsel %vm1413, %v1411, %v945
        %v1445 = vsel %vm1413, %v1412, %v947
        %vm1446 = vcmask 195584
        %v1447 = vsel %vm1446, %v1414, %v983
        %v1448 = vsel %vm1446, %v1415, %v985
        %v1449 = vsel %vm1446, %v1416, %v987
        %v1450 = vsel %vm1446, %v1417, %v989
        %v1451 = vsel %vm1446, %v1418, %v991
        %v1452 = vsel %vm1446, %v1419, %v993
        %v1453 = vsel %vm1446, %v1420, %v995
        %v1454 = vsel %vm1446, %v1421, %v997
        %v1455 = vsel %vm1446, %v1422, %v999
        %v1456 = vsel %vm1446, %v1423, %v1001
        %v1457 = vsel %vm1446, %v1424, %v1003
        %v1458 = vsel %vm1446, %v1425, %v1005
        %v1459 = vsel %vm1446, %v1426, %v1007
        %v1460 = vsel %vm1446, %v1427, %v1009
        %v1461 = vsel %vm1446, %v1428, %v1011
        %v1462 = vsel %vm1446, %v1429, %v1013
        %v1463 = vsel %vm1446, %v1430, %v1015
        %v1464 = vsel %vm1446, %v1431, %v1017
        %v1465 = vsel %vm1446, %v1432, %v1019
        %v1466 = vsel %vm1446, %v1433, %v1021
        %v1467 = vsel %vm1446, %v1434, %v1023
        %v1468 = vsel %vm1446, %v1435, %v1025
        %v1469 = vsel %vm1446, %v1436, %v1027
        %v1470 = vsel %vm1446, %v1437, %v1029
        %v1471 = vsel %vm1446, %v1438, %v1031
        %v1472 = vsel %vm1446, %v1439, %v1033
        %v1473 = vsel %vm1446, %v1440, %v1035
        %v1474 = vsel %vm1446, %v1441, %v1037
        %v1475 = vsel %vm1446, %v1442, %v1039
        %v1476 = vsel %vm1446, %v1443, %v1041
        %v1477 = vsel %vm1446, %v1444, %v1043
        %v1478 = vsel %vm1446, %v1445, %v1045
        %vm1479 = vcmask 228352
        %v1480 = vsel %vm1479, %v1447, %v1085
        %v1481 = vsel %vm1479, %v1448, %v1087
        %v1482 = vsel %vm1479, %v1449, %v1089
        %v1483 = vsel %vm1479, %v1450, %v1091
        %v1484 = vsel %vm1479, %v1451, %v1093
        %v1485 = vsel %vm1479, %v1452, %v1095
        %v1486 = vsel %vm1479, %v1453, %v1097
        %v1487 = vsel %vm1479, %v1454, %v1099
        %v1488 = vsel %vm1479, %v1455, %v1101
        %v1489 = vsel %vm1479, %v1456, %v1103
        %v1490 = vsel %vm1479, %v1457, %v1105
        %v1491 = vsel %vm1479, %v1458, %v1107
        %v1492 = vsel %vm1479, %v1459, %v1109
        %v1493 = vsel %vm1479, %v1460, %v1111
        %v1494 = vsel %vm1479, %v1461, %v1113
        %v1495 = vsel %vm1479, %v1462, %v1115
        %v1496 = vsel %vm1479, %v1463, %v1117
        %v1497 = vsel %vm1479, %v1464, %v1119
        %v1498 = vsel %vm1479, %v1465, %v1121
        %v1499 = vsel %vm1479, %v1466, %v1123
        %v1500 = vsel %vm1479, %v1467, %v1125
        %v1501 = vsel %vm1479, %v1468, %v1127
        %v1502 = vsel %vm1479, %v1469, %v1129
        %v1503 = vsel %vm1479, %v1470, %v1131
        %v1504 = vsel %vm1479, %v1471, %v1133
        %v1505 = vsel %vm1479, %v1472, %v1135
        %v1506 = vsel %vm1479, %v1473, %v1137
        %v1507 = vsel %vm1479, %v1474, %v1139
        %v1508 = vsel %vm1479, %v1475, %v1141
        %v1509 = vsel %vm1479, %v1476, %v1143
        %v1510 = vsel %vm1479, %v1477, %v1145
        %v1511 = vsel %vm1479, %v1478, %v1147
        %vm1512 = vcmask 261120
        %v1513 = vsel %vm1512, %v1480, %v1186
        %v1514 = vsel %vm1512, %v1481, %v1188
        %v1515 = vsel %vm1512, %v1482, %v1190
        %v1516 = vsel %vm1512, %v1483, %v1192
        %v1517 = vsel %vm1512, %v1484, %v1194
        %v1518 = vsel %vm1512, %v1485, %v1196
        %v1519 = vsel %vm1512, %v1486, %v1198
        %v1520 = vsel %vm1512, %v1487, %v1200
        %v1521 = vsel %vm1512, %v1488, %v1202
        %v1522 = vsel %vm1512, %v1489, %v1204
        %v1523 = vsel %vm1512, %v1490, %v1206
        %v1524 = vsel %vm1512, %v1491, %v1208
        %v1525 = vsel %vm1512, %v1492, %v1210
        %v1526 = vsel %vm1512, %v1493, %v1212
        %v1527 = vsel %vm1512, %v1494, %v1214
        %v1528 = vsel %vm1512, %v1495, %v1216
        %v1529 = vsel %vm1512, %v1496, %v1218
        %v1530 = vsel %vm1512, %v1497, %v1220
        %v1531 = vsel %vm1512, %v1498, %v1222
        %v1532 = vsel %vm1512, %v1499, %v1224
        %v1533 = vsel %vm1512, %v1500, %v1226
        %v1534 = vsel %vm1512, %v1501, %v1228
        %v1535 = vsel %vm1512, %v1502, %v1230
        %v1536 = vsel %vm1512, %v1503, %v1232
        %v1537 = vsel %vm1512, %v1504, %v1234
        %v1538 = vsel %vm1512, %v1505, %v1236
        %v1539 = vsel %vm1512, %v1506, %v1238
        %v1540 = vsel %vm1512, %v1507, %v1240
        %v1541 = vsel %vm1512, %v1508, %v1242
        %v1542 = vsel %vm1512, %v1509, %v1244
        %v1543 = vsel %vm1512, %v1510, %v1246
        %v1544 = vsel %vm1512, %v1511, %v1248
        %v1545 = vld [vmem:[%s1] sm:$0xff]
        %v1546 = vld [vmem:[%s1 + $0x8] sm:$0xff]
        %v1547 = vld [vmem:[%s1 + $0x10] sm:$0xff]
        %v1548 = vld [vmem:[%s1 + $0x18] sm:$0xff]
        %v1549 = vld [vmem:[%s1 + $0x20] sm:$0xf]
        %v1550 = vld [vmem:[%s2] sm:$0x1]
        %v1552 = vlaneseq
        %v1553 = vshrl.u32 %v1552, 7
        %v1554 = vsub.s32 0, %v1553
        %v1555 = vrot.slane %v1550, %v1554
        %vm1557 = vcmask 293888
        %v1559 = vsel %vm1557, %v1513, 0
        %v1562 = vsel %vm1557, %v1514, 0
        %v1565 = vsel %vm1557, %v1515, 0
        %v1568 = vsel %vm1557, %v1516, 0
        %v1571 = vsel %vm1557, %v1517, 0
        %v1574 = vsel %vm1557, %v1518, 0
        %v1577 = vsel %vm1557, %v1519, 0
        %v1580 = vsel %vm1557, %v1520, 0
        %v1583 = vsel %vm1557, %v1521, 0
        %v1586 = vsel %vm1557, %v1522, 0
        %v1589 = vsel %vm1557, %v1523, 0
        %v1592 = vsel %vm1557, %v1524, 0
        %v1595 = vsel %vm1557, %v1525, 0
        %v1598 = vsel %vm1557, %v1526, 0
        %v1601 = vsel %vm1557, %v1527, 0
        %v1604 = vsel %vm1557, %v1528, 0
        %v1607 = vsel %vm1557, %v1529, 0
        %v1610 = vsel %vm1557, %v1530, 0
        %v1613 = vsel %vm1557, %v1531, 0
        %v1616 = vsel %vm1557, %v1532, 0
        %v1619 = vsel %vm1557, %v1533, 0
        %v1622 = vsel %vm1557, %v1534, 0
        %v1625 = vsel %vm1557, %v1535, 0
        %v1628 = vsel %vm1557, %v1536, 0
        %v1631 = vsel %vm1557, %v1537, 0
        %v1634 = vsel %vm1557, %v1538, 0
        %v1637 = vsel %vm1557, %v1539, 0
        %v1640 = vsel %vm1557, %v1540, 0
        %v1643 = vsel %vm1557, %v1541, 0
        %v1646 = vsel %vm1557, %v1542, 0
        %v1649 = vsel %vm1557, %v1543, 0
        %v1652 = vsel %vm1557, %v1544, 0
        %vm1654 = vcmask 1043456
        %v1656 = vsel %vm1654, %v1549, 0
        %1658 = vmatprep.subr.mxu0 0.0
        %1659 = vmatpush1.msra.mxu0 0.0
        %1660 = vmatprep.subr.mxu0 0.0
        %1661 = vmatpush1.msra.mxu0 0.0
        %1662 = vmatprep.subr.mxu0 0.0
        %1663 = vmatpush1.msra.mxu0 0.0
        %1664 = vmatprep.subr.mxu0 0.0
        %1665 = vmatpush1.msra.mxu0 0.0
        %1666 = vmatprep.subr.mxu0 0.0
        %1667 = vmatpush1.msra.mxu0 0.0
        %1668 = vmatprep.subr.mxu0 0.0
        %1669 = vmatpush1.msra.mxu0 0.0
        %1670 = vmatprep.subr.mxu0 0.0
        %1671 = vmatpush1.msra.mxu0 0.0
        %1672 = vmatprep.subr.mxu0 0.0
        %1673 = vmatpush1.msra.mxu0 0.0
        %1674 = vmatprep.subr.mxu0 0.0
        %1675 = vmatpush1.msra.mxu0 0.0
        %1676 = vmatprep.subr.mxu0 0.0
        %1677 = vmatpush1.msra.mxu0 0.0
        %1678 = vmatprep.subr.mxu0 0.0
        %1679 = vmatpush1.msra.mxu0 0.0
        %1680 = vmatprep.subr.mxu0 0.0
        %1681 = vmatpush1.msra.mxu0 %v1656
        %1682 = vmatprep.subr.mxu0 0.0
        %1683 = vmatpush1.msra.mxu0 %v1548
        %1684 = vmatprep.subr.mxu0 0.0
        %1685 = vmatpush1.msra.mxu0 %v1547
        %1686 = vmatprep.subr.mxu0 0.0
        %1687 = vmatpush1.msra.mxu0 %v1546
        %1688 = vmatprep.subr.mxu0 0.0
        %1689 = vmatpush1.msra.mxu0 %v1545
        %1690 = vmatprep.subr.mxu0 0.0
        %1691 = vmatpush2.msra.mxu0 0.0
        %1692 = vmatprep.subr.mxu0 0.0
        %1693 = vmatpush2.msra.mxu0 0.0
        %1694 = vmatprep.subr.mxu0 0.0
        %1695 = vmatpush2.msra.mxu0 0.0
        %1696 = vmatprep.subr.mxu0 0.0
        %1697 = vmatpush2.msra.mxu0 0.0
        %1698 = vmatprep.subr.mxu0 0.0
        %1699 = vmatpush2.msra.mxu0 0.0
        %1700 = vmatprep.subr.mxu0 0.0
        %1701 = vmatpush2.msra.mxu0 0.0
        %1702 = vmatprep.subr.mxu0 0.0
        %1703 = vmatpush2.msra.mxu0 0.0
        %1704 = vmatprep.subr.mxu0 0.0
        %1705 = vmatpush2.msra.mxu0 0.0
        %1706 = vmatprep.subr.mxu0 0.0
        %1707 = vmatpush2.msra.mxu0 0.0
        %1708 = vmatprep.subr.mxu0 0.0
        %1709 = vmatpush2.msra.mxu0 0.0
        %1710 = vmatprep.subr.mxu0 0.0
        %1711 = vmatpush2.msra.mxu0 0.0
        %1712 = vmatprep.subr.mxu0 0.0
        %1713 = vmatpush2.msra.mxu0 0.0
        %1714 = vmatprep.subr.mxu0 0.0
        %1715 = vmatpush2.msra.mxu0 0.0
        %1716 = vmatprep.subr.mxu0 0.0
        %1717 = vmatpush2.msra.mxu0 0.0
        %1718 = vmatprep.subr.mxu0 0.0
        %1719 = vmatpush2.msra.mxu0 0.0
        %1720 = vmatprep.subr.mxu0 0.0
        %1721 = vmatpush2.msra.mxu0 0.0
        %1722 = vmatprep.mubr.f32.mxu0 0.0
        %1723 = vmatmul.mubr.f32.gmra.mxu0 %v1559
        %v1724 = vpop.f32.mrf.mxu0
        %v1725 = vadd.f32 %v1555, %v1724
        %v1726 = vpop.f32.mrf.mxu0
        %1727 = vmatprep.mubr.f32.mxu0 0.0
        %1728 = vmatmul.mubr.f32.gmra.mxu0 %v1562
        %v1729 = vpop.f32.mrf.mxu0
        %v1730 = vadd.f32 %v1555, %v1729
        %v1731 = vpop.f32.mrf.mxu0
        %1732 = vmatprep.mubr.f32.mxu0 0.0
        %1733 = vmatmul.mubr.f32.gmra.mxu0 %v1565
        %v1734 = vpop.f32.mrf.mxu0
        %v1735 = vadd.f32 %v1555, %v1734
        %v1736 = vpop.f32.mrf.mxu0
        %1737 = vmatprep.mubr.f32.mxu0 0.0
        %1738 = vmatmul.mubr.f32.gmra.mxu0 %v1568
        %v1739 = vpop.f32.mrf.mxu0
        %v1740 = vadd.f32 %v1555, %v1739
        %v1741 = vpop.f32.mrf.mxu0
        %1742 = vmatprep.mubr.f32.mxu0 0.0
        %1743 = vmatmul.mubr.f32.gmra.mxu0 %v1571
        %v1744 = vpop.f32.mrf.mxu0
        %v1745 = vadd.f32 %v1555, %v1744
        %v1746 = vpop.f32.mrf.mxu0
        %1747 = vmatprep.mubr.f32.mxu0 0.0
        %1748 = vmatmul.mubr.f32.gmra.mxu0 %v1574
        %v1749 = vpop.f32.mrf.mxu0
        %v1750 = vadd.f32 %v1555, %v1749
        %v1751 = vpop.f32.mrf.mxu0
        %1752 = vmatprep.mubr.f32.mxu0 0.0
        %1753 = vmatmul.mubr.f32.gmra.mxu0 %v1577
        %v1754 = vpop.f32.mrf.mxu0
        %v1755 = vadd.f32 %v1555, %v1754
        %v1756 = vpop.f32.mrf.mxu0
        %1757 = vmatprep.mubr.f32.mxu0 0.0
        %1758 = vmatmul.mubr.f32.gmra.mxu0 %v1580
        %v1759 = vpop.f32.mrf.mxu0
        %v1760 = vadd.f32 %v1555, %v1759
        %v1761 = vpop.f32.mrf.mxu0
        %1762 = vmatprep.mubr.f32.mxu0 0.0
        %1763 = vmatmul.mubr.f32.gmra.mxu0 %v1583
        %v1764 = vpop.f32.mrf.mxu0
        %v1765 = vadd.f32 %v1555, %v1764
        %v1766 = vpop.f32.mrf.mxu0
        %1767 = vmatprep.mubr.f32.mxu0 0.0
        %1768 = vmatmul.mubr.f32.gmra.mxu0 %v1586
        %v1769 = vpop.f32.mrf.mxu0
        %v1770 = vadd.f32 %v1555, %v1769
        %v1771 = vpop.f32.mrf.mxu0
        %1772 = vmatprep.mubr.f32.mxu0 0.0
        %1773 = vmatmul.mubr.f32.gmra.mxu0 %v1589
        %v1774 = vpop.f32.mrf.mxu0
        %v1775 = vadd.f32 %v1555, %v1774
        %v1776 = vpop.f32.mrf.mxu0
        %1777 = vmatprep.mubr.f32.mxu0 0.0
        %1778 = vmatmul.mubr.f32.gmra.mxu0 %v1592
        %v1779 = vpop.f32.mrf.mxu0
        %v1780 = vadd.f32 %v1555, %v1779
        %v1781 = vpop.f32.mrf.mxu0
        %1782 = vmatprep.mubr.f32.mxu0 0.0
        %1783 = vmatmul.mubr.f32.gmra.mxu0 %v1595
        %v1784 = vpop.f32.mrf.mxu0
        %v1785 = vadd.f32 %v1555, %v1784
        %v1786 = vpop.f32.mrf.mxu0
        %1787 = vmatprep.mubr.f32.mxu0 0.0
        %1788 = vmatmul.mubr.f32.gmra.mxu0 %v1598
        %v1789 = vpop.f32.mrf.mxu0
        %v1790 = vadd.f32 %v1555, %v1789
        %v1791 = vpop.f32.mrf.mxu0
        %1792 = vmatprep.mubr.f32.mxu0 0.0
        %1793 = vmatmul.mubr.f32.gmra.mxu0 %v1601
        %v1794 = vpop.f32.mrf.mxu0
        %v1795 = vadd.f32 %v1555, %v1794
        %v1796 = vpop.f32.mrf.mxu0
        %1797 = vmatprep.mubr.f32.mxu0 0.0
        %1798 = vmatmul.mubr.f32.gmra.mxu0 %v1604
        %v1799 = vpop.f32.mrf.mxu0
        %v1800 = vadd.f32 %v1555, %v1799
        %v1801 = vpop.f32.mrf.mxu0
        %1802 = vmatprep.mubr.f32.mxu0 0.0
        %1803 = vmatmul.mubr.f32.gmra.mxu0 %v1607
        %v1804 = vpop.f32.mrf.mxu0
        %v1805 = vadd.f32 %v1555, %v1804
        %v1806 = vpop.f32.mrf.mxu0
        %1807 = vmatprep.mubr.f32.mxu0 0.0
        %1808 = vmatmul.mubr.f32.gmra.mxu0 %v1610
        %v1809 = vpop.f32.mrf.mxu0
        %v1810 = vadd.f32 %v1555, %v1809
        %v1811 = vpop.f32.mrf.mxu0
        %1812 = vmatprep.mubr.f32.mxu0 0.0
        %1813 = vmatmul.mubr.f32.gmra.mxu0 %v1613
        %v1814 = vpop.f32.mrf.mxu0
        %v1815 = vadd.f32 %v1555, %v1814
        %v1816 = vpop.f32.mrf.mxu0
        %1817 = vmatprep.mubr.f32.mxu0 0.0
        %1818 = vmatmul.mubr.f32.gmra.mxu0 %v1616
        %v1819 = vpop.f32.mrf.mxu0
        %v1820 = vadd.f32 %v1555, %v1819
        %v1821 = vpop.f32.mrf.mxu0
        %1822 = vmatprep.mubr.f32.mxu0 0.0
        %1823 = vmatmul.mubr.f32.gmra.mxu0 %v1619
        %v1824 = vpop.f32.mrf.mxu0
        %v1825 = vadd.f32 %v1555, %v1824
        %v1826 = vpop.f32.mrf.mxu0
        %1827 = vmatprep.mubr.f32.mxu0 0.0
        %1828 = vmatmul.mubr.f32.gmra.mxu0 %v1622
        %v1829 = vpop.f32.mrf.mxu0
        %v1830 = vadd.f32 %v1555, %v1829
        %v1831 = vpop.f32.mrf.mxu0
        %1832 = vmatprep.mubr.f32.mxu0 0.0
        %1833 = vmatmul.mubr.f32.gmra.mxu0 %v1625
        %v1834 = vpop.f32.mrf.mxu0
        %v1835 = vadd.f32 %v1555, %v1834
        %v1836 = vpop.f32.mrf.mxu0
        %1837 = vmatprep.mubr.f32.mxu0 0.0
        %1838 = vmatmul.mubr.f32.gmra.mxu0 %v1628
        %v1839 = vpop.f32.mrf.mxu0
        %v1840 = vadd.f32 %v1555, %v1839
        %v1841 = vpop.f32.mrf.mxu0
        %1842 = vmatprep.mubr.f32.mxu0 0.0
        %1843 = vmatmul.mubr.f32.gmra.mxu0 %v1631
        %v1844 = vpop.f32.mrf.mxu0
        %v1845 = vadd.f32 %v1555, %v1844
        %v1846 = vpop.f32.mrf.mxu0
        %1847 = vmatprep.mubr.f32.mxu0 0.0
        %1848 = vmatmul.mubr.f32.gmra.mxu0 %v1634
        %v1849 = vpop.f32.mrf.mxu0
        %v1850 = vadd.f32 %v1555, %v1849
        %v1851 = vpop.f32.mrf.mxu0
        %1852 = vmatprep.mubr.f32.mxu0 0.0
        %1853 = vmatmul.mubr.f32.gmra.mxu0 %v1637
        %v1854 = vpop.f32.mrf.mxu0
        %v1855 = vadd.f32 %v1555, %v1854
        %v1856 = vpop.f32.mrf.mxu0
        %1857 = vmatprep.mubr.f32.mxu0 0.0
        %1858 = vmatmul.mubr.f32.gmra.mxu0 %v1640
        %v1859 = vpop.f32.mrf.mxu0
        %v1860 = vadd.f32 %v1555, %v1859
        %v1861 = vpop.f32.mrf.mxu0
        %1862 = vmatprep.mubr.f32.mxu0 0.0
        %1863 = vmatmul.mubr.f32.gmra.mxu0 %v1643
        %v1864 = vpop.f32.mrf.mxu0
        %v1865 = vadd.f32 %v1555, %v1864
        %v1866 = vpop.f32.mrf.mxu0
        %1867 = vmatprep.mubr.f32.mxu0 0.0
        %1868 = vmatmul.mubr.f32.gmra.mxu0 %v1646
        %v1869 = vpop.f32.mrf.mxu0
        %v1870 = vadd.f32 %v1555, %v1869
        %v1871 = vpop.f32.mrf.mxu0
        %1872 = vmatprep.mubr.f32.mxu0 0.0
        %1873 = vmatmul.mubr.f32.gmra.mxu0 %v1649
        %v1874 = vpop.f32.mrf.mxu0
        %v1875 = vadd.f32 %v1555, %v1874
        %v1876 = vpop.f32.mrf.mxu0
        %1877 = vmatprep.mubr.f32.mxu0 0.0
        %1878 = vmatmul.mubr.f32.gmra.mxu0 %v1652
        %v1879 = vpop.f32.mrf.mxu0
        %v1880 = vadd.f32 %v1555, %v1879
        %v1881 = vpop.f32.mrf.mxu0
        %1882 = vdwg.mxu0
        %v1883 = vxor.u32 %v1725, 2147483648
        %v1884 = vxor.u32 %v1730, 2147483648
        %v1885 = vxor.u32 %v1735, 2147483648
        %v1886 = vxor.u32 %v1740, 2147483648
        %v1887 = vxor.u32 %v1745, 2147483648
        %v1888 = vxor.u32 %v1750, 2147483648
        %v1889 = vxor.u32 %v1755, 2147483648
        %v1890 = vxor.u32 %v1760, 2147483648
        %v1891 = vxor.u32 %v1765, 2147483648
        %v1892 = vxor.u32 %v1770, 2147483648
        %v1893 = vxor.u32 %v1775, 2147483648
        %v1894 = vxor.u32 %v1780, 2147483648
        %v1895 = vxor.u32 %v1785, 2147483648
        %v1896 = vxor.u32 %v1790, 2147483648
        %v1897 = vxor.u32 %v1795, 2147483648
        %v1898 = vxor.u32 %v1800, 2147483648
        %v1899 = vxor.u32 %v1805, 2147483648
        %v1900 = vxor.u32 %v1810, 2147483648
        %v1901 = vxor.u32 %v1815, 2147483648
        %v1902 = vxor.u32 %v1820, 2147483648
        %v1903 = vxor.u32 %v1825, 2147483648
        %v1904 = vxor.u32 %v1830, 2147483648
        %v1905 = vxor.u32 %v1835, 2147483648
        %v1906 = vxor.u32 %v1840, 2147483648
        %v1907 = vxor.u32 %v1845, 2147483648
        %v1908 = vxor.u32 %v1850, 2147483648
        %v1909 = vxor.u32 %v1855, 2147483648
        %v1910 = vxor.u32 %v1860, 2147483648
        %v1911 = vxor.u32 %v1865, 2147483648
        %v1912 = vxor.u32 %v1870, 2147483648
        %v1913 = vxor.u32 %v1875, 2147483648
        %v1914 = vxor.u32 %v1880, 2147483648
        %v1915 = vmul.f32 %v1883, 1.442695
        %v1916 = vpow.pop %v1915
        %v1917 = vmul.f32 %v1884, 1.442695
        %v1918 = vpow.pop %v1917
        %v1919 = vmul.f32 %v1885, 1.442695
        %v1920 = vpow.pop %v1919
        %v1921 = vmul.f32 %v1886, 1.442695
        %v1922 = vpow.pop %v1921
        %v1923 = vmul.f32 %v1887, 1.442695
        %v1924 = vpow.pop %v1923
        %v1925 = vmul.f32 %v1888, 1.442695
        %v1926 = vpow.pop %v1925
        %v1927 = vmul.f32 %v1889, 1.442695
        %v1928 = vpow.pop %v1927
        %v1929 = vmul.f32 %v1890, 1.442695
        %v1930 = vpow.pop %v1929
        %v1931 = vmul.f32 %v1891, 1.442695
        %v1932 = vpow.pop %v1931
        %v1933 = vmul.f32 %v1892, 1.442695
        %v1934 = vpow.pop %v1933
        %v1935 = vmul.f32 %v1893, 1.442695
        %v1936 = vpow.pop %v1935
        %v1937 = vmul.f32 %v1894, 1.442695
        %v1938 = vpow.pop %v1937
        %v1939 = vmul.f32 %v1895, 1.442695
        %v1940 = vpow.pop %v1939
        %v1941 = vmul.f32 %v1896, 1.442695
        %v1942 = vpow.pop %v1941
        %v1943 = vmul.f32 %v1897, 1.442695
        %v1944 = vpow.pop %v1943
        %v1945 = vmul.f32 %v1898, 1.442695
        %v1946 = vpow.pop %v1945
        %v1947 = vmul.f32 %v1899, 1.442695
        %v1948 = vpow.pop %v1947
        %v1949 = vmul.f32 %v1900, 1.442695
        %v1950 = vpow.pop %v1949
        %v1951 = vmul.f32 %v1901, 1.442695
        %v1952 = vpow.pop %v1951
        %v1953 = vmul.f32 %v1902, 1.442695
        %v1954 = vpow.pop %v1953
        %v1955 = vmul.f32 %v1903, 1.442695
        %v1956 = vpow.pop %v1955
        %v1957 = vmul.f32 %v1904, 1.442695
        %v1958 = vpow.pop %v1957
        %v1959 = vmul.f32 %v1905, 1.442695
        %v1960 = vpow.pop %v1959
        %v1961 = vmul.f32 %v1906, 1.442695
        %v1962 = vpow.pop %v1961
        %v1963 = vmul.f32 %v1907, 1.442695
        %v1964 = vpow.pop %v1963
        %v1965 = vmul.f32 %v1908, 1.442695
        %v1966 = vpow.pop %v1965
        %v1967 = vmul.f32 %v1909, 1.442695
        %v1968 = vpow.pop %v1967
        %v1969 = vmul.f32 %v1910, 1.442695
        %v1970 = vpow.pop %v1969
        %v1971 = vmul.f32 %v1911, 1.442695
        %v1972 = vpow.pop %v1971
        %v1973 = vmul.f32 %v1912, 1.442695
        %v1974 = vpow.pop %v1973
        %v1975 = vmul.f32 %v1913, 1.442695
        %v1976 = vpow.pop %v1975
        %v1977 = vmul.f32 %v1914, 1.442695
        %v1978 = vpow.pop %v1977
        %v1979 = vadd.f32 %v1916, 1.0
        %v1980 = vadd.f32 %v1918, 1.0
        %v1981 = vadd.f32 %v1920, 1.0
        %v1982 = vadd.f32 %v1922, 1.0
        %v1983 = vadd.f32 %v1924, 1.0
        %v1984 = vadd.f32 %v1926, 1.0
        %v1985 = vadd.f32 %v1928, 1.0
        %v1986 = vadd.f32 %v1930, 1.0
        %v1987 = vadd.f32 %v1932, 1.0
        %v1988 = vadd.f32 %v1934, 1.0
        %v1989 = vadd.f32 %v1936, 1.0
        %v1990 = vadd.f32 %v1938, 1.0
        %v1991 = vadd.f32 %v1940, 1.0
        %v1992 = vadd.f32 %v1942, 1.0
        %v1993 = vadd.f32 %v1944, 1.0
        %v1994 = vadd.f32 %v1946, 1.0
        %v1995 = vadd.f32 %v1948, 1.0
        %v1996 = vadd.f32 %v1950, 1.0
        %v1997 = vadd.f32 %v1952, 1.0
        %v1998 = vadd.f32 %v1954, 1.0
        %v1999 = vadd.f32 %v1956, 1.0
        %v2000 = vadd.f32 %v1958, 1.0
        %v2001 = vadd.f32 %v1960, 1.0
        %v2002 = vadd.f32 %v1962, 1.0
        %v2003 = vadd.f32 %v1964, 1.0
        %v2004 = vadd.f32 %v1966, 1.0
        %v2005 = vadd.f32 %v1968, 1.0
        %v2006 = vadd.f32 %v1970, 1.0
        %v2007 = vadd.f32 %v1972, 1.0
        %v2008 = vadd.f32 %v1974, 1.0
        %v2009 = vadd.f32 %v1976, 1.0
        %v2010 = vadd.f32 %v1978, 1.0
        %v2011 = vrcp.pop %v1979
        %v2012 = vmul.f32 1.0, %v2011
        %v2013 = vrcp.pop %v1980
        %v2014 = vmul.f32 1.0, %v2013
        %v2015 = vrcp.pop %v1981
        %v2016 = vmul.f32 1.0, %v2015
        %v2017 = vrcp.pop %v1982
        %v2018 = vmul.f32 1.0, %v2017
        %v2019 = vrcp.pop %v1983
        %v2020 = vmul.f32 1.0, %v2019
        %v2021 = vrcp.pop %v1984
        %v2022 = vmul.f32 1.0, %v2021
        %v2023 = vrcp.pop %v1985
        %v2024 = vmul.f32 1.0, %v2023
        %v2025 = vrcp.pop %v1986
        %v2026 = vmul.f32 1.0, %v2025
        %v2027 = vrcp.pop %v1987
        %v2028 = vmul.f32 1.0, %v2027
        %v2029 = vrcp.pop %v1988
        %v2030 = vmul.f32 1.0, %v2029
        %v2031 = vrcp.pop %v1989
        %v2032 = vmul.f32 1.0, %v2031
        %v2033 = vrcp.pop %v1990
        %v2034 = vmul.f32 1.0, %v2033
        %v2035 = vrcp.pop %v1991
        %v2036 = vmul.f32 1.0, %v2035
        %v2037 = vrcp.pop %v1992
        %v2038 = vmul.f32 1.0, %v2037
        %v2039 = vrcp.pop %v1993
        %v2040 = vmul.f32 1.0, %v2039
        %v2041 = vrcp.pop %v1994
        %v2042 = vmul.f32 1.0, %v2041
        %v2043 = vrcp.pop %v1995
        %v2044 = vmul.f32 1.0, %v2043
        %v2045 = vrcp.pop %v1996
        %v2046 = vmul.f32 1.0, %v2045
        %v2047 = vrcp.pop %v1997
        %v2048 = vmul.f32 1.0, %v2047
        %v2049 = vrcp.pop %v1998
        %v2050 = vmul.f32 1.0, %v2049
        %v2051 = vrcp.pop %v1999
        %v2052 = vmul.f32 1.0, %v2051
        %v2053 = vrcp.pop %v2000
        %v2054 = vmul.f32 1.0, %v2053
        %v2055 = vrcp.pop %v2001
        %v2056 = vmul.f32 1.0, %v2055
        %v2057 = vrcp.pop %v2002
        %v2058 = vmul.f32 1.0, %v2057
        %v2059 = vrcp.pop %v2003
        %v2060 = vmul.f32 1.0, %v2059
        %v2061 = vrcp.pop %v2004
        %v2062 = vmul.f32 1.0, %v2061
        %v2063 = vrcp.pop %v2005
        %v2064 = vmul.f32 1.0, %v2063
        %v2065 = vrcp.pop %v2006
        %v2066 = vmul.f32 1.0, %v2065
        %v2067 = vrcp.pop %v2007
        %v2068 = vmul.f32 1.0, %v2067
        %v2069 = vrcp.pop %v2008
        %v2070 = vmul.f32 1.0, %v2069
        %v2071 = vrcp.pop %v2009
        %v2072 = vmul.f32 1.0, %v2071
        %v2073 = vrcp.pop %v2010
        %v2074 = vmul.f32 1.0, %v2073
        %v2075 = vmul.f32 %v1725, %v2012
        %v2076 = vmul.f32 %v1730, %v2014
        %v2077 = vmul.f32 %v1735, %v2016
        %v2078 = vmul.f32 %v1740, %v2018
        %v2079 = vmul.f32 %v1745, %v2020
        %v2080 = vmul.f32 %v1750, %v2022
        %v2081 = vmul.f32 %v1755, %v2024
        %v2082 = vmul.f32 %v1760, %v2026
        %v2083 = vmul.f32 %v1765, %v2028
        %v2084 = vmul.f32 %v1770, %v2030
        %v2085 = vmul.f32 %v1775, %v2032
        %v2086 = vmul.f32 %v1780, %v2034
        %v2087 = vmul.f32 %v1785, %v2036
        %v2088 = vmul.f32 %v1790, %v2038
        %v2089 = vmul.f32 %v1795, %v2040
        %v2090 = vmul.f32 %v1800, %v2042
        %v2091 = vmul.f32 %v1805, %v2044
        %v2092 = vmul.f32 %v1810, %v2046
        %v2093 = vmul.f32 %v1815, %v2048
        %v2094 = vmul.f32 %v1820, %v2050
        %v2095 = vmul.f32 %v1825, %v2052
        %v2096 = vmul.f32 %v1830, %v2054
        %v2097 = vmul.f32 %v1835, %v2056
        %v2098 = vmul.f32 %v1840, %v2058
        %v2099 = vmul.f32 %v1845, %v2060
        %v2100 = vmul.f32 %v1850, %v2062
        %v2101 = vmul.f32 %v1855, %v2064
        %v2102 = vmul.f32 %v1860, %v2066
        %v2103 = vmul.f32 %v1865, %v2068
        %v2104 = vmul.f32 %v1870, %v2070
        %v2105 = vmul.f32 %v1875, %v2072
        %v2106 = vmul.f32 %v1880, %v2074
        %2107 = vst.msk [vmem:[#allocation2] sm:$0xff] %vm1380, 0.0
        %2108 = vst.msk [vmem:[#allocation2 + $0x8] sm:$0xff] %vm1380, 0.0
        %vm2109 = vcmask 123904
        %2110 = vst.msk [vmem:[#allocation2 + $0x10] sm:$0x3] %vm2109, 0.0
        %s2111 = scalar_lea.vmem [#allocation2], 408
        %2112 = vst.msk [vmem:[%s2111] sm:$0xff] %vm1380, 0.0
        %2113 = vst.msk [vmem:[%s2111 + $0x8] sm:$0xff] %vm1380, 0.0
        %2114 = vst.msk [vmem:[%s2111 + $0x10] sm:$0x3] %vm2109, 0.0
        %vm2115 = vcmask 122880
        %2116 = vst.msk [vmem:[#allocation2] sm:$0x1] %vm2115, 0.0
        %2117 = vst.msk [vmem:[#allocation2 + $0x18] sm:$0x1] %vm2115, 0.0
        %2118 = vst.msk [vmem:[#allocation2 + $0x30] sm:$0x1] %vm2115, 0.0
        %2119 = vst.msk [vmem:[#allocation2 + $0x48] sm:$0x1] %vm2115, 0.0
        %2120 = vst.msk [vmem:[#allocation2 + $0x60] sm:$0x1] %vm2115, 0.0
        %2121 = vst.msk [vmem:[#allocation2 + $0x78] sm:$0x1] %vm2115, 0.0
        %2122 = vst.msk [vmem:[#allocation2 + $0x90] sm:$0x1] %vm2115, 0.0
        %2123 = vst.msk [vmem:[#allocation2 + $0xa8] sm:$0x1] %vm2115, 0.0
        %2124 = vst.msk [vmem:[#allocation2 + $0xc0] sm:$0x1] %vm2115, 0.0
        %2125 = vst.msk [vmem:[#allocation2 + $0xd8] sm:$0x1] %vm2115, 0.0
        %2126 = vst.msk [vmem:[#allocation2 + $0xf0] sm:$0x1] %vm2115, 0.0
        %2127 = vst.msk [vmem:[#allocation2 + $0x108] sm:$0x1] %vm2115, 0.0
        %2128 = vst.msk [vmem:[#allocation2 + $0x120] sm:$0x1] %vm2115, 0.0
        %2129 = vst.msk [vmem:[#allocation2 + $0x138] sm:$0x1] %vm2115, 0.0
        %2130 = vst.msk [vmem:[#allocation2 + $0x150] sm:$0x1] %vm2115, 0.0
        %2131 = vst.msk [vmem:[#allocation2 + $0x168] sm:$0x1] %vm2115, 0.0
        %2132 = vst.msk [vmem:[#allocation2 + $0x180] sm:$0x1] %vm2115, 0.0
        %2133 = vst.msk [vmem:[#allocation2 + $0x198] sm:$0x1] %vm2115, 0.0
        %2134 = vst.msk [vmem:[#allocation2 + $0x11] sm:$0x1] %vm2115, 0.0
        %2135 = vst.msk [vmem:[#allocation2 + $0x29] sm:$0x1] %vm2115, 0.0
        %2136 = vst.msk [vmem:[#allocation2 + $0x41] sm:$0x1] %vm2115, 0.0
        %2137 = vst.msk [vmem:[#allocation2 + $0x59] sm:$0x1] %vm2115, 0.0
        %2138 = vst.msk [vmem:[#allocation2 + $0x71] sm:$0x1] %vm2115, 0.0
        %2139 = vst.msk [vmem:[#allocation2 + $0x89] sm:$0x1] %vm2115, 0.0
        %2140 = vst.msk [vmem:[#allocation2 + $0xa1] sm:$0x1] %vm2115, 0.0
        %2141 = vst.msk [vmem:[#allocation2 + $0xb9] sm:$0x1] %vm2115, 0.0
        %2142 = vst.msk [vmem:[#allocation2 + $0xd1] sm:$0x1] %vm2115, 0.0
        %2143 = vst.msk [vmem:[#allocation2 + $0xe9] sm:$0x1] %vm2115, 0.0
        %2144 = vst.msk [vmem:[#allocation2 + $0x101] sm:$0x1] %vm2115, 0.0
        %2145 = vst.msk [vmem:[#allocation2 + $0x119] sm:$0x1] %vm2115, 0.0
        %2146 = vst.msk [vmem:[#allocation2 + $0x131] sm:$0x1] %vm2115, 0.0
        %2147 = vst.msk [vmem:[#allocation2 + $0x149] sm:$0x1] %vm2115, 0.0
        %2148 = vst.msk [vmem:[#allocation2 + $0x161] sm:$0x1] %vm2115, 0.0
        %2149 = vst.msk [vmem:[#allocation2 + $0x179] sm:$0x1] %vm2115, 0.0
        %2150 = vst.msk [vmem:[#allocation2 + $0x191] sm:$0x1] %vm2115, 0.0
        %2151 = vst.msk [vmem:[#allocation2 + $0x1a9] sm:$0x1] %vm2115, 0.0
        %s2152 = scalar_lea.vmem [#allocation2], 24
        %2153 = vst.msk [vmem:[%s2152 + $0x1] sm:$0xff] %vm1380, %v2075
        %2154 = vst.msk [vmem:[%s2152 + $0x9] sm:$0xff] %vm1380, %v2076
        %2155 = vst.msk [vmem:[%s2152 + $0x19] sm:$0xff] %vm1380, %v2077
        %2156 = vst.msk [vmem:[%s2152 + $0x21] sm:$0xff] %vm1380, %v2078
        %2157 = vst.msk [vmem:[%s2152 + $0x31] sm:$0xff] %vm1380, %v2079
        %2158 = vst.msk [vmem:[%s2152 + $0x39] sm:$0xff] %vm1380, %v2080
        %2159 = vst.msk [vmem:[%s2152 + $0x49] sm:$0xff] %vm1380, %v2081
        %2160 = vst.msk [vmem:[%s2152 + $0x51] sm:$0xff] %vm1380, %v2082
        %2161 = vst.msk [vmem:[%s2152 + $0x61] sm:$0xff] %vm1380, %v2083
        %2162 = vst.msk [vmem:[%s2152 + $0x69] sm:$0xff] %vm1380, %v2084
        %2163 = vst.msk [vmem:[%s2152 + $0x79] sm:$0xff] %vm1380, %v2085
        %2164 = vst.msk [vmem:[%s2152 + $0x81] sm:$0xff] %vm1380, %v2086
        %2165 = vst.msk [vmem:[%s2152 + $0x91] sm:$0xff] %vm1380, %v2087
        %2166 = vst.msk [vmem:[%s2152 + $0x99] sm:$0xff] %vm1380, %v2088
        %2167 = vst.msk [vmem:[%s2152 + $0xa9] sm:$0xff] %vm1380, %v2089
        %2168 = vst.msk [vmem:[%s2152 + $0xb1] sm:$0xff] %vm1380, %v2090
        %2169 = vst.msk [vmem:[%s2152 + $0xc1] sm:$0xff] %vm1380, %v2091
        %2170 = vst.msk [vmem:[%s2152 + $0xc9] sm:$0xff] %vm1380, %v2092
        %2171 = vst.msk [vmem:[%s2152 + $0xd9] sm:$0xff] %vm1380, %v2093
        %2172 = vst.msk [vmem:[%s2152 + $0xe1] sm:$0xff] %vm1380, %v2094
        %2173 = vst.msk [vmem:[%s2152 + $0xf1] sm:$0xff] %vm1380, %v2095
        %2174 = vst.msk [vmem:[%s2152 + $0xf9] sm:$0xff] %vm1380, %v2096
        %2175 = vst.msk [vmem:[%s2152 + $0x109] sm:$0xff] %vm1380, %v2097
        %2176 = vst.msk [vmem:[%s2152 + $0x111] sm:$0xff] %vm1380, %v2098
        %2177 = vst.msk [vmem:[%s2152 + $0x121] sm:$0xff] %vm1380, %v2099
        %2178 = vst.msk [vmem:[%s2152 + $0x129] sm:$0xff] %vm1380, %v2100
        %2179 = vst.msk [vmem:[%s2152 + $0x139] sm:$0xff] %vm1380, %v2101
        %2180 = vst.msk [vmem:[%s2152 + $0x141] sm:$0xff] %vm1380, %v2102
        %2181 = vst.msk [vmem:[%s2152 + $0x151] sm:$0xff] %vm1380, %v2103
        %2182 = vst.msk [vmem:[%s2152 + $0x159] sm:$0xff] %vm1380, %v2104
        %2183 = vst.msk [vmem:[%s2152 + $0x169] sm:$0xff] %vm1380, %v2105
        %2184 = vst.msk [vmem:[%s2152 + $0x171] sm:$0xff] %vm1380, %v2106
        %v2185 = vld [vmem:[#allocation2] sm:$0xff]
        %v2186 = vld [vmem:[#allocation2 + $0x8] sm:$0xff]
        %v2187 = vld [vmem:[#allocation2 + $0x10] sm:$0x3]
        %v2188 = vld [vmem:[#allocation2 + $0x18] sm:$0xff]
        %v2189 = vld [vmem:[#allocation2 + $0x20] sm:$0xff]
        %v2190 = vld [vmem:[#allocation2 + $0x28] sm:$0x3]
        %v2191 = vld [vmem:[#allocation2 + $0x30] sm:$0xff]
        %v2192 = vld [vmem:[#allocation2 + $0x38] sm:$0xff]
        %v2193 = vld [vmem:[#allocation2 + $0x40] sm:$0x3]
        %v2194 = vld [vmem:[#allocation2 + $0x48] sm:$0xff]
        %v2195 = vld [vmem:[#allocation2 + $0x50] sm:$0xff]
        %v2196 = vld [vmem:[#allocation2 + $0x58] sm:$0x3]
        %v2197 = vld [vmem:[#allocation2 + $0x60] sm:$0xff]
        %v2198 = vld [vmem:[#allocation2 + $0x68] sm:$0xff]
        %v2199 = vld [vmem:[#allocation2 + $0x70] sm:$0x3]
        %v2200 = vld [vmem:[#allocation2 + $0x78] sm:$0xff]
        %v2201 = vld [vmem:[#allocation2 + $0x80] sm:$0xff]
        %v2202 = vld [vmem:[#allocation2 + $0x88] sm:$0x3]
        %v2203 = vld [vmem:[#allocation2 + $0x90] sm:$0xff]
        %v2204 = vld [vmem:[#allocation2 + $0x98] sm:$0xff]
        %v2205 = vld [vmem:[#allocation2 + $0xa0] sm:$0x3]
        %v2206 = vld [vmem:[#allocation2 + $0xa8] sm:$0xff]
        %v2207 = vld [vmem:[#allocation2 + $0xb0] sm:$0xff]
        %v2208 = vld [vmem:[#allocation2 + $0xb8] sm:$0x3]
        %v2209 = vld [vmem:[#allocation2 + $0xc0] sm:$0xff]
        %v2210 = vld [vmem:[#allocation2 + $0xc8] sm:$0xff]
        %v2211 = vld [vmem:[#allocation2 + $0xd0] sm:$0x3]
        %v2212 = vld [vmem:[#allocation2 + $0xd8] sm:$0xff]
        %v2213 = vld [vmem:[#allocation2 + $0xe0] sm:$0xff]
        %v2214 = vld [vmem:[#allocation2 + $0xe8] sm:$0x3]
        %v2215 = vld [vmem:[#allocation2 + $0xf0] sm:$0xff]
        %v2216 = vld [vmem:[#allocation2 + $0xf8] sm:$0xff]
        %v2217 = vld [vmem:[#allocation2 + $0x100] sm:$0x3]
        %v2218 = vld [vmem:[#allocation2 + $0x108] sm:$0xff]
        %v2219 = vld [vmem:[#allocation2 + $0x110] sm:$0xff]
        %v2220 = vld [vmem:[#allocation2 + $0x118] sm:$0x3]
        %v2221 = vld [vmem:[#allocation2 + $0x120] sm:$0xff]
        %v2222 = vld [vmem:[#allocation2 + $0x128] sm:$0xff]
        %v2223 = vld [vmem:[#allocation2 + $0x130] sm:$0x3]
        %v2224 = vld [vmem:[#allocation2 + $0x138] sm:$0xff]
        %v2225 = vld [vmem:[#allocation2 + $0x140] sm:$0xff]
        %v2226 = vld [vmem:[#allocation2 + $0x148] sm:$0x3]
        %v2227 = vld [vmem:[#allocation2 + $0x150] sm:$0xff]
        %v2228 = vld [vmem:[#allocation2 + $0x158] sm:$0xff]
        %v2229 = vld [vmem:[#allocation2 + $0x160] sm:$0x3]
        %v2230 = vld [vmem:[#allocation2 + $0x168] sm:$0xff]
        %v2231 = vld [vmem:[#allocation2 + $0x170] sm:$0xff]
        %v2232 = vld [vmem:[#allocation2 + $0x178] sm:$0x3]
        %v2233 = vld [vmem:[#allocation2 + $0x180] sm:$0xff]
        %v2234 = vld [vmem:[#allocation2 + $0x188] sm:$0xff]
        %v2235 = vld [vmem:[#allocation2 + $0x190] sm:$0x3]
        %v2236 = vld [vmem:[#allocation2 + $0x198] sm:$0xff]
        %v2237 = vld [vmem:[#allocation2 + $0x1a0] sm:$0xff]
        %v2238 = vld [vmem:[#allocation2 + $0x1a8] sm:$0x3]
        %v2287 = vrot.slane %v2185, 1
        %v2288 = vrot.slane %v2186, 1
        %v2289 = vsel %vm325, %v2287, %v2288
        %v2290 = vrot.slane %v2187, 1
        %v2291 = vsel %vm325, %v2288, %v2290
        %v2292 = vrot.slane %v2188, 1
        %v2293 = vrot.slane %v2189, 1
        %v2294 = vsel %vm325, %v2292, %v2293
        %v2295 = vrot.slane %v2190, 1
        %v2296 = vsel %vm325, %v2293, %v2295
        %v2297 = vrot.slane %v2191, 1
        %v2298 = vrot.slane %v2192, 1
        %v2299 = vsel %vm325, %v2297, %v2298
        %v2300 = vrot.slane %v2193, 1
        %v2301 = vsel %vm325, %v2298, %v2300
        %v2302 = vrot.slane %v2194, 1
        %v2303 = vrot.slane %v2195, 1
        %v2304 = vsel %vm325, %v2302, %v2303
        %v2305 = vrot.slane %v2196, 1
        %v2306 = vsel %vm325, %v2303, %v2305
        %v2307 = vrot.slane %v2197, 1
        %v2308 = vrot.slane %v2198, 1
        %v2309 = vsel %vm325, %v2307, %v2308
        %v2310 = vrot.slane %v2199, 1
        %v2311 = vsel %vm325, %v2308, %v2310
        %v2312 = vrot.slane %v2200, 1
        %v2313 = vrot.slane %v2201, 1
        %v2314 = vsel %vm325, %v2312, %v2313
        %v2315 = vrot.slane %v2202, 1
        %v2316 = vsel %vm325, %v2313, %v2315
        %v2317 = vrot.slane %v2203, 1
        %v2318 = vrot.slane %v2204, 1
        %v2319 = vsel %vm325, %v2317, %v2318
        %v2320 = vrot.slane %v2205, 1
        %v2321 = vsel %vm325, %v2318, %v2320
        %v2322 = vrot.slane %v2206, 1
        %v2323 = vrot.slane %v2207, 1
        %v2324 = vsel %vm325, %v2322, %v2323
        %v2325 = vrot.slane %v2208, 1
        %v2326 = vsel %vm325, %v2323, %v2325
        %v2327 = vrot.slane %v2209, 1
        %v2328 = vrot.slane %v2210, 1
        %v2329 = vsel %vm325, %v2327, %v2328
        %v2330 = vrot.slane %v2211, 1
        %v2331 = vsel %vm325, %v2328, %v2330
        %v2332 = vrot.slane %v2212, 1
        %v2333 = vrot.slane %v2213, 1
        %v2334 = vsel %vm325, %v2332, %v2333
        %v2335 = vrot.slane %v2214, 1
        %v2336 = vsel %vm325, %v2333, %v2335
        %v2337 = vrot.slane %v2215, 1
        %v2338 = vrot.slane %v2216, 1
        %v2339 = vsel %vm325, %v2337, %v2338
        %v2340 = vrot.slane %v2217, 1
        %v2341 = vsel %vm325, %v2338, %v2340
        %v2342 = vrot.slane %v2218, 1
        %v2343 = vrot.slane %v2219, 1
        %v2344 = vsel %vm325, %v2342, %v2343
        %v2345 = vrot.slane %v2220, 1
        %v2346 = vsel %vm325, %v2343, %v2345
        %v2347 = vrot.slane %v2221, 1
        %v2348 = vrot.slane %v2222, 1
        %v2349 = vsel %vm325, %v2347, %v2348
        %v2350 = vrot.slane %v2223, 1
        %v2351 = vsel %vm325, %v2348, %v2350
        %v2352 = vrot.slane %v2224, 1
        %v2353 = vrot.slane %v2225, 1
        %v2354 = vsel %vm325, %v2352, %v2353
        %v2355 = vrot.slane %v2226, 1
        %v2356 = vsel %vm325, %v2353, %v2355
        %v2357 = vrot.slane %v2227, 1
        %v2358 = vrot.slane %v2228, 1
        %v2359 = vsel %vm325, %v2357, %v2358
        %v2360 = vrot.slane %v2229, 1
        %v2361 = vsel %vm325, %v2358, %v2360
        %v2362 = vrot.slane %v2230, 1
        %v2363 = vrot.slane %v2231, 1
        %v2364 = vsel %vm325, %v2362, %v2363
        %v2365 = vrot.slane %v2232, 1
        %v2366 = vsel %vm325, %v2363, %v2365
        %2367 = vrot.lane.b32.xlu0 %v2289, 16
        %v2368 = vpop.permute.xlu0 %2367
        %2369 = vrot.lane.b32.xlu0 %v2291, 16
        %v2370 = vpop.permute.xlu0 %2369
        %2371 = vrot.lane.b32.xlu0 %v2294, 16
        %v2372 = vpop.permute.xlu0 %2371
        %2373 = vrot.lane.b32.xlu0 %v2296, 16
        %v2374 = vpop.permute.xlu0 %2373
        %2375 = vrot.lane.b32.xlu0 %v2299, 16
        %v2376 = vpop.permute.xlu0 %2375
        %2377 = vrot.lane.b32.xlu0 %v2301, 16
        %v2378 = vpop.permute.xlu0 %2377
        %2379 = vrot.lane.b32.xlu0 %v2304, 16
        %v2380 = vpop.permute.xlu0 %2379
        %2381 = vrot.lane.b32.xlu0 %v2306, 16
        %v2382 = vpop.permute.xlu0 %2381
        %2383 = vrot.lane.b32.xlu0 %v2309, 16
        %v2384 = vpop.permute.xlu0 %2383
        %2385 = vrot.lane.b32.xlu0 %v2311, 16
        %v2386 = vpop.permute.xlu0 %2385
        %2387 = vrot.lane.b32.xlu0 %v2314, 16
        %v2388 = vpop.permute.xlu0 %2387
        %2389 = vrot.lane.b32.xlu0 %v2316, 16
        %v2390 = vpop.permute.xlu0 %2389
        %2391 = vrot.lane.b32.xlu0 %v2319, 16
        %v2392 = vpop.permute.xlu0 %2391
        %2393 = vrot.lane.b32.xlu0 %v2321, 16
        %v2394 = vpop.permute.xlu0 %2393
        %2395 = vrot.lane.b32.xlu0 %v2324, 16
        %v2396 = vpop.permute.xlu0 %2395
        %2397 = vrot.lane.b32.xlu0 %v2326, 16
        %v2398 = vpop.permute.xlu0 %2397
        %2399 = vrot.lane.b32.xlu0 %v2329, 16
        %v2400 = vpop.permute.xlu0 %2399
        %2401 = vrot.lane.b32.xlu0 %v2331, 16
        %v2402 = vpop.permute.xlu0 %2401
        %2403 = vrot.lane.b32.xlu0 %v2334, 16
        %v2404 = vpop.permute.xlu0 %2403
        %2405 = vrot.lane.b32.xlu0 %v2336, 16
        %v2406 = vpop.permute.xlu0 %2405
        %2407 = vrot.lane.b32.xlu0 %v2339, 16
        %v2408 = vpop.permute.xlu0 %2407
        %2409 = vrot.lane.b32.xlu0 %v2341, 16
        %v2410 = vpop.permute.xlu0 %2409
        %2411 = vrot.lane.b32.xlu0 %v2344, 16
        %v2412 = vpop.permute.xlu0 %2411
        %2413 = vrot.lane.b32.xlu0 %v2346, 16
        %v2414 = vpop.permute.xlu0 %2413
        %2415 = vrot.lane.b32.xlu0 %v2349, 16
        %v2416 = vpop.permute.xlu0 %2415
        %2417 = vrot.lane.b32.xlu0 %v2351, 16
        %v2418 = vpop.permute.xlu0 %2417
        %2419 = vrot.lane.b32.xlu0 %v2354, 16
        %v2420 = vpop.permute.xlu0 %2419
        %2421 = vrot.lane.b32.xlu0 %v2356, 16
        %v2422 = vpop.permute.xlu0 %2421
        %2423 = vrot.lane.b32.xlu0 %v2359, 16
        %v2424 = vpop.permute.xlu0 %2423
        %2425 = vrot.lane.b32.xlu0 %v2361, 16
        %v2426 = vpop.permute.xlu0 %2425
        %2427 = vrot.lane.b32.xlu0 %v2364, 16
        %v2428 = vpop.permute.xlu0 %2427
        %2429 = vrot.lane.b32.xlu0 %v2366, 16
        %v2430 = vpop.permute.xlu0 %2429
        %v2463 = vrot.slane %v2185, 2
        %v2464 = vrot.slane %v2186, 2
        %v2465 = vsel %vm502, %v2463, %v2464
        %v2466 = vrot.slane %v2187, 2
        %v2467 = vsel %vm502, %v2464, %v2466
        %v2468 = vrot.slane %v2188, 2
        %v2469 = vrot.slane %v2189, 2
        %v2470 = vsel %vm502, %v2468, %v2469
        %v2471 = vrot.slane %v2190, 2
        %v2472 = vsel %vm502, %v2469, %v2471
        %v2473 = vrot.slane %v2191, 2
        %v2474 = vrot.slane %v2192, 2
        %v2475 = vsel %vm502, %v2473, %v2474
        %v2476 = vrot.slane %v2193, 2
        %v2477 = vsel %vm502, %v2474, %v2476
        %v2478 = vrot.slane %v2194, 2
        %v2479 = vrot.slane %v2195, 2
        %v2480 = vsel %vm502, %v2478, %v2479
        %v2481 = vrot.slane %v2196, 2
        %v2482 = vsel %vm502, %v2479, %v2481
        %v2483 = vrot.slane %v2197, 2
        %v2484 = vrot.slane %v2198, 2
        %v2485 = vsel %vm502, %v2483, %v2484
        %v2486 = vrot.slane %v2199, 2
        %v2487 = vsel %vm502, %v2484, %v2486
        %v2488 = vrot.slane %v2200, 2
        %v2489 = vrot.slane %v2201, 2
        %v2490 = vsel %vm502, %v2488, %v2489
        %v2491 = vrot.slane %v2202, 2
        %v2492 = vsel %vm502, %v2489, %v2491
        %v2493 = vrot.slane %v2203, 2
        %v2494 = vrot.slane %v2204, 2
        %v2495 = vsel %vm502, %v2493, %v2494
        %v2496 = vrot.slane %v2205, 2
        %v2497 = vsel %vm502, %v2494, %v2496
        %v2498 = vrot.slane %v2206, 2
        %v2499 = vrot.slane %v2207, 2
        %v2500 = vsel %vm502, %v2498, %v2499
        %v2501 = vrot.slane %v2208, 2
        %v2502 = vsel %vm502, %v2499, %v2501
        %v2503 = vrot.slane %v2209, 2
        %v2504 = vrot.slane %v2210, 2
        %v2505 = vsel %vm502, %v2503, %v2504
        %v2506 = vrot.slane %v2211, 2
        %v2507 = vsel %vm502, %v2504, %v2506
        %v2508 = vrot.slane %v2212, 2
        %v2509 = vrot.slane %v2213, 2
        %v2510 = vsel %vm502, %v2508, %v2509
        %v2511 = vrot.slane %v2214, 2
        %v2512 = vsel %vm502, %v2509, %v2511
        %v2513 = vrot.slane %v2215, 2
        %v2514 = vrot.slane %v2216, 2
        %v2515 = vsel %vm502, %v2513, %v2514
        %v2516 = vrot.slane %v2217, 2
        %v2517 = vsel %vm502, %v2514, %v2516
        %v2518 = vrot.slane %v2218, 2
        %v2519 = vrot.slane %v2219, 2
        %v2520 = vsel %vm502, %v2518, %v2519
        %v2521 = vrot.slane %v2220, 2
        %v2522 = vsel %vm502, %v2519, %v2521
        %v2523 = vrot.slane %v2221, 2
        %v2524 = vrot.slane %v2222, 2
        %v2525 = vsel %vm502, %v2523, %v2524
        %v2526 = vrot.slane %v2223, 2
        %v2527 = vsel %vm502, %v2524, %v2526
        %v2528 = vrot.slane %v2224, 2
        %v2529 = vrot.slane %v2225, 2
        %v2530 = vsel %vm502, %v2528, %v2529
        %v2531 = vrot.slane %v2226, 2
        %v2532 = vsel %vm502, %v2529, %v2531
        %v2533 = vrot.slane %v2227, 2
        %v2534 = vrot.slane %v2228, 2
        %v2535 = vsel %vm502, %v2533, %v2534
        %v2536 = vrot.slane %v2229, 2
        %v2537 = vsel %vm502, %v2534, %v2536
        %v2538 = vrot.slane %v2230, 2
        %v2539 = vrot.slane %v2231, 2
        %v2540 = vsel %vm502, %v2538, %v2539
        %v2541 = vrot.slane %v2232, 2
        %v2542 = vsel %vm502, %v2539, %v2541
        %2543 = vrot.lane.b32.xlu0 %v2465, 32
        %v2544 = vpop.permute.xlu0 %2543
        %2545 = vrot.lane.b32.xlu0 %v2467, 32
        %v2546 = vpop.permute.xlu0 %2545
        %2547 = vrot.lane.b32.xlu0 %v2470, 32
        %v2548 = vpop.permute.xlu0 %2547
        %2549 = vrot.lane.b32.xlu0 %v2472, 32
        %v2550 = vpop.permute.xlu0 %2549
        %2551 = vrot.lane.b32.xlu0 %v2475, 32
        %v2552 = vpop.permute.xlu0 %2551
        %2553 = vrot.lane.b32.xlu0 %v2477, 32
        %v2554 = vpop.permute.xlu0 %2553
        %2555 = vrot.lane.b32.xlu0 %v2480, 32
        %v2556 = vpop.permute.xlu0 %2555
        %2557 = vrot.lane.b32.xlu0 %v2482, 32
        %v2558 = vpop.permute.xlu0 %2557
        %2559 = vrot.lane.b32.xlu0 %v2485, 32
        %v2560 = vpop.permute.xlu0 %2559
        %2561 = vrot.lane.b32.xlu0 %v2487, 32
        %v2562 = vpop.permute.xlu0 %2561
        %2563 = vrot.lane.b32.xlu0 %v2490, 32
        %v2564 = vpop.permute.xlu0 %2563
        %2565 = vrot.lane.b32.xlu0 %v2492, 32
        %v2566 = vpop.permute.xlu0 %2565
        %2567 = vrot.lane.b32.xlu0 %v2495, 32
        %v2568 = vpop.permute.xlu0 %2567
        %2569 = vrot.lane.b32.xlu0 %v2497, 32
        %v2570 = vpop.permute.xlu0 %2569
        %2571 = vrot.lane.b32.xlu0 %v2500, 32
        %v2572 = vpop.permute.xlu0 %2571
        %2573 = vrot.lane.b32.xlu0 %v2502, 32
        %v2574 = vpop.permute.xlu0 %2573
        %2575 = vrot.lane.b32.xlu0 %v2505, 32
        %v2576 = vpop.permute.xlu0 %2575
        %2577 = vrot.lane.b32.xlu0 %v2507, 32
        %v2578 = vpop.permute.xlu0 %2577
        %2579 = vrot.lane.b32.xlu0 %v2510, 32
        %v2580 = vpop.permute.xlu0 %2579
        %2581 = vrot.lane.b32.xlu0 %v2512, 32
        %v2582 = vpop.permute.xlu0 %2581
        %2583 = vrot.lane.b32.xlu0 %v2515, 32
        %v2584 = vpop.permute.xlu0 %2583
        %2585 = vrot.lane.b32.xlu0 %v2517, 32
        %v2586 = vpop.permute.xlu0 %2585
        %2587 = vrot.lane.b32.xlu0 %v2520, 32
        %v2588 = vpop.permute.xlu0 %2587
        %2589 = vrot.lane.b32.xlu0 %v2522, 32
        %v2590 = vpop.permute.xlu0 %2589
        %2591 = vrot.lane.b32.xlu0 %v2525, 32
        %v2592 = vpop.permute.xlu0 %2591
        %2593 = vrot.lane.b32.xlu0 %v2527, 32
        %v2594 = vpop.permute.xlu0 %2593
        %2595 = vrot.lane.b32.xlu0 %v2530, 32
        %v2596 = vpop.permute.xlu0 %2595
        %2597 = vrot.lane.b32.xlu0 %v2532, 32
        %v2598 = vpop.permute.xlu0 %2597
        %2599 = vrot.lane.b32.xlu0 %v2535, 32
        %v2600 = vpop.permute.xlu0 %2599
        %2601 = vrot.lane.b32.xlu0 %v2537, 32
        %v2602 = vpop.permute.xlu0 %2601
        %2603 = vrot.lane.b32.xlu0 %v2540, 32
        %v2604 = vpop.permute.xlu0 %2603
        %2605 = vrot.lane.b32.xlu0 %v2542, 32
        %v2606 = vpop.permute.xlu0 %2605
        %2641 = vrot.lane.b32.xlu0 %v2188, 48
        %v2642 = vpop.permute.xlu0 %2641
        %2643 = vrot.lane.b32.xlu0 %v2189, 48
        %v2644 = vpop.permute.xlu0 %2643
        %2645 = vrot.lane.b32.xlu0 %v2191, 48
        %v2646 = vpop.permute.xlu0 %2645
        %2647 = vrot.lane.b32.xlu0 %v2192, 48
        %v2648 = vpop.permute.xlu0 %2647
        %2649 = vrot.lane.b32.xlu0 %v2194, 48
        %v2650 = vpop.permute.xlu0 %2649
        %2651 = vrot.lane.b32.xlu0 %v2195, 48
        %v2652 = vpop.permute.xlu0 %2651
        %2653 = vrot.lane.b32.xlu0 %v2197, 48
        %v2654 = vpop.permute.xlu0 %2653
        %2655 = vrot.lane.b32.xlu0 %v2198, 48
        %v2656 = vpop.permute.xlu0 %2655
        %2657 = vrot.lane.b32.xlu0 %v2200, 48
        %v2658 = vpop.permute.xlu0 %2657
        %2659 = vrot.lane.b32.xlu0 %v2201, 48
        %v2660 = vpop.permute.xlu0 %2659
        %2661 = vrot.lane.b32.xlu0 %v2203, 48
        %v2662 = vpop.permute.xlu0 %2661
        %2663 = vrot.lane.b32.xlu0 %v2204, 48
        %v2664 = vpop.permute.xlu0 %2663
        %2665 = vrot.lane.b32.xlu0 %v2206, 48
        %v2666 = vpop.permute.xlu0 %2665
        %2667 = vrot.lane.b32.xlu0 %v2207, 48
        %v2668 = vpop.permute.xlu0 %2667
        %2669 = vrot.lane.b32.xlu0 %v2209, 48
        %v2670 = vpop.permute.xlu0 %2669
        %2671 = vrot.lane.b32.xlu0 %v2210, 48
        %v2672 = vpop.permute.xlu0 %2671
        %2673 = vrot.lane.b32.xlu0 %v2212, 48
        %v2674 = vpop.permute.xlu0 %2673
        %2675 = vrot.lane.b32.xlu0 %v2213, 48
        %v2676 = vpop.permute.xlu0 %2675
        %2677 = vrot.lane.b32.xlu0 %v2215, 48
        %v2678 = vpop.permute.xlu0 %2677
        %2679 = vrot.lane.b32.xlu0 %v2216, 48
        %v2680 = vpop.permute.xlu0 %2679
        %2681 = vrot.lane.b32.xlu0 %v2218, 48
        %v2682 = vpop.permute.xlu0 %2681
        %2683 = vrot.lane.b32.xlu0 %v2219, 48
        %v2684 = vpop.permute.xlu0 %2683
        %2685 = vrot.lane.b32.xlu0 %v2221, 48
        %v2686 = vpop.permute.xlu0 %2685
        %2687 = vrot.lane.b32.xlu0 %v2222, 48
        %v2688 = vpop.permute.xlu0 %2687
        %2689 = vrot.lane.b32.xlu0 %v2224, 48
        %v2690 = vpop.permute.xlu0 %2689
        %2691 = vrot.lane.b32.xlu0 %v2225, 48
        %v2692 = vpop.permute.xlu0 %2691
        %2693 = vrot.lane.b32.xlu0 %v2227, 48
        %v2694 = vpop.permute.xlu0 %2693
        %2695 = vrot.lane.b32.xlu0 %v2228, 48
        %v2696 = vpop.permute.xlu0 %2695
        %2697 = vrot.lane.b32.xlu0 %v2230, 48
        %v2698 = vpop.permute.xlu0 %2697
        %2699 = vrot.lane.b32.xlu0 %v2231, 48
        %v2700 = vpop.permute.xlu0 %2699
        %2701 = vrot.lane.b32.xlu0 %v2233, 48
        %v2702 = vpop.permute.xlu0 %2701
        %2703 = vrot.lane.b32.xlu0 %v2234, 48
        %v2704 = vpop.permute.xlu0 %2703
        %v2738 = vrot.slane %v2233, 1
        %v2739 = vrot.slane %v2234, 1
        %v2740 = vsel %vm325, %v2738, %v2739
        %v2741 = vrot.slane %v2235, 1
        %v2742 = vsel %vm325, %v2739, %v2741
        %2743 = vrot.lane.b32.xlu0 %v2294, 64
        %v2744 = vpop.permute.xlu0 %2743
        %2745 = vrot.lane.b32.xlu0 %v2296, 64
        %v2746 = vpop.permute.xlu0 %2745
        %2747 = vrot.lane.b32.xlu0 %v2299, 64
        %v2748 = vpop.permute.xlu0 %2747
        %2749 = vrot.lane.b32.xlu0 %v2301, 64
        %v2750 = vpop.permute.xlu0 %2749
        %2751 = vrot.lane.b32.xlu0 %v2304, 64
        %v2752 = vpop.permute.xlu0 %2751
        %2753 = vrot.lane.b32.xlu0 %v2306, 64
        %v2754 = vpop.permute.xlu0 %2753
        %2755 = vrot.lane.b32.xlu0 %v2309, 64
        %v2756 = vpop.permute.xlu0 %2755
        %2757 = vrot.lane.b32.xlu0 %v2311, 64
        %v2758 = vpop.permute.xlu0 %2757
        %2759 = vrot.lane.b32.xlu0 %v2314, 64
        %v2760 = vpop.permute.xlu0 %2759
        %2761 = vrot.lane.b32.xlu0 %v2316, 64
        %v2762 = vpop.permute.xlu0 %2761
        %2763 = vrot.lane.b32.xlu0 %v2319, 64
        %v2764 = vpop.permute.xlu0 %2763
        %2765 = vrot.lane.b32.xlu0 %v2321, 64
        %v2766 = vpop.permute.xlu0 %2765
        %2767 = vrot.lane.b32.xlu0 %v2324, 64
        %v2768 = vpop.permute.xlu0 %2767
        %2769 = vrot.lane.b32.xlu0 %v2326, 64
        %v2770 = vpop.permute.xlu0 %2769
        %2771 = vrot.lane.b32.xlu0 %v2329, 64
        %v2772 = vpop.permute.xlu0 %2771
        %2773 = vrot.lane.b32.xlu0 %v2331, 64
        %v2774 = vpop.permute.xlu0 %2773
        %2775 = vrot.lane.b32.xlu0 %v2334, 64
        %v2776 = vpop.permute.xlu0 %2775
        %2777 = vrot.lane.b32.xlu0 %v2336, 64
        %v2778 = vpop.permute.xlu0 %2777
        %2779 = vrot.lane.b32.xlu0 %v2339, 64
        %v2780 = vpop.permute.xlu0 %2779
        %2781 = vrot.lane.b32.xlu0 %v2341, 64
        %v2782 = vpop.permute.xlu0 %2781
        %2783 = vrot.lane.b32.xlu0 %v2344, 64
        %v2784 = vpop.permute.xlu0 %2783
        %2785 = vrot.lane.b32.xlu0 %v2346, 64
        %v2786 = vpop.permute.xlu0 %2785
        %2787 = vrot.lane.b32.xlu0 %v2349, 64
        %v2788 = vpop.permute.xlu0 %2787
        %2789 = vrot.lane.b32.xlu0 %v2351, 64
        %v2790 = vpop.permute.xlu0 %2789
        %2791 = vrot.lane.b32.xlu0 %v2354, 64
        %v2792 = vpop.permute.xlu0 %2791
        %2793 = vrot.lane.b32.xlu0 %v2356, 64
        %v2794 = vpop.permute.xlu0 %2793
        %2795 = vrot.lane.b32.xlu0 %v2359, 64
        %v2796 = vpop.permute.xlu0 %2795
        %2797 = vrot.lane.b32.xlu0 %v2361, 64
        %v2798 = vpop.permute.xlu0 %2797
        %2799 = vrot.lane.b32.xlu0 %v2364, 64
        %v2800 = vpop.permute.xlu0 %2799
        %2801 = vrot.lane.b32.xlu0 %v2366, 64
        %v2802 = vpop.permute.xlu0 %2801
        %2803 = vrot.lane.b32.xlu0 %v2740, 64
        %v2804 = vpop.permute.xlu0 %2803
        %2805 = vrot.lane.b32.xlu0 %v2742, 64
        %v2806 = vpop.permute.xlu0 %2805
        %v2839 = vrot.slane %v2233, 2
        %v2840 = vrot.slane %v2234, 2
        %v2841 = vsel %vm502, %v2839, %v2840
        %v2842 = vrot.slane %v2235, 2
        %v2843 = vsel %vm502, %v2840, %v2842
        %2844 = vrot.lane.b32.xlu0 %v2470, 80
        %v2845 = vpop.permute.xlu0 %2844
        %2846 = vrot.lane.b32.xlu0 %v2472, 80
        %v2847 = vpop.permute.xlu0 %2846
        %2848 = vrot.lane.b32.xlu0 %v2475, 80
        %v2849 = vpop.permute.xlu0 %2848
        %2850 = vrot.lane.b32.xlu0 %v2477, 80
        %v2851 = vpop.permute.xlu0 %2850
        %2852 = vrot.lane.b32.xlu0 %v2480, 80
        %v2853 = vpop.permute.xlu0 %2852
        %2854 = vrot.lane.b32.xlu0 %v2482, 80
        %v2855 = vpop.permute.xlu0 %2854
        %2856 = vrot.lane.b32.xlu0 %v2485, 80
        %v2857 = vpop.permute.xlu0 %2856
        %2858 = vrot.lane.b32.xlu0 %v2487, 80
        %v2859 = vpop.permute.xlu0 %2858
        %2860 = vrot.lane.b32.xlu0 %v2490, 80
        %v2861 = vpop.permute.xlu0 %2860
        %2862 = vrot.lane.b32.xlu0 %v2492, 80
        %v2863 = vpop.permute.xlu0 %2862
        %2864 = vrot.lane.b32.xlu0 %v2495, 80
        %v2865 = vpop.permute.xlu0 %2864
        %2866 = vrot.lane.b32.xlu0 %v2497, 80
        %v2867 = vpop.permute.xlu0 %2866
        %2868 = vrot.lane.b32.xlu0 %v2500, 80
        %v2869 = vpop.permute.xlu0 %2868
        %2870 = vrot.lane.b32.xlu0 %v2502, 80
        %v2871 = vpop.permute.xlu0 %2870
        %2872 = vrot.lane.b32.xlu0 %v2505, 80
        %v2873 = vpop.permute.xlu0 %2872
        %2874 = vrot.lane.b32.xlu0 %v2507, 80
        %v2875 = vpop.permute.xlu0 %2874
        %2876 = vrot.lane.b32.xlu0 %v2510, 80
        %v2877 = vpop.permute.xlu0 %2876
        %2878 = vrot.lane.b32.xlu0 %v2512, 80
        %v2879 = vpop.permute.xlu0 %2878
        %2880 = vrot.lane.b32.xlu0 %v2515, 80
        %v2881 = vpop.permute.xlu0 %2880
        %2882 = vrot.lane.b32.xlu0 %v2517, 80
        %v2883 = vpop.permute.xlu0 %2882
        %2884 = vrot.lane.b32.xlu0 %v2520, 80
        %v2885 = vpop.permute.xlu0 %2884
        %2886 = vrot.lane.b32.xlu0 %v2522, 80
        %v2887 = vpop.permute.xlu0 %2886
        %2888 = vrot.lane.b32.xlu0 %v2525, 80
        %v2889 = vpop.permute.xlu0 %2888
        %2890 = vrot.lane.b32.xlu0 %v2527, 80
        %v2891 = vpop.permute.xlu0 %2890
        %2892 = vrot.lane.b32.xlu0 %v2530, 80
        %v2893 = vpop.permute.xlu0 %2892
        %2894 = vrot.lane.b32.xlu0 %v2532, 80
        %v2895 = vpop.permute.xlu0 %2894
        %2896 = vrot.lane.b32.xlu0 %v2535, 80
        %v2897 = vpop.permute.xlu0 %2896
        %2898 = vrot.lane.b32.xlu0 %v2537, 80
        %v2899 = vpop.permute.xlu0 %2898
        %2900 = vrot.lane.b32.xlu0 %v2540, 80
        %v2901 = vpop.permute.xlu0 %2900
        %2902 = vrot.lane.b32.xlu0 %v2542, 80
        %v2903 = vpop.permute.xlu0 %2902
        %2904 = vrot.lane.b32.xlu0 %v2841, 80
        %v2905 = vpop.permute.xlu0 %2904
        %2906 = vrot.lane.b32.xlu0 %v2843, 80
        %v2907 = vpop.permute.xlu0 %2906
        %2942 = vrot.lane.b32.xlu0 %v2191, 96
        %v2943 = vpop.permute.xlu0 %2942
        %2944 = vrot.lane.b32.xlu0 %v2192, 96
        %v2945 = vpop.permute.xlu0 %2944
        %2946 = vrot.lane.b32.xlu0 %v2194, 96
        %v2947 = vpop.permute.xlu0 %2946
        %2948 = vrot.lane.b32.xlu0 %v2195, 96
        %v2949 = vpop.permute.xlu0 %2948
        %2950 = vrot.lane.b32.xlu0 %v2197, 96
        %v2951 = vpop.permute.xlu0 %2950
        %2952 = vrot.lane.b32.xlu0 %v2198, 96
        %v2953 = vpop.permute.xlu0 %2952
        %2954 = vrot.lane.b32.xlu0 %v2200, 96
        %v2955 = vpop.permute.xlu0 %2954
        %2956 = vrot.lane.b32.xlu0 %v2201, 96
        %v2957 = vpop.permute.xlu0 %2956
        %2958 = vrot.lane.b32.xlu0 %v2203, 96
        %v2959 = vpop.permute.xlu0 %2958
        %2960 = vrot.lane.b32.xlu0 %v2204, 96
        %v2961 = vpop.permute.xlu0 %2960
        %2962 = vrot.lane.b32.xlu0 %v2206, 96
        %v2963 = vpop.permute.xlu0 %2962
        %2964 = vrot.lane.b32.xlu0 %v2207, 96
        %v2965 = vpop.permute.xlu0 %2964
        %2966 = vrot.lane.b32.xlu0 %v2209, 96
        %v2967 = vpop.permute.xlu0 %2966
        %2968 = vrot.lane.b32.xlu0 %v2210, 96
        %v2969 = vpop.permute.xlu0 %2968
        %2970 = vrot.lane.b32.xlu0 %v2212, 96
        %v2971 = vpop.permute.xlu0 %2970
        %2972 = vrot.lane.b32.xlu0 %v2213, 96
        %v2973 = vpop.permute.xlu0 %2972
        %2974 = vrot.lane.b32.xlu0 %v2215, 96
        %v2975 = vpop.permute.xlu0 %2974
        %2976 = vrot.lane.b32.xlu0 %v2216, 96
        %v2977 = vpop.permute.xlu0 %2976
        %2978 = vrot.lane.b32.xlu0 %v2218, 96
        %v2979 = vpop.permute.xlu0 %2978
        %2980 = vrot.lane.b32.xlu0 %v2219, 96
        %v2981 = vpop.permute.xlu0 %2980
        %2982 = vrot.lane.b32.xlu0 %v2221, 96
        %v2983 = vpop.permute.xlu0 %2982
        %2984 = vrot.lane.b32.xlu0 %v2222, 96
        %v2985 = vpop.permute.xlu0 %2984
        %2986 = vrot.lane.b32.xlu0 %v2224, 96
        %v2987 = vpop.permute.xlu0 %2986
        %2988 = vrot.lane.b32.xlu0 %v2225, 96
        %v2989 = vpop.permute.xlu0 %2988
        %2990 = vrot.lane.b32.xlu0 %v2227, 96
        %v2991 = vpop.permute.xlu0 %2990
        %2992 = vrot.lane.b32.xlu0 %v2228, 96
        %v2993 = vpop.permute.xlu0 %2992
        %2994 = vrot.lane.b32.xlu0 %v2230, 96
        %v2995 = vpop.permute.xlu0 %2994
        %2996 = vrot.lane.b32.xlu0 %v2231, 96
        %v2997 = vpop.permute.xlu0 %2996
        %2998 = vrot.lane.b32.xlu0 %v2233, 96
        %v2999 = vpop.permute.xlu0 %2998
        %3000 = vrot.lane.b32.xlu0 %v2234, 96
        %v3001 = vpop.permute.xlu0 %3000
        %3002 = vrot.lane.b32.xlu0 %v2236, 96
        %v3003 = vpop.permute.xlu0 %3002
        %3004 = vrot.lane.b32.xlu0 %v2237, 96
        %v3005 = vpop.permute.xlu0 %3004
        %v3039 = vrot.slane %v2236, 1
        %v3040 = vrot.slane %v2237, 1
        %v3041 = vsel %vm325, %v3039, %v3040
        %v3042 = vrot.slane %v2238, 1
        %v3043 = vsel %vm325, %v3040, %v3042
        %3044 = vrot.lane.b32.xlu0 %v2299, 112
        %v3045 = vpop.permute.xlu0 %3044
        %3046 = vrot.lane.b32.xlu0 %v2301, 112
        %v3047 = vpop.permute.xlu0 %3046
        %3048 = vrot.lane.b32.xlu0 %v2304, 112
        %v3049 = vpop.permute.xlu0 %3048
        %3050 = vrot.lane.b32.xlu0 %v2306, 112
        %v3051 = vpop.permute.xlu0 %3050
        %3052 = vrot.lane.b32.xlu0 %v2309, 112
        %v3053 = vpop.permute.xlu0 %3052
        %3054 = vrot.lane.b32.xlu0 %v2311, 112
        %v3055 = vpop.permute.xlu0 %3054
        %3056 = vrot.lane.b32.xlu0 %v2314, 112
        %v3057 = vpop.permute.xlu0 %3056
        %3058 = vrot.lane.b32.xlu0 %v2316, 112
        %v3059 = vpop.permute.xlu0 %3058
        %3060 = vrot.lane.b32.xlu0 %v2319, 112
        %v3061 = vpop.permute.xlu0 %3060
        %3062 = vrot.lane.b32.xlu0 %v2321, 112
        %v3063 = vpop.permute.xlu0 %3062
        %3064 = vrot.lane.b32.xlu0 %v2324, 112
        %v3065 = vpop.permute.xlu0 %3064
        %3066 = vrot.lane.b32.xlu0 %v2326, 112
        %v3067 = vpop.permute.xlu0 %3066
        %3068 = vrot.lane.b32.xlu0 %v2329, 112
        %v3069 = vpop.permute.xlu0 %3068
        %3070 = vrot.lane.b32.xlu0 %v2331, 112
        %v3071 = vpop.permute.xlu0 %3070
        %3072 = vrot.lane.b32.xlu0 %v2334, 112
        %v3073 = vpop.permute.xlu0 %3072
        %3074 = vrot.lane.b32.xlu0 %v2336, 112
        %v3075 = vpop.permute.xlu0 %3074
        %3076 = vrot.lane.b32.xlu0 %v2339, 112
        %v3077 = vpop.permute.xlu0 %3076
        %3078 = vrot.lane.b32.xlu0 %v2341, 112
        %v3079 = vpop.permute.xlu0 %3078
        %3080 = vrot.lane.b32.xlu0 %v2344, 112
        %v3081 = vpop.permute.xlu0 %3080
        %3082 = vrot.lane.b32.xlu0 %v2346, 112
        %v3083 = vpop.permute.xlu0 %3082
        %3084 = vrot.lane.b32.xlu0 %v2349, 112
        %v3085 = vpop.permute.xlu0 %3084
        %3086 = vrot.lane.b32.xlu0 %v2351, 112
        %v3087 = vpop.permute.xlu0 %3086
        %3088 = vrot.lane.b32.xlu0 %v2354, 112
        %v3089 = vpop.permute.xlu0 %3088
        %3090 = vrot.lane.b32.xlu0 %v2356, 112
        %v3091 = vpop.permute.xlu0 %3090
        %3092 = vrot.lane.b32.xlu0 %v2359, 112
        %v3093 = vpop.permute.xlu0 %3092
        %3094 = vrot.lane.b32.xlu0 %v2361, 112
        %v3095 = vpop.permute.xlu0 %3094
        %3096 = vrot.lane.b32.xlu0 %v2364, 112
        %v3097 = vpop.permute.xlu0 %3096
        %3098 = vrot.lane.b32.xlu0 %v2366, 112
        %v3099 = vpop.permute.xlu0 %3098
        %3100 = vrot.lane.b32.xlu0 %v2740, 112
        %v3101 = vpop.permute.xlu0 %3100
        %3102 = vrot.lane.b32.xlu0 %v2742, 112
        %v3103 = vpop.permute.xlu0 %3102
        %3104 = vrot.lane.b32.xlu0 %v3041, 112
        %v3105 = vpop.permute.xlu0 %3104
        %3106 = vrot.lane.b32.xlu0 %v3043, 112
        %v3107 = vpop.permute.xlu0 %3106
        %v3140 = vrot.slane %v2236, 2
        %v3141 = vrot.slane %v2237, 2
        %v3142 = vsel %vm502, %v3140, %v3141
        %v3143 = vrot.slane %v2238, 2
        %v3144 = vsel %vm502, %v3141, %v3143
        %v3145 = vsel %vm1380, %v2185, %v2368
        %v3146 = vsel %vm1380, %v2186, %v2370
        %v3147 = vsel %vm1380, %v2188, %v2372
        %v3148 = vsel %vm1380, %v2189, %v2374
        %v3149 = vsel %vm1380, %v2191, %v2376
        %v3150 = vsel %vm1380, %v2192, %v2378
        %v3151 = vsel %vm1380, %v2194, %v2380
        %v3152 = vsel %vm1380, %v2195, %v2382
        %v3153 = vsel %vm1380, %v2197, %v2384
        %v3154 = vsel %vm1380, %v2198, %v2386
        %v3155 = vsel %vm1380, %v2200, %v2388
        %v3156 = vsel %vm1380, %v2201, %v2390
        %v3157 = vsel %vm1380, %v2203, %v2392
        %v3158 = vsel %vm1380, %v2204, %v2394
        %v3159 = vsel %vm1380, %v2206, %v2396
        %v3160 = vsel %vm1380, %v2207, %v2398
        %v3161 = vsel %vm1380, %v2209, %v2400
        %v3162 = vsel %vm1380, %v2210, %v2402
        %v3163 = vsel %vm1380, %v2212, %v2404
        %v3164 = vsel %vm1380, %v2213, %v2406
        %v3165 = vsel %vm1380, %v2215, %v2408
        %v3166 = vsel %vm1380, %v2216, %v2410
        %v3167 = vsel %vm1380, %v2218, %v2412
        %v3168 = vsel %vm1380, %v2219, %v2414
        %v3169 = vsel %vm1380, %v2221, %v2416
        %v3170 = vsel %vm1380, %v2222, %v2418
        %v3171 = vsel %vm1380, %v2224, %v2420
        %v3172 = vsel %vm1380, %v2225, %v2422
        %v3173 = vsel %vm1380, %v2227, %v2424
        %v3174 = vsel %vm1380, %v2228, %v2426
        %v3175 = vsel %vm1380, %v2230, %v2428
        %v3176 = vsel %vm1380, %v2231, %v2430
        %v3177 = vsel %vm1512, %v3145, %v2544
        %v3178 = vsel %vm1512, %v3146, %v2546
        %v3179 = vsel %vm1512, %v3147, %v2548
        %v3180 = vsel %vm1512, %v3148, %v2550
        %v3181 = vsel %vm1512, %v3149, %v2552
        %v3182 = vsel %vm1512, %v3150, %v2554
        %v3183 = vsel %vm1512, %v3151, %v2556
        %v3184 = vsel %vm1512, %v3152, %v2558
        %v3185 = vsel %vm1512, %v3153, %v2560
        %v3186 = vsel %vm1512, %v3154, %v2562
        %v3187 = vsel %vm1512, %v3155, %v2564
        %v3188 = vsel %vm1512, %v3156, %v2566
        %v3189 = vsel %vm1512, %v3157, %v2568
        %v3190 = vsel %vm1512, %v3158, %v2570
        %v3191 = vsel %vm1512, %v3159, %v2572
        %v3192 = vsel %vm1512, %v3160, %v2574
        %v3193 = vsel %vm1512, %v3161, %v2576
        %v3194 = vsel %vm1512, %v3162, %v2578
        %v3195 = vsel %vm1512, %v3163, %v2580
        %v3196 = vsel %vm1512, %v3164, %v2582
        %v3197 = vsel %vm1512, %v3165, %v2584
        %v3198 = vsel %vm1512, %v3166, %v2586
        %v3199 = vsel %vm1512, %v3167, %v2588
        %v3200 = vsel %vm1512, %v3168, %v2590
        %v3201 = vsel %vm1512, %v3169, %v2592
        %v3202 = vsel %vm1512, %v3170, %v2594
        %v3203 = vsel %vm1512, %v3171, %v2596
        %v3204 = vsel %vm1512, %v3172, %v2598
        %v3205 = vsel %vm1512, %v3173, %v2600
        %v3206 = vsel %vm1512, %v3174, %v2602
        %v3207 = vsel %vm1512, %v3175, %v2604
        %v3208 = vsel %vm1512, %v3176, %v2606
        %vm3209 = vcmask 392192
        %v3210 = vsel %vm3209, %v3177, %v2642
        %v3211 = vsel %vm3209, %v3178, %v2644
        %v3212 = vsel %vm3209, %v3179, %v2646
        %v3213 = vsel %vm3209, %v3180, %v2648
        %v3214 = vsel %vm3209, %v3181, %v2650
        %v3215 = vsel %vm3209, %v3182, %v2652
        %v3216 = vsel %vm3209, %v3183, %v2654
        %v3217 = vsel %vm3209, %v3184, %v2656
        %v3218 = vsel %vm3209, %v3185, %v2658
        %v3219 = vsel %vm3209, %v3186, %v2660
        %v3220 = vsel %vm3209, %v3187, %v2662
        %v3221 = vsel %vm3209, %v3188, %v2664
        %v3222 = vsel %vm3209, %v3189, %v2666
        %v3223 = vsel %vm3209, %v3190, %v2668
        %v3224 = vsel %vm3209, %v3191, %v2670
        %v3225 = vsel %vm3209, %v3192, %v2672
        %v3226 = vsel %vm3209, %v3193, %v2674
        %v3227 = vsel %vm3209, %v3194, %v2676
        %v3228 = vsel %vm3209, %v3195, %v2678
        %v3229 = vsel %vm3209, %v3196, %v2680
        %v3230 = vsel %vm3209, %v3197, %v2682
        %v3231 = vsel %vm3209, %v3198, %v2684
        %v3232 = vsel %vm3209, %v3199, %v2686
        %v3233 = vsel %vm3209, %v3200, %v2688
        %v3234 = vsel %vm3209, %v3201, %v2690
        %v3235 = vsel %vm3209, %v3202, %v2692
        %v3236 = vsel %vm3209, %v3203, %v2694
        %v3237 = vsel %vm3209, %v3204, %v2696
        %v3238 = vsel %vm3209, %v3205, %v2698
        %v3239 = vsel %vm3209, %v3206, %v2700
        %v3240 = vsel %vm3209, %v3207, %v2702
        %v3241 = vsel %vm3209, %v3208, %v2704
        %vm3242 = vcmask 523264
        %v3243 = vsel %vm3242, %v3210, %v2744
        %v3244 = vsel %vm3242, %v3211, %v2746
        %v3245 = vsel %vm3242, %v3212, %v2748
        %v3246 = vsel %vm3242, %v3213, %v2750
        %v3247 = vsel %vm3242, %v3214, %v2752
        %v3248 = vsel %vm3242, %v3215, %v2754
        %v3249 = vsel %vm3242, %v3216, %v2756
        %v3250 = vsel %vm3242, %v3217, %v2758
        %v3251 = vsel %vm3242, %v3218, %v2760
        %v3252 = vsel %vm3242, %v3219, %v2762
        %v3253 = vsel %vm3242, %v3220, %v2764
        %v3254 = vsel %vm3242, %v3221, %v2766
        %v3255 = vsel %vm3242, %v3222, %v2768
        %v3256 = vsel %vm3242, %v3223, %v2770
        %v3257 = vsel %vm3242, %v3224, %v2772
        %v3258 = vsel %vm3242, %v3225, %v2774
        %v3259 = vsel %vm3242, %v3226, %v2776
        %v3260 = vsel %vm3242, %v3227, %v2778
        %v3261 = vsel %vm3242, %v3228, %v2780
        %v3262 = vsel %vm3242, %v3229, %v2782
        %v3263 = vsel %vm3242, %v3230, %v2784
        %v3264 = vsel %vm3242, %v3231, %v2786
        %v3265 = vsel %vm3242, %v3232, %v2788
        %v3266 = vsel %vm3242, %v3233, %v2790
        %v3267 = vsel %vm3242, %v3234, %v2792
        %v3268 = vsel %vm3242, %v3235, %v2794
        %v3269 = vsel %vm3242, %v3236, %v2796
        %v3270 = vsel %vm3242, %v3237, %v2798
        %v3271 = vsel %vm3242, %v3238, %v2800
        %v3272 = vsel %vm3242, %v3239, %v2802
        %v3273 = vsel %vm3242, %v3240, %v2804
        %v3274 = vsel %vm3242, %v3241, %v2806
        %vm3275 = vcmask 654336
        %v3276 = vsel %vm3275, %v3243, %v2845
        %v3277 = vsel %vm3275, %v3244, %v2847
        %v3278 = vsel %vm3275, %v3245, %v2849
        %v3279 = vsel %vm3275, %v3246, %v2851
        %v3280 = vsel %vm3275, %v3247, %v2853
        %v3281 = vsel %vm3275, %v3248, %v2855
        %v3282 = vsel %vm3275, %v3249, %v2857
        %v3283 = vsel %vm3275, %v3250, %v2859
        %v3284 = vsel %vm3275, %v3251, %v2861
        %v3285 = vsel %vm3275, %v3252, %v2863
        %v3286 = vsel %vm3275, %v3253, %v2865
        %v3287 = vsel %vm3275, %v3254, %v2867
        %v3288 = vsel %vm3275, %v3255, %v2869
        %v3289 = vsel %vm3275, %v3256, %v2871
        %v3290 = vsel %vm3275, %v3257, %v2873
        %v3291 = vsel %vm3275, %v3258, %v2875
        %v3292 = vsel %vm3275, %v3259, %v2877
        %v3293 = vsel %vm3275, %v3260, %v2879
        %v3294 = vsel %vm3275, %v3261, %v2881
        %v3295 = vsel %vm3275, %v3262, %v2883
        %v3296 = vsel %vm3275, %v3263, %v2885
        %v3297 = vsel %vm3275, %v3264, %v2887
        %v3298 = vsel %vm3275, %v3265, %v2889
        %v3299 = vsel %vm3275, %v3266, %v2891
        %v3300 = vsel %vm3275, %v3267, %v2893
        %v3301 = vsel %vm3275, %v3268, %v2895
        %v3302 = vsel %vm3275, %v3269, %v2897
        %v3303 = vsel %vm3275, %v3270, %v2899
        %v3304 = vsel %vm3275, %v3271, %v2901
        %v3305 = vsel %vm3275, %v3272, %v2903
        %v3306 = vsel %vm3275, %v3273, %v2905
        %v3307 = vsel %vm3275, %v3274, %v2907
        %vm3308 = vcmask 785408
        %v3309 = vsel %vm3308, %v3276, %v2943
        %v3310 = vsel %vm3308, %v3277, %v2945
        %v3311 = vsel %vm3308, %v3278, %v2947
        %v3312 = vsel %vm3308, %v3279, %v2949
        %v3313 = vsel %vm3308, %v3280, %v2951
        %v3314 = vsel %vm3308, %v3281, %v2953
        %v3315 = vsel %vm3308, %v3282, %v2955
        %v3316 = vsel %vm3308, %v3283, %v2957
        %v3317 = vsel %vm3308, %v3284, %v2959
        %v3318 = vsel %vm3308, %v3285, %v2961
        %v3319 = vsel %vm3308, %v3286, %v2963
        %v3320 = vsel %vm3308, %v3287, %v2965
        %v3321 = vsel %vm3308, %v3288, %v2967
        %v3322 = vsel %vm3308, %v3289, %v2969
        %v3323 = vsel %vm3308, %v3290, %v2971
        %v3324 = vsel %vm3308, %v3291, %v2973
        %v3325 = vsel %vm3308, %v3292, %v2975
        %v3326 = vsel %vm3308, %v3293, %v2977
        %v3327 = vsel %vm3308, %v3294, %v2979
        %v3328 = vsel %vm3308, %v3295, %v2981
        %v3329 = vsel %vm3308, %v3296, %v2983
        %v3330 = vsel %vm3308, %v3297, %v2985
        %v3331 = vsel %vm3308, %v3298, %v2987
        %v3332 = vsel %vm3308, %v3299, %v2989
        %v3333 = vsel %vm3308, %v3300, %v2991
        %v3334 = vsel %vm3308, %v3301, %v2993
        %v3335 = vsel %vm3308, %v3302, %v2995
        %v3336 = vsel %vm3308, %v3303, %v2997
        %v3337 = vsel %vm3308, %v3304, %v2999
        %v3338 = vsel %vm3308, %v3305, %v3001
        %v3339 = vsel %vm3308, %v3306, %v3003
        %v3340 = vsel %vm3308, %v3307, %v3005
        %vm3341 = vcmask 916480
        %v3342 = vsel %vm3341, %v3309, %v3045
        %v3343 = vsel %vm3341, %v3310, %v3047
        %v3344 = vsel %vm3341, %v3311, %v3049
        %v3345 = vsel %vm3341, %v3312, %v3051
        %v3346 = vsel %vm3341, %v3313, %v3053
        %v3347 = vsel %vm3341, %v3314, %v3055
        %v3348 = vsel %vm3341, %v3315, %v3057
        %v3349 = vsel %vm3341, %v3316, %v3059
        %v3350 = vsel %vm3341, %v3317, %v3061
        %v3351 = vsel %vm3341, %v3318, %v3063
        %v3352 = vsel %vm3341, %v3319, %v3065
        %v3353 = vsel %vm3341, %v3320, %v3067
        %v3354 = vsel %vm3341, %v3321, %v3069
        %v3355 = vsel %vm3341, %v3322, %v3071
        %v3356 = vsel %vm3341, %v3323, %v3073
        %v3357 = vsel %vm3341, %v3324, %v3075
        %v3358 = vsel %vm3341, %v3325, %v3077
        %v3359 = vsel %vm3341, %v3326, %v3079
        %v3360 = vsel %vm3341, %v3327, %v3081
        %v3361 = vsel %vm3341, %v3328, %v3083
        %v3362 = vsel %vm3341, %v3329, %v3085
        %v3363 = vsel %vm3341, %v3330, %v3087
        %v3364 = vsel %vm3341, %v3331, %v3089
        %v3365 = vsel %vm3341, %v3332, %v3091
        %v3366 = vsel %vm3341, %v3333, %v3093
        %v3367 = vsel %vm3341, %v3334, %v3095
        %v3368 = vsel %vm3341, %v3335, %v3097
        %v3369 = vsel %vm3341, %v3336, %v3099
        %v3370 = vsel %vm3341, %v3337, %v3101
        %v3371 = vsel %vm3341, %v3338, %v3103
        %v3372 = vsel %vm3341, %v3339, %v3105
        %v3373 = vsel %vm3341, %v3340, %v3107
        %v3374 = vld [vmem:[%s3] sm:$0xff]
        %v3375 = vld [vmem:[%s3 + $0x8] sm:$0xff]
        %v3376 = vld [vmem:[%s3 + $0x10] sm:$0xff]
        %v3377 = vld [vmem:[%s3 + $0x18] sm:$0xff]
        %v3378 = vld [vmem:[%s3 + $0x20] sm:$0xff]
        %v3379 = vld [vmem:[%s3 + $0x28] sm:$0xff]
        %v3380 = vld [vmem:[%s3 + $0x30] sm:$0xff]
        %v3381 = vld [vmem:[%s3 + $0x38] sm:$0xff]
        %v3382 = vld [vmem:[%s3 + $0x40] sm:$0xff]
        %v3383 = vld [vmem:[%s3 + $0x48] sm:$0xff]
        %v3384 = vld [vmem:[%s3 + $0x50] sm:$0xff]
        %v3385 = vld [vmem:[%s3 + $0x58] sm:$0xff]
        %v3386 = vld [vmem:[%s3 + $0x60] sm:$0xff]
        %v3387 = vld [vmem:[%s3 + $0x68] sm:$0xff]
        %v3388 = vld [vmem:[%s3 + $0x70] sm:$0xff]
        %v3389 = vld [vmem:[%s3 + $0x78] sm:$0xff]
        %v3390 = vld [vmem:[%s3 + $0x80] sm:$0xff]
        %v3391 = vld [vmem:[%s3 + $0x88] sm:$0xff]
        %v3392 = vld [vmem:[%s4] sm:$0x1]
        %v3394 = vlaneseq
        %v3395 = vshrl.u32 %v3394, 7
        %v3396 = vsub.s32 0, %v3395
        %v3397 = vrot.slane %v3392, %v3396
        %v3399 = vsel %vm1380, %v2475, 0
        %v3401 = vsel %vm1380, %v2477, 0
        %v3403 = vsel %vm1380, %v2480, 0
        %v3405 = vsel %vm1380, %v2482, 0
        %v3407 = vsel %vm1380, %v2485, 0
        %v3409 = vsel %vm1380, %v2487, 0
        %v3411 = vsel %vm1380, %v2490, 0
        %v3413 = vsel %vm1380, %v2492, 0
        %v3415 = vsel %vm1380, %v2495, 0
        %v3417 = vsel %vm1380, %v2497, 0
        %v3419 = vsel %vm1380, %v2500, 0
        %v3421 = vsel %vm1380, %v2502, 0
        %v3423 = vsel %vm1380, %v2505, 0
        %v3425 = vsel %vm1380, %v2507, 0
        %v3427 = vsel %vm1380, %v2510, 0
        %v3429 = vsel %vm1380, %v2512, 0
        %v3431 = vsel %vm1380, %v2515, 0
        %v3433 = vsel %vm1380, %v2517, 0
        %v3435 = vsel %vm1380, %v2520, 0
        %v3437 = vsel %vm1380, %v2522, 0
        %v3439 = vsel %vm1380, %v2525, 0
        %v3441 = vsel %vm1380, %v2527, 0
        %v3443 = vsel %vm1380, %v2530, 0
        %v3445 = vsel %vm1380, %v2532, 0
        %v3447 = vsel %vm1380, %v2535, 0
        %v3449 = vsel %vm1380, %v2537, 0
        %v3451 = vsel %vm1380, %v2540, 0
        %v3453 = vsel %vm1380, %v2542, 0
        %v3455 = vsel %vm1380, %v2841, 0
        %v3457 = vsel %vm1380, %v2843, 0
        %v3459 = vsel %vm1380, %v3142, 0
        %v3461 = vsel %vm1380, %v3144, 0
        %3463 = vmatprep.subr.mxu0 0.0
        %3464 = vmatpush1.msra.mxu0 %v3389
        %3465 = vmatprep.subr.mxu0 0.0
        %3466 = vmatpush1.msra.mxu0 %v3388
        %3467 = vmatprep.subr.mxu0 0.0
        %3468 = vmatpush1.msra.mxu0 %v3387
        %3469 = vmatprep.subr.mxu0 0.0
        %3470 = vmatpush1.msra.mxu0 %v3386
        %3471 = vmatprep.subr.mxu0 0.0
        %3472 = vmatpush1.msra.mxu0 %v3385
        %3473 = vmatprep.subr.mxu0 0.0
        %3474 = vmatpush1.msra.mxu0 %v3384
        %3475 = vmatprep.subr.mxu0 0.0
        %3476 = vmatpush1.msra.mxu0 %v3383
        %3477 = vmatprep.subr.mxu0 0.0
        %3478 = vmatpush1.msra.mxu0 %v3382
        %3479 = vmatprep.subr.mxu0 0.0
        %3480 = vmatpush1.msra.mxu0 %v3381
        %3481 = vmatprep.subr.mxu0 0.0
        %3482 = vmatpush1.msra.mxu0 %v3380
        %3483 = vmatprep.subr.mxu0 0.0
        %3484 = vmatpush1.msra.mxu0 %v3379
        %3485 = vmatprep.subr.mxu0 0.0
        %3486 = vmatpush1.msra.mxu0 %v3378
        %3487 = vmatprep.subr.mxu0 0.0
        %3488 = vmatpush1.msra.mxu0 %v3377
        %3489 = vmatprep.subr.mxu0 0.0
        %3490 = vmatpush1.msra.mxu0 %v3376
        %3491 = vmatprep.subr.mxu0 0.0
        %3492 = vmatpush1.msra.mxu0 %v3375
        %3493 = vmatprep.subr.mxu0 0.0
        %3494 = vmatpush1.msra.mxu0 %v3374
        %3495 = vmatprep.subr.mxu0 0.0
        %3496 = vmatpush2.msra.mxu0 0.0
        %3497 = vmatprep.subr.mxu0 0.0
        %3498 = vmatpush2.msra.mxu0 0.0
        %3499 = vmatprep.subr.mxu0 0.0
        %3500 = vmatpush2.msra.mxu0 0.0
        %3501 = vmatprep.subr.mxu0 0.0
        %3502 = vmatpush2.msra.mxu0 0.0
        %3503 = vmatprep.subr.mxu0 0.0
        %3504 = vmatpush2.msra.mxu0 0.0
        %3505 = vmatprep.subr.mxu0 0.0
        %3506 = vmatpush2.msra.mxu0 0.0
        %3507 = vmatprep.subr.mxu0 0.0
        %3508 = vmatpush2.msra.mxu0 0.0
        %3509 = vmatprep.subr.mxu0 0.0
        %3510 = vmatpush2.msra.mxu0 0.0
        %3511 = vmatprep.subr.mxu0 0.0
        %3512 = vmatpush2.msra.mxu0 0.0
        %3513 = vmatprep.subr.mxu0 0.0
        %3514 = vmatpush2.msra.mxu0 0.0
        %3515 = vmatprep.subr.mxu0 0.0
        %3516 = vmatpush2.msra.mxu0 0.0
        %3517 = vmatprep.subr.mxu0 0.0
        %3518 = vmatpush2.msra.mxu0 0.0
        %3519 = vmatprep.subr.mxu0 0.0
        %3520 = vmatpush2.msra.mxu0 0.0
        %3521 = vmatprep.subr.mxu0 0.0
        %3522 = vmatpush2.msra.mxu0 0.0
        %3523 = vmatprep.subr.mxu0 0.0
        %3524 = vmatpush2.msra.mxu0 %v3391
        %3525 = vmatprep.subr.mxu0 0.0
        %3526 = vmatpush2.msra.mxu0 %v3390
        %3527 = vmatprep.mubr.f32.mxu0 %v3399
        %3528 = vmatmul.mubr.f32.gmra.mxu0 %v3342
        %v3529 = vpop.f32.mrf.mxu0
        %v3530 = vadd.f32 %v3397, %v3529
        %v3531 = vpop.f32.mrf.mxu0
        %3532 = vmatprep.mubr.f32.mxu0 %v3401
        %3533 = vmatmul.mubr.f32.gmra.mxu0 %v3343
        %v3534 = vpop.f32.mrf.mxu0
        %v3535 = vadd.f32 %v3397, %v3534
        %v3536 = vpop.f32.mrf.mxu0
        %3537 = vmatprep.mubr.f32.mxu0 %v3403
        %3538 = vmatmul.mubr.f32.gmra.mxu0 %v3344
        %v3539 = vpop.f32.mrf.mxu0
        %v3540 = vadd.f32 %v3397, %v3539
        %v3541 = vpop.f32.mrf.mxu0
        %3542 = vmatprep.mubr.f32.mxu0 %v3405
        %3543 = vmatmul.mubr.f32.gmra.mxu0 %v3345
        %v3544 = vpop.f32.mrf.mxu0
        %v3545 = vadd.f32 %v3397, %v3544
        %v3546 = vpop.f32.mrf.mxu0
        %3547 = vmatprep.mubr.f32.mxu0 %v3407
        %3548 = vmatmul.mubr.f32.gmra.mxu0 %v3346
        %v3549 = vpop.f32.mrf.mxu0
        %v3550 = vadd.f32 %v3397, %v3549
        %v3551 = vpop.f32.mrf.mxu0
        %3552 = vmatprep.mubr.f32.mxu0 %v3409
        %3553 = vmatmul.mubr.f32.gmra.mxu0 %v3347
        %v3554 = vpop.f32.mrf.mxu0
        %v3555 = vadd.f32 %v3397, %v3554
        %v3556 = vpop.f32.mrf.mxu0
        %3557 = vmatprep.mubr.f32.mxu0 %v3411
        %3558 = vmatmul.mubr.f32.gmra.mxu0 %v3348
        %v3559 = vpop.f32.mrf.mxu0
        %v3560 = vadd.f32 %v3397, %v3559
        %v3561 = vpop.f32.mrf.mxu0
        %3562 = vmatprep.mubr.f32.mxu0 %v3413
        %3563 = vmatmul.mubr.f32.gmra.mxu0 %v3349
        %v3564 = vpop.f32.mrf.mxu0
        %v3565 = vadd.f32 %v3397, %v3564
        %v3566 = vpop.f32.mrf.mxu0
        %3567 = vmatprep.mubr.f32.mxu0 %v3415
        %3568 = vmatmul.mubr.f32.gmra.mxu0 %v3350
        %v3569 = vpop.f32.mrf.mxu0
        %v3570 = vadd.f32 %v3397, %v3569
        %v3571 = vpop.f32.mrf.mxu0
        %3572 = vmatprep.mubr.f32.mxu0 %v3417
        %3573 = vmatmul.mubr.f32.gmra.mxu0 %v3351
        %v3574 = vpop.f32.mrf.mxu0
        %v3575 = vadd.f32 %v3397, %v3574
        %v3576 = vpop.f32.mrf.mxu0
        %3577 = vmatprep.mubr.f32.mxu0 %v3419
        %3578 = vmatmul.mubr.f32.gmra.mxu0 %v3352
        %v3579 = vpop.f32.mrf.mxu0
        %v3580 = vadd.f32 %v3397, %v3579
        %v3581 = vpop.f32.mrf.mxu0
        %3582 = vmatprep.mubr.f32.mxu0 %v3421
        %3583 = vmatmul.mubr.f32.gmra.mxu0 %v3353
        %v3584 = vpop.f32.mrf.mxu0
        %v3585 = vadd.f32 %v3397, %v3584
        %v3586 = vpop.f32.mrf.mxu0
        %3587 = vmatprep.mubr.f32.mxu0 %v3423
        %3588 = vmatmul.mubr.f32.gmra.mxu0 %v3354
        %v3589 = vpop.f32.mrf.mxu0
        %v3590 = vadd.f32 %v3397, %v3589
        %v3591 = vpop.f32.mrf.mxu0
        %3592 = vmatprep.mubr.f32.mxu0 %v3425
        %3593 = vmatmul.mubr.f32.gmra.mxu0 %v3355
        %v3594 = vpop.f32.mrf.mxu0
        %v3595 = vadd.f32 %v3397, %v3594
        %v3596 = vpop.f32.mrf.mxu0
        %3597 = vmatprep.mubr.f32.mxu0 %v3427
        %3598 = vmatmul.mubr.f32.gmra.mxu0 %v3356
        %v3599 = vpop.f32.mrf.mxu0
        %v3600 = vadd.f32 %v3397, %v3599
        %v3601 = vpop.f32.mrf.mxu0
        %3602 = vmatprep.mubr.f32.mxu0 %v3429
        %3603 = vmatmul.mubr.f32.gmra.mxu0 %v3357
        %v3604 = vpop.f32.mrf.mxu0
        %v3605 = vadd.f32 %v3397, %v3604
        %v3606 = vpop.f32.mrf.mxu0
        %3607 = vmatprep.mubr.f32.mxu0 %v3431
        %3608 = vmatmul.mubr.f32.gmra.mxu0 %v3358
        %v3609 = vpop.f32.mrf.mxu0
        %v3610 = vadd.f32 %v3397, %v3609
        %v3611 = vpop.f32.mrf.mxu0
        %3612 = vmatprep.mubr.f32.mxu0 %v3433
        %3613 = vmatmul.mubr.f32.gmra.mxu0 %v3359
        %v3614 = vpop.f32.mrf.mxu0
        %v3615 = vadd.f32 %v3397, %v3614
        %v3616 = vpop.f32.mrf.mxu0
        %3617 = vmatprep.mubr.f32.mxu0 %v3435
        %3618 = vmatmul.mubr.f32.gmra.mxu0 %v3360
        %v3619 = vpop.f32.mrf.mxu0
        %v3620 = vadd.f32 %v3397, %v3619
        %v3621 = vpop.f32.mrf.mxu0
        %3622 = vmatprep.mubr.f32.mxu0 %v3437
        %3623 = vmatmul.mubr.f32.gmra.mxu0 %v3361
        %v3624 = vpop.f32.mrf.mxu0
        %v3625 = vadd.f32 %v3397, %v3624
        %v3626 = vpop.f32.mrf.mxu0
        %3627 = vmatprep.mubr.f32.mxu0 %v3439
        %3628 = vmatmul.mubr.f32.gmra.mxu0 %v3362
        %v3629 = vpop.f32.mrf.mxu0
        %v3630 = vadd.f32 %v3397, %v3629
        %v3631 = vpop.f32.mrf.mxu0
        %3632 = vmatprep.mubr.f32.mxu0 %v3441
        %3633 = vmatmul.mubr.f32.gmra.mxu0 %v3363
        %v3634 = vpop.f32.mrf.mxu0
        %v3635 = vadd.f32 %v3397, %v3634
        %v3636 = vpop.f32.mrf.mxu0
        %3637 = vmatprep.mubr.f32.mxu0 %v3443
        %3638 = vmatmul.mubr.f32.gmra.mxu0 %v3364
        %v3639 = vpop.f32.mrf.mxu0
        %v3640 = vadd.f32 %v3397, %v3639
        %v3641 = vpop.f32.mrf.mxu0
        %3642 = vmatprep.mubr.f32.mxu0 %v3445
        %3643 = vmatmul.mubr.f32.gmra.mxu0 %v3365
        %v3644 = vpop.f32.mrf.mxu0
        %v3645 = vadd.f32 %v3397, %v3644
        %v3646 = vpop.f32.mrf.mxu0
        %3647 = vmatprep.mubr.f32.mxu0 %v3447
        %3648 = vmatmul.mubr.f32.gmra.mxu0 %v3366
        %v3649 = vpop.f32.mrf.mxu0
        %v3650 = vadd.f32 %v3397, %v3649
        %v3651 = vpop.f32.mrf.mxu0
        %3652 = vmatprep.mubr.f32.mxu0 %v3449
        %3653 = vmatmul.mubr.f32.gmra.mxu0 %v3367
        %v3654 = vpop.f32.mrf.mxu0
        %v3655 = vadd.f32 %v3397, %v3654
        %v3656 = vpop.f32.mrf.mxu0
        %3657 = vmatprep.mubr.f32.mxu0 %v3451
        %3658 = vmatmul.mubr.f32.gmra.mxu0 %v3368
        %v3659 = vpop.f32.mrf.mxu0
        %v3660 = vadd.f32 %v3397, %v3659
        %v3661 = vpop.f32.mrf.mxu0
        %3662 = vmatprep.mubr.f32.mxu0 %v3453
        %3663 = vmatmul.mubr.f32.gmra.mxu0 %v3369
        %v3664 = vpop.f32.mrf.mxu0
        %v3665 = vadd.f32 %v3397, %v3664
        %v3666 = vpop.f32.mrf.mxu0
        %3667 = vmatprep.mubr.f32.mxu0 %v3455
        %3668 = vmatmul.mubr.f32.gmra.mxu0 %v3370
        %v3669 = vpop.f32.mrf.mxu0
        %v3670 = vadd.f32 %v3397, %v3669
        %v3671 = vpop.f32.mrf.mxu0
        %3672 = vmatprep.mubr.f32.mxu0 %v3457
        %3673 = vmatmul.mubr.f32.gmra.mxu0 %v3371
        %v3674 = vpop.f32.mrf.mxu0
        %v3675 = vadd.f32 %v3397, %v3674
        %v3676 = vpop.f32.mrf.mxu0
        %3677 = vmatprep.mubr.f32.mxu0 %v3459
        %3678 = vmatmul.mubr.f32.gmra.mxu0 %v3372
        %v3679 = vpop.f32.mrf.mxu0
        %v3680 = vadd.f32 %v3397, %v3679
        %v3681 = vpop.f32.mrf.mxu0
        %3682 = vmatprep.mubr.f32.mxu0 %v3461
        %3683 = vmatmul.mubr.f32.gmra.mxu0 %v3373
        %v3684 = vpop.f32.mrf.mxu0
        %v3685 = vadd.f32 %v3397, %v3684
        %v3686 = vpop.f32.mrf.mxu0
        %3687 = vdwg.mxu0
        %3688 = vxpose.xlu0.b32.start [1/16] %v3530, 128
        %3689 = vxpose.xlu0.b32.cont [2/16] %v3535, 128
        %3690 = vxpose.xlu0.b32.cont [3/16] %v3540, 128
        %3691 = vxpose.xlu0.b32.cont [4/16] %v3545, 128
        %3692 = vxpose.xlu0.b32.cont [5/16] %v3550, 128
        %3693 = vxpose.xlu0.b32.cont [6/16] %v3555, 128
        %3694 = vxpose.xlu0.b32.cont [7/16] %v3560, 128
        %3695 = vxpose.xlu0.b32.cont [8/16] %v3565, 128
        %3696 = vxpose.xlu0.b32.cont [9/16] %v3570, 128
        %3697 = vxpose.xlu0.b32.cont [10/16] %v3575, 128
        %3698 = vxpose.xlu0.b32.cont [11/16] %v3580, 128
        %3699 = vxpose.xlu0.b32.cont [12/16] %v3585, 128
        %3700 = vxpose.xlu0.b32.cont [13/16] %v3590, 128
        %3701 = vxpose.xlu0.b32.cont [14/16] %v3595, 128
        %3702 = vxpose.xlu0.b32.cont [15/16] %v3600, 128
        %3703 = vxpose.xlu0.b32.end [16/16] %v3605, 128
        %v3704 = vpop.trf.xlu0
        %v3705 = vpop.trf.xlu0
        %v3706 = vpop.trf.xlu0
        %v3707 = vpop.trf.xlu0
        %v3708 = vpop.trf.xlu0
        %v3709 = vpop.trf.xlu0
        %v3710 = vpop.trf.xlu0
        %v3711 = vpop.trf.xlu0
        %v3712 = vpop.trf.xlu0
        %v3713 = vpop.trf.xlu0
        %v3714 = vpop.trf.xlu0
        %v3715 = vpop.trf.xlu0
        %v3716 = vpop.trf.xlu0
        %v3717 = vpop.trf.xlu0
        %v3718 = vpop.trf.xlu0
        %v3719 = vpop.trf.xlu0
        %3720 = vxpose.xlu0.b32.start [1/16] %v3610, 128
        %3721 = vxpose.xlu0.b32.cont [2/16] %v3615, 128
        %3722 = vxpose.xlu0.b32.cont [3/16] %v3620, 128
        %3723 = vxpose.xlu0.b32.cont [4/16] %v3625, 128
        %3724 = vxpose.xlu0.b32.cont [5/16] %v3630, 128
        %3725 = vxpose.xlu0.b32.cont [6/16] %v3635, 128
        %3726 = vxpose.xlu0.b32.cont [7/16] %v3640, 128
        %3727 = vxpose.xlu0.b32.cont [8/16] %v3645, 128
        %3728 = vxpose.xlu0.b32.cont [9/16] %v3650, 128
        %3729 = vxpose.xlu0.b32.cont [10/16] %v3655, 128
        %3730 = vxpose.xlu0.b32.cont [11/16] %v3660, 128
        %3731 = vxpose.xlu0.b32.cont [12/16] %v3665, 128
        %3732 = vxpose.xlu0.b32.cont [13/16] %v3670, 128
        %3733 = vxpose.xlu0.b32.cont [14/16] %v3675, 128
        %3734 = vxpose.xlu0.b32.cont [15/16] %v3680, 128
        %3735 = vxpose.xlu0.b32.end [16/16] %v3685, 128
        %v3736 = vpop.trf.xlu0
        %v3737 = vpop.trf.xlu0
        %v3738 = vpop.trf.xlu0
        %v3739 = vpop.trf.xlu0
        %v3740 = vpop.trf.xlu0
        %v3741 = vpop.trf.xlu0
        %v3742 = vpop.trf.xlu0
        %v3743 = vpop.trf.xlu0
        %v3744 = vpop.trf.xlu0
        %v3745 = vpop.trf.xlu0
        %v3746 = vpop.trf.xlu0
        %v3747 = vpop.trf.xlu0
        %v3748 = vpop.trf.xlu0
        %v3749 = vpop.trf.xlu0
        %v3750 = vpop.trf.xlu0
        %v3751 = vpop.trf.xlu0
        %v3754 = vcombine.low %v3704, %v3736
        %3756 = vst [vmem:[%s217] sm:$0xff] %v3754
        %s3757 = sand.u32 %s137, 1
        %s3758 = scalar_lea.sflag [#allocation4], %s3757
        %s3759 = sand.u32 %s137, 1
        %s3760 = smul.addr %s3759, 8
        %s3761 = scalar_lea.vmem [#allocation3], %s3760
        // Predicated region
        $region41: #{tpu_custom_call.1} parent=39 // pred_check
          %p3762 = pneg %p147
        $region42: #{tpu_custom_call.1} parent=39 // pred_check_branch
          %3764 = sbr.rel (%p3762) target = $region44
        $region43: #{tpu_custom_call.1} parent=39 // pred_region
          %s3766 = ssub.s32 128, 128
          %3767 = vsyncadd %s3758, %s3766
          %s3768 = smul.addr %s19, 2
          %s3769 = smul.addr %s3768, 64
          %s3770 = scalar_lea.hbm %s5, %s3769
          %s3772 = sshll.u32 %s3761, 4
          %s3773 = int_to_ptr.vmem [resolvable:$true] %s3772
          %3775 = dma.vmem_to_hbm [thread:$0]  %s3773, 128, %s3770, %s3758
        $region44: #{tpu_custom_call.1} parent=39 // pred_fallthru
          _
      $region40: #{tpu_custom_call.1} parent=5 // pred_fallthru
        _
      %p3776 = scmp.le.s32.totalorder 2, %s14
      // Predicated region
      $region45: #{tpu_custom_call.1} parent=5 // pred_check
        %p3777 = pneg %p3776
      $region46: #{tpu_custom_call.1} parent=5 // pred_check_branch
        %3779 = sbr.rel (%p3777) target = $region48
      $region47: #{tpu_custom_call.1} parent=5 // pred_region
        %s3780 = ssub.s32 %s14, 2
        // Predicated region
        $region49: #{tpu_custom_call.1} parent=47 // pred_check
          %p3781 = pneg %p153
        $region50: #{tpu_custom_call.1} parent=47 // pred_check_branch
          %3783 = sbr.rel (%p3781) target = $region52
        $region51: #{tpu_custom_call.1} parent=47 // pred_region
          %s3784 = sand.u32 %s138, 1
          %s3785 = scalar_lea.sflag [#allocation4], %s3784
          %s3786 = sand.u32 %s138, 1
          %s3787 = smul.addr %s3786, 8
          %s3788 = scalar_lea.vmem [#allocation3], %s3787
          %3789 = dma.done %s3785, 128
        $region52: #{tpu_custom_call.1} parent=47 // pred_fallthru
          _
      $region48: #{tpu_custom_call.1} parent=5 // pred_fallthru
        _
    $region6: #{tpu_custom_call.1} parent=1 // loop_footer
      %s18 = sadd.s32 1, %s14
    $region7: #{tpu_custom_call.1} parent=1 // loop_footer_branch
      %13 = sbr.rel target = $region3
    $region8: #{tpu_custom_call.1} parent=1 // loop_exit
      _
    %3790 = vsyncpa [#allocation4], 1
    %s3791 = scalar_lea.sflag [#allocation4], 1
    %3792 = vsyncpa %s3791, 1

</llo_original>
